<compile_context>
chip_gen: v5e
topology: v5e:2x2
jax: 0.10.0
libtpu: 0.0.40
codegen_flags: <defaults>
</compile_context>

<pallas_src>
import functools
import math

import jax
import jax.numpy as jnp
from jax.experimental import pallas as pl
from jax.experimental.pallas import tpu as pltpu


def _layer_norm_f32(v, gamma, beta, eps=1e-6):
    # torch.Tensor.std default is unbiased (N-1); eps is added to std.
    n = v.shape[-1]
    mean = jnp.mean(v, axis=-1, keepdims=True)
    var = jnp.sum((v - mean) ** 2, axis=-1, keepdims=True) * (1.0 / (n - 1))
    std = jnp.sqrt(var)
    inv = pl.reciprocal(std + eps, approx=False)     # reciprocal + multiply
    return (v - mean) * inv * gamma + beta


def decoder_layer_kernel(
    x_ref, m_ref,
    wq_ref, bq_ref, wk_ref, bk_ref, wv_ref, bv_ref, wo_ref, bo_ref,
    g1_ref, be1_ref, w1_ref, b1_ref, w2_ref, b2_ref, g2_ref, be2_ref,
    *rest, num_heads, emit_attn, exp_in_bf16, ffn_chunk,
):
    if emit_attn:
        out_ref, attn_ref, q_hm_ref, k_hm_ref, v_hm_ref = rest
    else:
        out_ref, q_hm_ref, k_hm_ref, v_hm_ref = rest
        attn_ref = None

    qi = pl.program_id(1)
    cdtype = wq_ref.dtype                      # MXU operand dtype (native)
    H = num_heads
    dk = wq_ref.shape[-1]
    scale = 1.0 / math.sqrt(dk)

    # ---- K/V projections: q-tile invariant, compute once per batch row -----
    # Head-major scratches (H, Tk, dk): full-width blocks, no 64-lane slicing
    # in the per-q-tile inner math.
    @pl.when(qi == 0)
    def _():
        m = m_ref[0]                                           # (Tk, D) native
        for h in range(H):
            kh = jnp.dot(m, wk_ref[h], preferred_element_type=jnp.float32)
            k_hm_ref[h] = (kh + bk_ref[h].astype(jnp.float32)).astype(cdtype)
            vh = jnp.dot(m, wv_ref[h], preferred_element_type=jnp.float32)
            v_hm_ref[h] = (vh + bv_ref[h].astype(jnp.float32)).astype(cdtype)

    x = x_ref[0].astype(jnp.float32)                           # (tq, D) f32

    # ---------------- sublayer[0]: x + src_attn(norm(x), m, m) --------------
    nx = _layer_norm_f32(x, g1_ref[0].astype(jnp.float32),
                         be1_ref[0].astype(jnp.float32))
    nx_c = nx.astype(cdtype)
    for h in range(H):                          # head-major Q projection
        qh = jnp.dot(nx_c, wq_ref[h], preferred_element_type=jnp.float32)
        qh = (qh + bq_ref[h].astype(jnp.float32)) * scale   # fold 1/sqrt(dk)
        q_hm_ref[h] = qh.astype(cdtype)

    q_hm = q_hm_ref[...]                                       # (H, tq, dk)
    k_hm = k_hm_ref[...]                                       # (H, Tk, dk)
    v_hm = v_hm_ref[...]                                       # (H, Tk, dk)

    # Batched over heads: one dot_general each for QK^T and P.V.
    s = jax.lax.dot_general(q_hm, k_hm, (((2,), (2,)), ((0,), (0,))),
                            preferred_element_type=jnp.float32)  # (H, tq, Tk)
    mx = jnp.max(s, axis=-1, keepdims=True)
    if exp_in_bf16:
        # bf16 EUP exp on v6e/v7x; row-sum stays f32.
        e = jnp.exp((s - mx).astype(jnp.bfloat16))
        denom = jnp.sum(e.astype(jnp.float32), axis=-1, keepdims=True)
    else:
        e = jnp.exp(s - mx)
        denom = jnp.sum(e, axis=-1, keepdims=True)
    inv = pl.reciprocal(denom, approx=True)
    p = (e * inv).astype(cdtype)                               # (H, tq, Tk)
    if attn_ref is not None:
        attn_ref[0] = p.astype(attn_ref.dtype)

    ctx = jax.lax.dot_general(p, v_hm, (((2,), (1,)), ((0,), (0,))),
                              preferred_element_type=jnp.float32)  # (H,tq,dk)
    # Output projection with head-major wo (H, dk, D): batched matmul + sum
    # over heads (no flatten/transpose of ctx).
    per_head = jax.lax.dot_general(ctx.astype(cdtype), wo_ref[...],
                                   (((2,), (1,)), ((0,), (0,))),
                                   preferred_element_type=jnp.float32)
    attn_out = jnp.sum(per_head, axis=0) + bo_ref[0].astype(jnp.float32)
    x1 = x + attn_out                                          # residual (f32)

    # ---------------- sublayer[1]: x1 + feed_forward(norm(x1)) --------------
    nx2 = _layer_norm_f32(x1, g2_ref[0].astype(jnp.float32),
                          be2_ref[0].astype(jnp.float32))
    nx2_c = nx2.astype(cdtype)
    Dff = w1_ref.shape[1]
    ff = None
    for c0 in range(0, Dff, ffn_chunk):         # chunked over Dff (static)
        c1 = c0 + ffn_chunk
        h1 = jnp.dot(nx2_c, w1_ref[:, c0:c1],
                     preferred_element_type=jnp.float32)
        h1 = jnp.maximum(h1 + b1_ref[:, c0:c1].astype(jnp.float32), 0.0)
        contrib = jnp.dot(h1.astype(cdtype), w2_ref[c0:c1, :],
                          preferred_element_type=jnp.float32)
        ff = contrib if ff is None else ff + contrib
    ff = ff + b2_ref[0].astype(jnp.float32)

    out_ref[0] = (x1 + ff).astype(out_ref.dtype)


def _vmem_cap_bytes():
    try:
        return int(pltpu.get_tpu_info().vmem_capacity_bytes)
    except Exception:
        return 64 << 20          # safe lower bound across generations (v7x)


def _build_and_call(x, m, hp, *, num_heads, tq, nq, return_attn, exp_in_bf16,
                    ffn_chunk, use_buffered):
    B, Tq_p, D = x.shape
    Tk = m.shape[1]
    H = num_heads
    dk = D // H
    Dff = hp["w1"].shape[1]
    cdtype = hp["wq_hm"].dtype

    def rep(shape):  # replicated operand; single-buffer when supported
        idx = lambda b, qi, n=len(shape): (0,) * n
        if use_buffered:
            return pl.BlockSpec(shape, idx, pipeline_mode=pl.Buffered(1))
        return pl.BlockSpec(shape, idx)

    if use_buffered:   # m only read at qi==0 -> single buffer
        m_spec = pl.BlockSpec((1, Tk, D), lambda b, qi: (b, 0, 0),
                              pipeline_mode=pl.Buffered(1))
    else:
        m_spec = pl.BlockSpec((1, Tk, D), lambda b, qi: (b, 0, 0))

    in_specs = [
        pl.BlockSpec((1, tq, D), lambda b, qi: (b, qi, 0)),   # x (q-tiled)
        m_spec,                                               # m (full Tk)
        rep((H, D, dk)), rep((H, 1, dk)),                     # wq, bq
        rep((H, D, dk)), rep((H, 1, dk)),                     # wk, bk
        rep((H, D, dk)), rep((H, 1, dk)),                     # wv, bv
        rep((H, dk, D)), rep((1, D)),                         # wo, bo
        rep((1, D)), rep((1, D)),                             # gamma1, beta1
        rep((D, Dff)), rep((1, Dff)),                         # w1, b1
        rep((Dff, D)), rep((1, D)),                           # w2, b2
        rep((1, D)), rep((1, D)),                             # gamma2, beta2
    ]

    out_spec_x = pl.BlockSpec((1, tq, D), lambda b, qi: (b, qi, 0))
    if return_attn:
        out_specs = (out_spec_x,
                     pl.BlockSpec((1, H, tq, Tk), lambda b, qi: (b, 0, qi, 0)))
        out_shape = (jax.ShapeDtypeStruct((B, Tq_p, D), x.dtype),
                     jax.ShapeDtypeStruct((B, H, Tq_p, Tk), x.dtype))
    else:
        out_specs = out_spec_x
        out_shape = jax.ShapeDtypeStruct((B, Tq_p, D), x.dtype)

    scratch_shapes = [
        pltpu.VMEM((H, tq, dk), cdtype),       # head-major Q (per q-tile)
        pltpu.VMEM((H, Tk, dk), cdtype),       # cached K (per batch row)
        pltpu.VMEM((H, Tk, dk), cdtype),       # cached V (per batch row)
    ]

    # VMEM budget: single-buffered weights (when supported), pipelined data
    # blocks, scratches and f32 temporaries; cap at 85% of physical VMEM.
    witem = jnp.dtype(cdtype).itemsize
    xitem = jnp.dtype(x.dtype).itemsize
    wbuf = 1 if use_buffered else 2
    weight_bytes = witem * (4 * D * D + 2 * D * Dff + Dff + 12 * D)
    io_bytes = xitem * (4 * tq * D + (1 if use_buffered else 2) * Tk * D)
    if return_attn:
        io_bytes += xitem * 2 * H * tq * Tk
    scratch_bytes = witem * (tq * D + 2 * Tk * D)
    temp_bytes = 4 * (2 * H * tq * Tk + 2 * H * tq * D
                      + tq * ffn_chunk + 4 * tq * D)
    need = wbuf * weight_bytes + io_bytes + scratch_bytes + temp_bytes + (2 << 20)
    vmem_limit = int(min(max(need, 32 << 20), int(0.85 * _vmem_cap_bytes())))

    kernel = functools.partial(
        decoder_layer_kernel, num_heads=H, emit_attn=return_attn,
        exp_in_bf16=exp_in_bf16, ffn_chunk=ffn_chunk)

    return pl.pallas_call(
        kernel,
        out_shape=out_shape,
        grid_spec=pltpu.PrefetchScalarGridSpec(
            num_scalar_prefetch=0,
            grid=(B, nq),
            in_specs=in_specs,
            out_specs=out_specs,
            scratch_shapes=scratch_shapes,
        ),
        compiler_params=pltpu.CompilerParams(
            dimension_semantics=("parallel", "arbitrary"),
            vmem_limit_bytes=vmem_limit,
        ),
    )(
        x, m,
        hp["wq_hm"], hp["bq_hm"], hp["wk_hm"], hp["bk_hm"],
        hp["wv_hm"], hp["bv_hm"], hp["wo_hm"], hp["bo"],
        hp["gamma1"], hp["beta1"], hp["w1"], hp["b1"], hp["w2"], hp["b2"],
        hp["gamma2"], hp["beta2"],
    )


def decoder_layer(x, m, params, *, num_heads, q_tile=128, return_attn=True):
    B, Tq, D = x.shape
    H = num_heads
    assert D % H == 0, "d_model must be divisible by num_heads"
    dk = D // H
    Dff = params["w1"].shape[1]
    cdtype = params["wq"].dtype

    # Host-side head-major repack (one-time layout plumbing, not compute).
    hp = {
        "wq_hm": params["wq"].reshape(D, H, dk).transpose(1, 0, 2),
        "bq_hm": params["bq"].reshape(H, 1, dk),
        "wk_hm": params["wk"].reshape(D, H, dk).transpose(1, 0, 2),
        "bk_hm": params["bk"].reshape(H, 1, dk),
        "wv_hm": params["wv"].reshape(D, H, dk).transpose(1, 0, 2),
        "bv_hm": params["bv"].reshape(H, 1, dk),
        "wo_hm": params["wo"].reshape(H, dk, D),
        "bo": params["bo"],
        "gamma1": params["gamma1"], "beta1": params["beta1"],
        "w1": params["w1"], "b1": params["b1"],
        "w2": params["w2"], "b2": params["b2"],
        "gamma2": params["gamma2"], "beta2": params["beta2"],
    }

    # q-tiling; host-side padding for non-multiple Tq (outputs sliced back).
    if Tq <= q_tile:
        tq, pad = Tq, 0
    else:
        tq = q_tile
        pad = (-Tq) % q_tile
        if pad:
            x = jnp.pad(x, ((0, 0), (0, pad), (0, 0)))
    Tq_p = Tq + pad
    nq = Tq_p // tq

    # bf16 EUP exp only where the hardware supports it (v6e / v7x).
    exp_in_bf16 = False
    if cdtype == jnp.bfloat16:
        try:
            kind = jax.devices()[0].device_kind.lower()
            exp_in_bf16 = ("v6" in kind) or ("v7" in kind)
        except Exception:
            exp_in_bf16 = False

    ffn_chunk = Dff
    for cand in (512, 256, 128):
        if Dff % cand == 0:
            ffn_chunk = cand
            break

    common = dict(num_heads=H, tq=tq, nq=nq, return_attn=return_attn,
                  exp_in_bf16=exp_in_bf16, ffn_chunk=ffn_chunk)
    try:
        res = _build_and_call(x, m, hp, use_buffered=True, **common)
    except Exception:
        # pipeline_mode=pl.Buffered(1) unsupported on this jax/libtpu build:
        # fall back to default double-buffering (correctness unchanged).
        res = _build_and_call(x, m, hp, use_buffered=False, **common)

    if return_attn:
        out, attn = res
        if pad:
            out, attn = out[:, :Tq], attn[:, :, :Tq]
        return out, attn
    out = res
    if pad:
        out = out[:, :Tq]
    return out


# ------------------------- pure-JAX reference ------------------------------
def decoder_layer_ref(x, m, params, *, num_heads):
    D = x.shape[-1]
    dk = D // num_heads

    def ln(v, g, b):
        n = v.shape[-1]
        mean = jnp.mean(v, -1, keepdims=True)
        var = jnp.sum((v - mean) ** 2, -1, keepdims=True) / (n - 1)
        return g[0] * (v - mean) / (jnp.sqrt(var) + 1e-6) + b[0]

    nx = ln(x, params["gamma1"], params["beta1"])
    q = nx @ params["wq"] + params["bq"][0]
    k = m @ params["wk"] + params["bk"][0]
    v = m @ params["wv"] + params["bv"][0]

    def split(t):  # (B,T,D) -> (B,H,T,dk)
        B, T, _ = t.shape
        return t.reshape(B, T, num_heads, dk).transpose(0, 2, 1, 3)

    qh, kh, vh = split(q), split(k), split(v)
    scores = jnp.einsum("bhqd,bhkd->bhqk", qh, kh) / math.sqrt(dk)
    p = jax.nn.softmax(scores, axis=-1)
    ctx = jnp.einsum("bhqk,bhkd->bhqd", p, vh)
    ctx = ctx.transpose(0, 2, 1, 3).reshape(x.shape)
    x1 = x + (ctx @ params["wo"] + params["bo"][0])

    nx2 = ln(x1, params["gamma2"], params["beta2"])
    ff = jnp.maximum(nx2 @ params["w1"] + params["b1"][0], 0.0) @ params["w2"] \
         + params["b2"][0]
    return x1 + ff, p


if __name__ == "__main__":
    B, Tq, Tk, D, H, Dff = 2, 8, 8, 32, 4, 64

    key = jax.random.PRNGKey(0)
    ks = jax.random.split(key, 16)

    def w(k, shape, scale=0.1):
        return (scale * jax.random.normal(k, shape)).astype(jnp.float32)

    params = {
        "wq": w(ks[0], (D, D)),  "bq": w(ks[1], (1, D)),
        "wk": w(ks[2], (D, D)),  "bk": w(ks[3], (1, D)),
        "wv": w(ks[4], (D, D)),  "bv": w(ks[5], (1, D)),
        "wo": w(ks[6], (D, D)),  "bo": w(ks[7], (1, D)),
        "gamma1": jnp.ones((1, D), jnp.float32),
        "beta1": jnp.zeros((1, D), jnp.float32),
        "w1": w(ks[8], (D, Dff)), "b1": w(ks[9], (1, Dff)),
        "w2": w(ks[10], (Dff, D)), "b2": w(ks[11], (1, D)),
        "gamma2": jnp.ones((1, D), jnp.float32),
        "beta2": jnp.zeros((1, D), jnp.float32),
    }

    x = jax.random.normal(ks[12], (B, Tq, D), jnp.float32)
    hidden_states = jax.random.normal(ks[13], (B, Tk, D), jnp.float32)

    out_ref, attn_ref = decoder_layer_ref(x, hidden_states, params, num_heads=H)

    # f32 path (native dtype fed straight to the MXU, f32 accumulation)
    out, attn = decoder_layer(x, hidden_states, params, num_heads=H)
    jax.block_until_ready((out, attn))
    assert jnp.allclose(out, out_ref, rtol=1e-2, atol=3e-3), "f32 output mismatch"
    assert jnp.allclose(attn, attn_ref, rtol=1e-2, atol=2e-3), "f32 attn mismatch"

    # return_attn=False path (skips the attention-probability HBM writeback)
    out_noattn = decoder_layer(x, hidden_states, params, num_heads=H,
                               return_attn=False)
    jax.block_until_ready(out_noattn)
    assert jnp.allclose(out_noattn, out_ref, rtol=1e-2, atol=3e-3), \
        "no-attn output mismatch"

    # Multi-q-tile + padded-Tq path (exercises KV cache reuse across q-tiles)
    Tq2 = 40
    x2 = jax.random.normal(ks[14], (B, Tq2, D), jnp.float32)
    out2_ref, attn2_ref = decoder_layer_ref(x2, hidden_states, params,
                                            num_heads=H)
    out2, attn2 = decoder_layer(x2, hidden_states, params, num_heads=H,
                                q_tile=16)
    jax.block_until_ready((out2, attn2))
    assert jnp.allclose(out2, out2_ref, rtol=1e-2, atol=3e-3), \
        "tiled/padded output mismatch"
    assert jnp.allclose(attn2, attn2_ref, rtol=1e-2, atol=2e-3), \
        "tiled/padded attn mismatch"

    # bf16 path: bf16 MXU operands, f32 accumulation + f32 LN/softmax stats
    params_bf16 = jax.tree_util.tree_map(
        lambda a: a.astype(jnp.bfloat16), params)
    out_bf, attn_bf = decoder_layer(x.astype(jnp.bfloat16),
                                    hidden_states.astype(jnp.bfloat16),
                                    params_bf16, num_heads=H)
    jax.block_until_ready((out_bf, attn_bf))
    assert jnp.allclose(out_bf.astype(jnp.float32), out_ref,
                        rtol=1e-1, atol=1e-1), "bf16 output mismatch"
    assert jnp.allclose(attn_bf.astype(jnp.float32), attn_ref,
                        rtol=1e-1, atol=5e-2), "bf16 attn mismatch"

    print("KERNEL_OK")
</pallas_src>

<mosaic_0001>
module attributes {stable_mosaic.version = 11 : i64} {
  func.func @decoder_layer_kernel(%arg0: i32, %arg1: i32, %arg2: memref<1x8x32xf32, #tpu.memory_space<vmem>>, %arg3: memref<1x8x32xf32, #tpu.memory_space<vmem>>, %arg4: memref<4x32x8xf32, #tpu.memory_space<vmem>>, %arg5: memref<4x1x8xf32, #tpu.memory_space<vmem>>, %arg6: memref<4x32x8xf32, #tpu.memory_space<vmem>>, %arg7: memref<4x1x8xf32, #tpu.memory_space<vmem>>, %arg8: memref<4x32x8xf32, #tpu.memory_space<vmem>>, %arg9: memref<4x1x8xf32, #tpu.memory_space<vmem>>, %arg10: memref<4x8x32xf32, #tpu.memory_space<vmem>>, %arg11: memref<1x32xf32, #tpu.memory_space<vmem>>, %arg12: memref<1x32xf32, #tpu.memory_space<vmem>>, %arg13: memref<1x32xf32, #tpu.memory_space<vmem>>, %arg14: memref<32x64xf32, #tpu.memory_space<vmem>>, %arg15: memref<1x64xf32, #tpu.memory_space<vmem>>, %arg16: memref<64x32xf32, #tpu.memory_space<vmem>>, %arg17: memref<1x32xf32, #tpu.memory_space<vmem>>, %arg18: memref<1x32xf32, #tpu.memory_space<vmem>>, %arg19: memref<1x32xf32, #tpu.memory_space<vmem>>, %arg20: memref<1x8x32xf32, #tpu.memory_space<vmem>>, %arg21: memref<1x4x8x8xf32, #tpu.memory_space<vmem>>, %arg22: memref<4x8x8xf32, #tpu.memory_space<vmem>>, %arg23: memref<4x8x8xf32, #tpu.memory_space<vmem>>, %arg24: memref<4x8x8xf32, #tpu.memory_space<vmem>>) attributes {dimension_semantics = [#tpu.dimension_semantics<parallel>, #tpu.dimension_semantics<arbitrary>], iteration_bounds = array<i64: 2, 1>, scalar_prefetch = 0 : i64, scratch_operands = 3 : i64, tpu.core_type = #tpu.core_type<tc>, window_params = [{transform_indices = @transform_0, window_bounds = array<i64: 1, 8, 32>}, {pipeline_mode = #tpu.pipeline_mode<synchronous>, transform_indices = @transform_1, window_bounds = array<i64: 1, 8, 32>}, {pipeline_mode = #tpu.pipeline_mode<synchronous>, transform_indices = @transform_2, window_bounds = array<i64: 4, 32, 8>}, {pipeline_mode = #tpu.pipeline_mode<synchronous>, transform_indices = @transform_3, window_bounds = array<i64: 4, 1, 8>}, {pipeline_mode = #tpu.pipeline_mode<synchronous>, transform_indices = @transform_4, window_bounds = array<i64: 4, 32, 8>}, {pipeline_mode = #tpu.pipeline_mode<synchronous>, transform_indices = @transform_5, window_bounds = array<i64: 4, 1, 8>}, {pipeline_mode = #tpu.pipeline_mode<synchronous>, transform_indices = @transform_6, window_bounds = array<i64: 4, 32, 8>}, {pipeline_mode = #tpu.pipeline_mode<synchronous>, transform_indices = @transform_7, window_bounds = array<i64: 4, 1, 8>}, {pipeline_mode = #tpu.pipeline_mode<synchronous>, transform_indices = @transform_8, window_bounds = array<i64: 4, 8, 32>}, {pipeline_mode = #tpu.pipeline_mode<synchronous>, transform_indices = @transform_9, window_bounds = array<i64: 1, 32>}, {pipeline_mode = #tpu.pipeline_mode<synchronous>, transform_indices = @transform_10, window_bounds = array<i64: 1, 32>}, {pipeline_mode = #tpu.pipeline_mode<synchronous>, transform_indices = @transform_11, window_bounds = array<i64: 1, 32>}, {pipeline_mode = #tpu.pipeline_mode<synchronous>, transform_indices = @transform_12, window_bounds = array<i64: 32, 64>}, {pipeline_mode = #tpu.pipeline_mode<synchronous>, transform_indices = @transform_13, window_bounds = array<i64: 1, 64>}, {pipeline_mode = #tpu.pipeline_mode<synchronous>, transform_indices = @transform_14, window_bounds = array<i64: 64, 32>}, {pipeline_mode = #tpu.pipeline_mode<synchronous>, transform_indices = @transform_15, window_bounds = array<i64: 1, 32>}, {pipeline_mode = #tpu.pipeline_mode<synchronous>, transform_indices = @transform_16, window_bounds = array<i64: 1, 32>}, {pipeline_mode = #tpu.pipeline_mode<synchronous>, transform_indices = @transform_17, window_bounds = array<i64: 1, 32>}, {transform_indices = @transform_18, window_bounds = array<i64: 1, 8, 32>}, {transform_indices = @transform_19, window_bounds = array<i64: 1, 4, 8, 8>}]} {
    %c0_i32 = arith.constant 0 : i32
    %0 = arith.cmpi eq, %arg1, %c0_i32 : i32
    %1 = arith.extui %0 : i1 to i32
    %c0_i32_0 = arith.constant 0 : i32
    %2 = arith.cmpi ne, %1, %c0_i32_0 : i32
    scf.if %2 {
      %c0_99 = arith.constant 0 : index
      %c0_100 = arith.constant 0 : index
      %c0_101 = arith.constant 0 : index
      %156 = vector.load %arg3[%c0_99, %c0_100, %c0_101] : memref<1x8x32xf32, #tpu.memory_space<vmem>>, vector<1x8x32xf32>
      %157 = vector.shape_cast %156 : vector<1x8x32xf32> to vector<8x32xf32>
      %c0_102 = arith.constant 0 : index
      %c0_103 = arith.constant 0 : index
      %c0_104 = arith.constant 0 : index
      %158 = vector.load %arg6[%c0_102, %c0_103, %c0_104] : memref<4x32x8xf32, #tpu.memory_space<vmem>>, vector<1x32x8xf32>
      %159 = vector.shape_cast %158 : vector<1x32x8xf32> to vector<32x8xf32>
      %cst_105 = arith.constant dense<0.000000e+00> : vector<8x8xf32>
      %160 = tpu.matmul %157, %159, %cst_105 {dimension_numbers = #tpu.dot_dimension_numbers<[1], [0], [0], [1], [0, 0, 1, 1], [], []>} : vector<8x32xf32>, vector<32x8xf32>, vector<8x8xf32> -> vector<8x8xf32>
      %c0_106 = arith.constant 0 : index
      %c0_107 = arith.constant 0 : index
      %c0_108 = arith.constant 0 : index
      %161 = vector.load %arg7[%c0_106, %c0_107, %c0_108] : memref<4x1x8xf32, #tpu.memory_space<vmem>>, vector<1x1x8xf32>
      %162 = vector.shape_cast %161 : vector<1x1x8xf32> to vector<1x8xf32>
      %163 = vector.broadcast %162 : vector<1x8xf32> to vector<8x8xf32>
      %164 = arith.addf %160, %163 : vector<8x8xf32>
      %c0_109 = arith.constant 0 : index
      %c0_110 = arith.constant 0 : index
      %c0_111 = arith.constant 0 : index
      %165 = vector.load %arg23[%c0_109, %c0_110, %c0_111] : memref<4x8x8xf32, #tpu.memory_space<vmem>>, vector<1x8x8xf32>
      %166 = vector.shape_cast %165 : vector<1x8x8xf32> to vector<8x8xf32>
      %167 = vector.shape_cast %164 : vector<8x8xf32> to vector<1x8x8xf32>
      tpu.vector_store %arg23[%c0_109, %c0_110, %c0_111], %167 {strides = array<i32>} : memref<4x8x8xf32, #tpu.memory_space<vmem>>, vector<1x8x8xf32>,
      %c0_112 = arith.constant 0 : index
      %c0_113 = arith.constant 0 : index
      %c0_114 = arith.constant 0 : index
      %168 = vector.load %arg8[%c0_112, %c0_113, %c0_114] : memref<4x32x8xf32, #tpu.memory_space<vmem>>, vector<1x32x8xf32>
      %169 = vector.shape_cast %168 : vector<1x32x8xf32> to vector<32x8xf32>
      %cst_115 = arith.constant dense<0.000000e+00> : vector<8x8xf32>
      %170 = tpu.matmul %157, %169, %cst_115 {dimension_numbers = #tpu.dot_dimension_numbers<[1], [0], [0], [1], [0, 0, 1, 1], [], []>} : vector<8x32xf32>, vector<32x8xf32>, vector<8x8xf32> -> vector<8x8xf32>
      %c0_116 = arith.constant 0 : index
      %c0_117 = arith.constant 0 : index
      %c0_118 = arith.constant 0 : index
      %171 = vector.load %arg9[%c0_116, %c0_117, %c0_118] : memref<4x1x8xf32, #tpu.memory_space<vmem>>, vector<1x1x8xf32>
      %172 = vector.shape_cast %171 : vector<1x1x8xf32> to vector<1x8xf32>
      %173 = vector.broadcast %172 : vector<1x8xf32> to vector<8x8xf32>
      %174 = arith.addf %170, %173 : vector<8x8xf32>
      %c0_119 = arith.constant 0 : index
      %c0_120 = arith.constant 0 : index
      %c0_121 = arith.constant 0 : index
      %175 = vector.load %arg24[%c0_119, %c0_120, %c0_121] : memref<4x8x8xf32, #tpu.memory_space<vmem>>, vector<1x8x8xf32>
      %176 = vector.shape_cast %175 : vector<1x8x8xf32> to vector<8x8xf32>
      %177 = vector.shape_cast %174 : vector<8x8xf32> to vector<1x8x8xf32>
      tpu.vector_store %arg24[%c0_119, %c0_120, %c0_121], %177 {strides = array<i32>} : memref<4x8x8xf32, #tpu.memory_space<vmem>>, vector<1x8x8xf32>,
      %c1_122 = arith.constant 1 : index
      %c0_123 = arith.constant 0 : index
      %c0_124 = arith.constant 0 : index
      %178 = vector.load %arg6[%c1_122, %c0_123, %c0_124] : memref<4x32x8xf32, #tpu.memory_space<vmem>>, vector<1x32x8xf32>
      %179 = vector.shape_cast %178 : vector<1x32x8xf32> to vector<32x8xf32>
      %cst_125 = arith.constant dense<0.000000e+00> : vector<8x8xf32>
      %180 = tpu.matmul %157, %179, %cst_125 {dimension_numbers = #tpu.dot_dimension_numbers<[1], [0], [0], [1], [0, 0, 1, 1], [], []>} : vector<8x32xf32>, vector<32x8xf32>, vector<8x8xf32> -> vector<8x8xf32>
      %c1_126 = arith.constant 1 : index
      %c0_127 = arith.constant 0 : index
      %c0_128 = arith.constant 0 : index
      %181 = vector.load %arg7[%c1_126, %c0_127, %c0_128] : memref<4x1x8xf32, #tpu.memory_space<vmem>>, vector<1x1x8xf32>
      %182 = vector.shape_cast %181 : vector<1x1x8xf32> to vector<1x8xf32>
      %183 = vector.broadcast %182 : vector<1x8xf32> to vector<8x8xf32>
      %184 = arith.addf %180, %183 : vector<8x8xf32>
      %c1_129 = arith.constant 1 : index
      %c0_130 = arith.constant 0 : index
      %c0_131 = arith.constant 0 : index
      %185 = vector.load %arg23[%c1_129, %c0_130, %c0_131] : memref<4x8x8xf32, #tpu.memory_space<vmem>>, vector<1x8x8xf32>
      %186 = vector.shape_cast %185 : vector<1x8x8xf32> to vector<8x8xf32>
      %187 = vector.shape_cast %184 : vector<8x8xf32> to vector<1x8x8xf32>
      tpu.vector_store %arg23[%c1_129, %c0_130, %c0_131], %187 {strides = array<i32>} : memref<4x8x8xf32, #tpu.memory_space<vmem>>, vector<1x8x8xf32>,
      %c1_132 = arith.constant 1 : index
      %c0_133 = arith.constant 0 : index
      %c0_134 = arith.constant 0 : index
      %188 = vector.load %arg8[%c1_132, %c0_133, %c0_134] : memref<4x32x8xf32, #tpu.memory_space<vmem>>, vector<1x32x8xf32>
      %189 = vector.shape_cast %188 : vector<1x32x8xf32> to vector<32x8xf32>
      %cst_135 = arith.constant dense<0.000000e+00> : vector<8x8xf32>
      %190 = tpu.matmul %157, %189, %cst_135 {dimension_numbers = #tpu.dot_dimension_numbers<[1], [0], [0], [1], [0, 0, 1, 1], [], []>} : vector<8x32xf32>, vector<32x8xf32>, vector<8x8xf32> -> vector<8x8xf32>
      %c1_136 = arith.constant 1 : index
      %c0_137 = arith.constant 0 : index
      %c0_138 = arith.constant 0 : index
      %191 = vector.load %arg9[%c1_136, %c0_137, %c0_138] : memref<4x1x8xf32, #tpu.memory_space<vmem>>, vector<1x1x8xf32>
      %192 = vector.shape_cast %191 : vector<1x1x8xf32> to vector<1x8xf32>
      %193 = vector.broadcast %192 : vector<1x8xf32> to vector<8x8xf32>
      %194 = arith.addf %190, %193 : vector<8x8xf32>
      %c1_139 = arith.constant 1 : index
      %c0_140 = arith.constant 0 : index
      %c0_141 = arith.constant 0 : index
      %195 = vector.load %arg24[%c1_139, %c0_140, %c0_141] : memref<4x8x8xf32, #tpu.memory_space<vmem>>, vector<1x8x8xf32>
      %196 = vector.shape_cast %195 : vector<1x8x8xf32> to vector<8x8xf32>
      %197 = vector.shape_cast %194 : vector<8x8xf32> to vector<1x8x8xf32>
      tpu.vector_store %arg24[%c1_139, %c0_140, %c0_141], %197 {strides = array<i32>} : memref<4x8x8xf32, #tpu.memory_space<vmem>>, vector<1x8x8xf32>,
      %c2_142 = arith.constant 2 : index
      %c0_143 = arith.constant 0 : index
      %c0_144 = arith.constant 0 : index
      %198 = vector.load %arg6[%c2_142, %c0_143, %c0_144] : memref<4x32x8xf32, #tpu.memory_space<vmem>>, vector<1x32x8xf32>
      %199 = vector.shape_cast %198 : vector<1x32x8xf32> to vector<32x8xf32>
      %cst_145 = arith.constant dense<0.000000e+00> : vector<8x8xf32>
      %200 = tpu.matmul %157, %199, %cst_145 {dimension_numbers = #tpu.dot_dimension_numbers<[1], [0], [0], [1], [0, 0, 1, 1], [], []>} : vector<8x32xf32>, vector<32x8xf32>, vector<8x8xf32> -> vector<8x8xf32>
      %c2_146 = arith.constant 2 : index
      %c0_147 = arith.constant 0 : index
      %c0_148 = arith.constant 0 : index
      %201 = vector.load %arg7[%c2_146, %c0_147, %c0_148] : memref<4x1x8xf32, #tpu.memory_space<vmem>>, vector<1x1x8xf32>
      %202 = vector.shape_cast %201 : vector<1x1x8xf32> to vector<1x8xf32>
      %203 = vector.broadcast %202 : vector<1x8xf32> to vector<8x8xf32>
      %204 = arith.addf %200, %203 : vector<8x8xf32>
      %c2_149 = arith.constant 2 : index
      %c0_150 = arith.constant 0 : index
      %c0_151 = arith.constant 0 : index
      %205 = vector.load %arg23[%c2_149, %c0_150, %c0_151] : memref<4x8x8xf32, #tpu.memory_space<vmem>>, vector<1x8x8xf32>
      %206 = vector.shape_cast %205 : vector<1x8x8xf32> to vector<8x8xf32>
      %207 = vector.shape_cast %204 : vector<8x8xf32> to vector<1x8x8xf32>
      tpu.vector_store %arg23[%c2_149, %c0_150, %c0_151], %207 {strides = array<i32>} : memref<4x8x8xf32, #tpu.memory_space<vmem>>, vector<1x8x8xf32>,
      %c2_152 = arith.constant 2 : index
      %c0_153 = arith.constant 0 : index
      %c0_154 = arith.constant 0 : index
      %208 = vector.load %arg8[%c2_152, %c0_153, %c0_154] : memref<4x32x8xf32, #tpu.memory_space<vmem>>, vector<1x32x8xf32>
      %209 = vector.shape_cast %208 : vector<1x32x8xf32> to vector<32x8xf32>
      %cst_155 = arith.constant dense<0.000000e+00> : vector<8x8xf32>
      %210 = tpu.matmul %157, %209, %cst_155 {dimension_numbers = #tpu.dot_dimension_numbers<[1], [0], [0], [1], [0, 0, 1, 1], [], []>} : vector<8x32xf32>, vector<32x8xf32>, vector<8x8xf32> -> vector<8x8xf32>
      %c2_156 = arith.constant 2 : index
      %c0_157 = arith.constant 0 : index
      %c0_158 = arith.constant 0 : index
      %211 = vector.load %arg9[%c2_156, %c0_157, %c0_158] : memref<4x1x8xf32, #tpu.memory_space<vmem>>, vector<1x1x8xf32>
      %212 = vector.shape_cast %211 : vector<1x1x8xf32> to vector<1x8xf32>
      %213 = vector.broadcast %212 : vector<1x8xf32> to vector<8x8xf32>
      %214 = arith.addf %210, %213 : vector<8x8xf32>
      %c2_159 = arith.constant 2 : index
      %c0_160 = arith.constant 0 : index
      %c0_161 = arith.constant 0 : index
      %215 = vector.load %arg24[%c2_159, %c0_160, %c0_161] : memref<4x8x8xf32, #tpu.memory_space<vmem>>, vector<1x8x8xf32>
      %216 = vector.shape_cast %215 : vector<1x8x8xf32> to vector<8x8xf32>
      %217 = vector.shape_cast %214 : vector<8x8xf32> to vector<1x8x8xf32>
      tpu.vector_store %arg24[%c2_159, %c0_160, %c0_161], %217 {strides = array<i32>} : memref<4x8x8xf32, #tpu.memory_space<vmem>>, vector<1x8x8xf32>,
      %c3_162 = arith.constant 3 : index
      %c0_163 = arith.constant 0 : index
      %c0_164 = arith.constant 0 : index
      %218 = vector.load %arg6[%c3_162, %c0_163, %c0_164] : memref<4x32x8xf32, #tpu.memory_space<vmem>>, vector<1x32x8xf32>
      %219 = vector.shape_cast %218 : vector<1x32x8xf32> to vector<32x8xf32>
      %cst_165 = arith.constant dense<0.000000e+00> : vector<8x8xf32>
      %220 = tpu.matmul %157, %219, %cst_165 {dimension_numbers = #tpu.dot_dimension_numbers<[1], [0], [0], [1], [0, 0, 1, 1], [], []>} : vector<8x32xf32>, vector<32x8xf32>, vector<8x8xf32> -> vector<8x8xf32>
      %c3_166 = arith.constant 3 : index
      %c0_167 = arith.constant 0 : index
      %c0_168 = arith.constant 0 : index
      %221 = vector.load %arg7[%c3_166, %c0_167, %c0_168] : memref<4x1x8xf32, #tpu.memory_space<vmem>>, vector<1x1x8xf32>
      %222 = vector.shape_cast %221 : vector<1x1x8xf32> to vector<1x8xf32>
      %223 = vector.broadcast %222 : vector<1x8xf32> to vector<8x8xf32>
      %224 = arith.addf %220, %223 : vector<8x8xf32>
      %c3_169 = arith.constant 3 : index
      %c0_170 = arith.constant 0 : index
      %c0_171 = arith.constant 0 : index
      %225 = vector.load %arg23[%c3_169, %c0_170, %c0_171] : memref<4x8x8xf32, #tpu.memory_space<vmem>>, vector<1x8x8xf32>
      %226 = vector.shape_cast %225 : vector<1x8x8xf32> to vector<8x8xf32>
      %227 = vector.shape_cast %224 : vector<8x8xf32> to vector<1x8x8xf32>
      tpu.vector_store %arg23[%c3_169, %c0_170, %c0_171], %227 {strides = array<i32>} : memref<4x8x8xf32, #tpu.memory_space<vmem>>, vector<1x8x8xf32>,
      %c3_172 = arith.constant 3 : index
      %c0_173 = arith.constant 0 : index
      %c0_174 = arith.constant 0 : index
      %228 = vector.load %arg8[%c3_172, %c0_173, %c0_174] : memref<4x32x8xf32, #tpu.memory_space<vmem>>, vector<1x32x8xf32>
      %229 = vector.shape_cast %228 : vector<1x32x8xf32> to vector<32x8xf32>
      %cst_175 = arith.constant dense<0.000000e+00> : vector<8x8xf32>
      %230 = tpu.matmul %157, %229, %cst_175 {dimension_numbers = #tpu.dot_dimension_numbers<[1], [0], [0], [1], [0, 0, 1, 1], [], []>} : vector<8x32xf32>, vector<32x8xf32>, vector<8x8xf32> -> vector<8x8xf32>
      %c3_176 = arith.constant 3 : index
      %c0_177 = arith.constant 0 : index
      %c0_178 = arith.constant 0 : index
      %231 = vector.load %arg9[%c3_176, %c0_177, %c0_178] : memref<4x1x8xf32, #tpu.memory_space<vmem>>, vector<1x1x8xf32>
      %232 = vector.shape_cast %231 : vector<1x1x8xf32> to vector<1x8xf32>
      %233 = vector.broadcast %232 : vector<1x8xf32> to vector<8x8xf32>
      %234 = arith.addf %230, %233 : vector<8x8xf32>
      %c3_179 = arith.constant 3 : index
      %c0_180 = arith.constant 0 : index
      %c0_181 = arith.constant 0 : index
      %235 = vector.load %arg24[%c3_179, %c0_180, %c0_181] : memref<4x8x8xf32, #tpu.memory_space<vmem>>, vector<1x8x8xf32>
      %236 = vector.shape_cast %235 : vector<1x8x8xf32> to vector<8x8xf32>
      %237 = vector.shape_cast %234 : vector<8x8xf32> to vector<1x8x8xf32>
      tpu.vector_store %arg24[%c3_179, %c0_180, %c0_181], %237 {strides = array<i32>} : memref<4x8x8xf32, #tpu.memory_space<vmem>>, vector<1x8x8xf32>,
    } else {
    }
    %c0 = arith.constant 0 : index
    %c0_1 = arith.constant 0 : index
    %c0_2 = arith.constant 0 : index
    %3 = vector.load %arg2[%c0, %c0_1, %c0_2] : memref<1x8x32xf32, #tpu.memory_space<vmem>>, vector<1x8x32xf32>
    %4 = vector.shape_cast %3 : vector<1x8x32xf32> to vector<8x32xf32>
    %c0_3 = arith.constant 0 : index
    %c0_4 = arith.constant 0 : index
    %5 = vector.load %arg12[%c0_3, %c0_4] : memref<1x32xf32, #tpu.memory_space<vmem>>, vector<1x32xf32>
    %6 = vector.shape_cast %5 : vector<1x32xf32> to vector<32xf32>
    %c0_5 = arith.constant 0 : index
    %c0_6 = arith.constant 0 : index
    %7 = vector.load %arg13[%c0_5, %c0_6] : memref<1x32xf32, #tpu.memory_space<vmem>>, vector<1x32xf32>
    %8 = vector.shape_cast %7 : vector<1x32xf32> to vector<32xf32>
    %cst = arith.constant dense<0.000000e+00> : vector<8xf32>
    %9 = vector.multi_reduction <add>, %4, %cst [1] : vector<8x32xf32> to vector<8xf32>
    %10 = vector.shape_cast %9 : vector<8xf32> to vector<8x1xf32>
    %cst_7 = arith.constant 3.200000e+01 : f32
    %11 = vector.broadcast %cst_7 : f32 to vector<8x1xf32>
    %12 = arith.divf %10, %11 : vector<8x1xf32>
    %13 = vector.broadcast %12 : vector<8x1xf32> to vector<8x32xf32>
    %14 = arith.subf %4, %13 : vector<8x32xf32>
    %15 = arith.mulf %14, %14 : vector<8x32xf32>
    %cst_8 = arith.constant dense<0.000000e+00> : vector<8xf32>
    %16 = vector.multi_reduction <add>, %15, %cst_8 [1] : vector<8x32xf32> to vector<8xf32>
    %17 = vector.shape_cast %16 : vector<8xf32> to vector<8x1xf32>
    %cst_9 = arith.constant 0.0322580636 : f32
    %18 = vector.broadcast %cst_9 : f32 to vector<8x1xf32>
    %19 = arith.mulf %17, %18 : vector<8x1xf32>
    %20 = math.sqrt %19 : vector<8x1xf32>
    %cst_10 = arith.constant 9.99999997E-7 : f32
    %21 = vector.broadcast %cst_10 : f32 to vector<8x1xf32>
    %22 = arith.addf %20, %21 : vector<8x1xf32>
    %23 = tpu.reciprocal %22 : vector<8x1xf32> -> vector<8x1xf32>
    %24 = vector.broadcast %12 : vector<8x1xf32> to vector<8x32xf32>
    %25 = arith.subf %4, %24 : vector<8x32xf32>
    %26 = vector.broadcast %23 : vector<8x1xf32> to vector<8x32xf32>
    %27 = arith.mulf %25, %26 : vector<8x32xf32>
    %28 = vector.shape_cast %6 : vector<32xf32> to vector<1x32xf32>
    %29 = vector.broadcast %28 : vector<1x32xf32> to vector<8x32xf32>
    %30 = arith.mulf %27, %29 : vector<8x32xf32>
    %31 = vector.shape_cast %8 : vector<32xf32> to vector<1x32xf32>
    %32 = vector.broadcast %31 : vector<1x32xf32> to vector<8x32xf32>
    %33 = arith.addf %30, %32 : vector<8x32xf32>
    %c0_11 = arith.constant 0 : index
    %c0_12 = arith.constant 0 : index
    %c0_13 = arith.constant 0 : index
    %34 = vector.load %arg4[%c0_11, %c0_12, %c0_13] : memref<4x32x8xf32, #tpu.memory_space<vmem>>, vector<1x32x8xf32>
    %35 = vector.shape_cast %34 : vector<1x32x8xf32> to vector<32x8xf32>
    %cst_14 = arith.constant dense<0.000000e+00> : vector<8x8xf32>
    %36 = tpu.matmul %33, %35, %cst_14 {dimension_numbers = #tpu.dot_dimension_numbers<[1], [0], [0], [1], [0, 0, 1, 1], [], []>} : vector<8x32xf32>, vector<32x8xf32>, vector<8x8xf32> -> vector<8x8xf32>
    %c0_15 = arith.constant 0 : index
    %c0_16 = arith.constant 0 : index
    %c0_17 = arith.constant 0 : index
    %37 = vector.load %arg5[%c0_15, %c0_16, %c0_17] : memref<4x1x8xf32, #tpu.memory_space<vmem>>, vector<1x1x8xf32>
    %38 = vector.shape_cast %37 : vector<1x1x8xf32> to vector<1x8xf32>
    %39 = vector.broadcast %38 : vector<1x8xf32> to vector<8x8xf32>
    %40 = arith.addf %36, %39 : vector<8x8xf32>
    %cst_18 = arith.constant 0.353553385 : f32
    %41 = vector.broadcast %cst_18 : f32 to vector<8x8xf32>
    %42 = arith.mulf %40, %41 : vector<8x8xf32>
    %c0_19 = arith.constant 0 : index
    %c0_20 = arith.constant 0 : index
    %c0_21 = arith.constant 0 : index
    %43 = vector.load %arg22[%c0_19, %c0_20, %c0_21] : memref<4x8x8xf32, #tpu.memory_space<vmem>>, vector<1x8x8xf32>
    %44 = vector.shape_cast %43 : vector<1x8x8xf32> to vector<8x8xf32>
    %45 = vector.shape_cast %42 : vector<8x8xf32> to vector<1x8x8xf32>
    tpu.vector_store %arg22[%c0_19, %c0_20, %c0_21], %45 {strides = array<i32>} : memref<4x8x8xf32, #tpu.memory_space<vmem>>, vector<1x8x8xf32>,
    %c1 = arith.constant 1 : index
    %c0_22 = arith.constant 0 : index
    %c0_23 = arith.constant 0 : index
    %46 = vector.load %arg4[%c1, %c0_22, %c0_23] : memref<4x32x8xf32, #tpu.memory_space<vmem>>, vector<1x32x8xf32>
    %47 = vector.shape_cast %46 : vector<1x32x8xf32> to vector<32x8xf32>
    %cst_24 = arith.constant dense<0.000000e+00> : vector<8x8xf32>
    %48 = tpu.matmul %33, %47, %cst_24 {dimension_numbers = #tpu.dot_dimension_numbers<[1], [0], [0], [1], [0, 0, 1, 1], [], []>} : vector<8x32xf32>, vector<32x8xf32>, vector<8x8xf32> -> vector<8x8xf32>
    %c1_25 = arith.constant 1 : index
    %c0_26 = arith.constant 0 : index
    %c0_27 = arith.constant 0 : index
    %49 = vector.load %arg5[%c1_25, %c0_26, %c0_27] : memref<4x1x8xf32, #tpu.memory_space<vmem>>, vector<1x1x8xf32>
    %50 = vector.shape_cast %49 : vector<1x1x8xf32> to vector<1x8xf32>
    %51 = vector.broadcast %50 : vector<1x8xf32> to vector<8x8xf32>
    %52 = arith.addf %48, %51 : vector<8x8xf32>
    %cst_28 = arith.constant 0.353553385 : f32
    %53 = vector.broadcast %cst_28 : f32 to vector<8x8xf32>
    %54 = arith.mulf %52, %53 : vector<8x8xf32>
    %c1_29 = arith.constant 1 : index
    %c0_30 = arith.constant 0 : index
    %c0_31 = arith.constant 0 : index
    %55 = vector.load %arg22[%c1_29, %c0_30, %c0_31] : memref<4x8x8xf32, #tpu.memory_space<vmem>>, vector<1x8x8xf32>
    %56 = vector.shape_cast %55 : vector<1x8x8xf32> to vector<8x8xf32>
    %57 = vector.shape_cast %54 : vector<8x8xf32> to vector<1x8x8xf32>
    tpu.vector_store %arg22[%c1_29, %c0_30, %c0_31], %57 {strides = array<i32>} : memref<4x8x8xf32, #tpu.memory_space<vmem>>, vector<1x8x8xf32>,
    %c2 = arith.constant 2 : index
    %c0_32 = arith.constant 0 : index
    %c0_33 = arith.constant 0 : index
    %58 = vector.load %arg4[%c2, %c0_32, %c0_33] : memref<4x32x8xf32, #tpu.memory_space<vmem>>, vector<1x32x8xf32>
    %59 = vector.shape_cast %58 : vector<1x32x8xf32> to vector<32x8xf32>
    %cst_34 = arith.constant dense<0.000000e+00> : vector<8x8xf32>
    %60 = tpu.matmul %33, %59, %cst_34 {dimension_numbers = #tpu.dot_dimension_numbers<[1], [0], [0], [1], [0, 0, 1, 1], [], []>} : vector<8x32xf32>, vector<32x8xf32>, vector<8x8xf32> -> vector<8x8xf32>
    %c2_35 = arith.constant 2 : index
    %c0_36 = arith.constant 0 : index
    %c0_37 = arith.constant 0 : index
    %61 = vector.load %arg5[%c2_35, %c0_36, %c0_37] : memref<4x1x8xf32, #tpu.memory_space<vmem>>, vector<1x1x8xf32>
    %62 = vector.shape_cast %61 : vector<1x1x8xf32> to vector<1x8xf32>
    %63 = vector.broadcast %62 : vector<1x8xf32> to vector<8x8xf32>
    %64 = arith.addf %60, %63 : vector<8x8xf32>
    %cst_38 = arith.constant 0.353553385 : f32
    %65 = vector.broadcast %cst_38 : f32 to vector<8x8xf32>
    %66 = arith.mulf %64, %65 : vector<8x8xf32>
    %c2_39 = arith.constant 2 : index
    %c0_40 = arith.constant 0 : index
    %c0_41 = arith.constant 0 : index
    %67 = vector.load %arg22[%c2_39, %c0_40, %c0_41] : memref<4x8x8xf32, #tpu.memory_space<vmem>>, vector<1x8x8xf32>
    %68 = vector.shape_cast %67 : vector<1x8x8xf32> to vector<8x8xf32>
    %69 = vector.shape_cast %66 : vector<8x8xf32> to vector<1x8x8xf32>
    tpu.vector_store %arg22[%c2_39, %c0_40, %c0_41], %69 {strides = array<i32>} : memref<4x8x8xf32, #tpu.memory_space<vmem>>, vector<1x8x8xf32>,
    %c3 = arith.constant 3 : index
    %c0_42 = arith.constant 0 : index
    %c0_43 = arith.constant 0 : index
    %70 = vector.load %arg4[%c3, %c0_42, %c0_43] : memref<4x32x8xf32, #tpu.memory_space<vmem>>, vector<1x32x8xf32>
    %71 = vector.shape_cast %70 : vector<1x32x8xf32> to vector<32x8xf32>
    %cst_44 = arith.constant dense<0.000000e+00> : vector<8x8xf32>
    %72 = tpu.matmul %33, %71, %cst_44 {dimension_numbers = #tpu.dot_dimension_numbers<[1], [0], [0], [1], [0, 0, 1, 1], [], []>} : vector<8x32xf32>, vector<32x8xf32>, vector<8x8xf32> -> vector<8x8xf32>
    %c3_45 = arith.constant 3 : index
    %c0_46 = arith.constant 0 : index
    %c0_47 = arith.constant 0 : index
    %73 = vector.load %arg5[%c3_45, %c0_46, %c0_47] : memref<4x1x8xf32, #tpu.memory_space<vmem>>, vector<1x1x8xf32>
    %74 = vector.shape_cast %73 : vector<1x1x8xf32> to vector<1x8xf32>
    %75 = vector.broadcast %74 : vector<1x8xf32> to vector<8x8xf32>
    %76 = arith.addf %72, %75 : vector<8x8xf32>
    %cst_48 = arith.constant 0.353553385 : f32
    %77 = vector.broadcast %cst_48 : f32 to vector<8x8xf32>
    %78 = arith.mulf %76, %77 : vector<8x8xf32>
    %c3_49 = arith.constant 3 : index
    %c0_50 = arith.constant 0 : index
    %c0_51 = arith.constant 0 : index
    %79 = vector.load %arg22[%c3_49, %c0_50, %c0_51] : memref<4x8x8xf32, #tpu.memory_space<vmem>>, vector<1x8x8xf32>
    %80 = vector.shape_cast %79 : vector<1x8x8xf32> to vector<8x8xf32>
    %81 = vector.shape_cast %78 : vector<8x8xf32> to vector<1x8x8xf32>
    tpu.vector_store %arg22[%c3_49, %c0_50, %c0_51], %81 {strides = array<i32>} : memref<4x8x8xf32, #tpu.memory_space<vmem>>, vector<1x8x8xf32>,
    %c0_52 = arith.constant 0 : index
    %c0_53 = arith.constant 0 : index
    %c0_54 = arith.constant 0 : index
    %82 = vector.load %arg22[%c0_52, %c0_53, %c0_54] : memref<4x8x8xf32, #tpu.memory_space<vmem>>, vector<4x8x8xf32>
    %c0_55 = arith.constant 0 : index
    %c0_56 = arith.constant 0 : index
    %c0_57 = arith.constant 0 : index
    %83 = vector.load %arg23[%c0_55, %c0_56, %c0_57] : memref<4x8x8xf32, #tpu.memory_space<vmem>>, vector<4x8x8xf32>
    %c0_58 = arith.constant 0 : index
    %c0_59 = arith.constant 0 : index
    %c0_60 = arith.constant 0 : index
    %84 = vector.load %arg24[%c0_58, %c0_59, %c0_60] : memref<4x8x8xf32, #tpu.memory_space<vmem>>, vector<4x8x8xf32>
    %cst_61 = arith.constant dense<0.000000e+00> : vector<4x8x8xf32>
    %85 = tpu.matmul %82, %83, %cst_61 {dimension_numbers = #tpu.dot_dimension_numbers<[2], [2], [1], [1], [0, 0, 0, 1, 1, 1], [0], [0]>} : vector<4x8x8xf32>, vector<4x8x8xf32>, vector<4x8x8xf32> -> vector<4x8x8xf32>
    %cst_62 = arith.constant dense<0xFF800000> : vector<4x8xf32>
    %86 = vector.multi_reduction <maximumf>, %85, %cst_62 [2] : vector<4x8x8xf32> to vector<4x8xf32>
    %87 = vector.shape_cast %86 : vector<4x8xf32> to vector<4x8x1xf32>
    %88 = vector.broadcast %87 : vector<4x8x1xf32> to vector<4x8x8xf32>
    %89 = arith.subf %85, %88 : vector<4x8x8xf32>
    %90 = math.exp %89 : vector<4x8x8xf32>
    %cst_63 = arith.constant dense<0.000000e+00> : vector<4x8xf32>
    %91 = vector.multi_reduction <add>, %90, %cst_63 [2] : vector<4x8x8xf32> to vector<4x8xf32>
    %92 = vector.shape_cast %91 : vector<4x8xf32> to vector<4x8x1xf32>
    %93 = tpu.reciprocal %92 {approx = true} : vector<4x8x1xf32> -> vector<4x8x1xf32>
    %94 = vector.broadcast %93 : vector<4x8x1xf32> to vector<4x8x8xf32>
    %95 = arith.mulf %90, %94 : vector<4x8x8xf32>
    %c0_64 = arith.constant 0 : index
    %c0_65 = arith.constant 0 : index
    %c0_66 = arith.constant 0 : index
    %c0_67 = arith.constant 0 : index
    %96 = vector.load %arg21[%c0_64, %c0_65, %c0_66, %c0_67] : memref<1x4x8x8xf32, #tpu.memory_space<vmem>>, vector<1x4x8x8xf32>
    %97 = vector.shape_cast %96 : vector<1x4x8x8xf32> to vector<4x8x8xf32>
    %98 = vector.shape_cast %95 : vector<4x8x8xf32> to vector<1x4x8x8xf32>
    tpu.vector_store %arg21[%c0_64, %c0_65, %c0_66, %c0_67], %98 {strides = array<i32>} : memref<1x4x8x8xf32, #tpu.memory_space<vmem>>, vector<1x4x8x8xf32>,
    %cst_68 = arith.constant dense<0.000000e+00> : vector<4x8x8xf32>
    %99 = tpu.matmul %95, %84, %cst_68 {dimension_numbers = #tpu.dot_dimension_numbers<[2], [1], [1], [2], [0, 0, 0, 1, 1, 2], [0], [0]>} : vector<4x8x8xf32>, vector<4x8x8xf32>, vector<4x8x8xf32> -> vector<4x8x8xf32>
    %c0_69 = arith.constant 0 : index
    %c0_70 = arith.constant 0 : index
    %c0_71 = arith.constant 0 : index
    %100 = vector.load %arg10[%c0_69, %c0_70, %c0_71] : memref<4x8x32xf32, #tpu.memory_space<vmem>>, vector<4x8x32xf32>
    %cst_72 = arith.constant dense<0.000000e+00> : vector<4x8x32xf32>
    %101 = tpu.matmul %99, %100, %cst_72 {dimension_numbers = #tpu.dot_dimension_numbers<[2], [1], [1], [2], [0, 0, 0, 1, 1, 2], [0], [0]>} : vector<4x8x8xf32>, vector<4x8x32xf32>, vector<4x8x32xf32> -> vector<4x8x32xf32>
    %cst_73 = arith.constant dense<0.000000e+00> : vector<8x32xf32>
    %102 = vector.multi_reduction <add>, %101, %cst_73 [0] : vector<4x8x32xf32> to vector<8x32xf32>
    %c0_74 = arith.constant 0 : index
    %c0_75 = arith.constant 0 : index
    %103 = vector.load %arg11[%c0_74, %c0_75] : memref<1x32xf32, #tpu.memory_space<vmem>>, vector<1x32xf32>
    %104 = vector.shape_cast %103 : vector<1x32xf32> to vector<32xf32>
    %105 = vector.shape_cast %104 : vector<32xf32> to vector<1x32xf32>
    %106 = vector.broadcast %105 : vector<1x32xf32> to vector<8x32xf32>
    %107 = arith.addf %102, %106 : vector<8x32xf32>
    %108 = arith.addf %4, %107 : vector<8x32xf32>
    %c0_76 = arith.constant 0 : index
    %c0_77 = arith.constant 0 : index
    %109 = vector.load %arg18[%c0_76, %c0_77] : memref<1x32xf32, #tpu.memory_space<vmem>>, vector<1x32xf32>
    %110 = vector.shape_cast %109 : vector<1x32xf32> to vector<32xf32>
    %c0_78 = arith.constant 0 : index
    %c0_79 = arith.constant 0 : index
    %111 = vector.load %arg19[%c0_78, %c0_79] : memref<1x32xf32, #tpu.memory_space<vmem>>, vector<1x32xf32>
    %112 = vector.shape_cast %111 : vector<1x32xf32> to vector<32xf32>
    %cst_80 = arith.constant dense<0.000000e+00> : vector<8xf32>
    %113 = vector.multi_reduction <add>, %108, %cst_80 [1] : vector<8x32xf32> to vector<8xf32>
    %114 = vector.shape_cast %113 : vector<8xf32> to vector<8x1xf32>
    %cst_81 = arith.constant 3.200000e+01 : f32
    %115 = vector.broadcast %cst_81 : f32 to vector<8x1xf32>
    %116 = arith.divf %114, %115 : vector<8x1xf32>
    %117 = vector.broadcast %116 : vector<8x1xf32> to vector<8x32xf32>
    %118 = arith.subf %108, %117 : vector<8x32xf32>
    %119 = arith.mulf %118, %118 : vector<8x32xf32>
    %cst_82 = arith.constant dense<0.000000e+00> : vector<8xf32>
    %120 = vector.multi_reduction <add>, %119, %cst_82 [1] : vector<8x32xf32> to vector<8xf32>
    %121 = vector.shape_cast %120 : vector<8xf32> to vector<8x1xf32>
    %cst_83 = arith.constant 0.0322580636 : f32
    %122 = vector.broadcast %cst_83 : f32 to vector<8x1xf32>
    %123 = arith.mulf %121, %122 : vector<8x1xf32>
    %124 = math.sqrt %123 : vector<8x1xf32>
    %cst_84 = arith.constant 9.99999997E-7 : f32
    %125 = vector.broadcast %cst_84 : f32 to vector<8x1xf32>
    %126 = arith.addf %124, %125 : vector<8x1xf32>
    %127 = tpu.reciprocal %126 : vector<8x1xf32> -> vector<8x1xf32>
    %128 = vector.broadcast %116 : vector<8x1xf32> to vector<8x32xf32>
    %129 = arith.subf %108, %128 : vector<8x32xf32>
    %130 = vector.broadcast %127 : vector<8x1xf32> to vector<8x32xf32>
    %131 = arith.mulf %129, %130 : vector<8x32xf32>
    %132 = vector.shape_cast %110 : vector<32xf32> to vector<1x32xf32>
    %133 = vector.broadcast %132 : vector<1x32xf32> to vector<8x32xf32>
    %134 = arith.mulf %131, %133 : vector<8x32xf32>
    %135 = vector.shape_cast %112 : vector<32xf32> to vector<1x32xf32>
    %136 = vector.broadcast %135 : vector<1x32xf32> to vector<8x32xf32>
    %137 = arith.addf %134, %136 : vector<8x32xf32>
    %c0_85 = arith.constant 0 : index
    %c0_86 = arith.constant 0 : index
    %138 = vector.load %arg14[%c0_85, %c0_86] : memref<32x64xf32, #tpu.memory_space<vmem>>, vector<32x64xf32>
    %cst_87 = arith.constant dense<0.000000e+00> : vector<8x64xf32>
    %139 = tpu.matmul %137, %138, %cst_87 {dimension_numbers = #tpu.dot_dimension_numbers<[1], [0], [0], [1], [0, 0, 1, 1], [], []>} : vector<8x32xf32>, vector<32x64xf32>, vector<8x64xf32> -> vector<8x64xf32>
    %c0_88 = arith.constant 0 : index
    %c0_89 = arith.constant 0 : index
    %140 = vector.load %arg15[%c0_88, %c0_89] : memref<1x64xf32, #tpu.memory_space<vmem>>, vector<1x64xf32>
    %141 = vector.broadcast %140 : vector<1x64xf32> to vector<8x64xf32>
    %142 = arith.addf %139, %141 : vector<8x64xf32>
    %cst_90 = arith.constant 0.000000e+00 : f32
    %143 = vector.broadcast %cst_90 : f32 to vector<8x64xf32>
    %144 = arith.maximumf %142, %143 : vector<8x64xf32>
    %c0_91 = arith.constant 0 : index
    %c0_92 = arith.constant 0 : index
    %145 = vector.load %arg16[%c0_91, %c0_92] : memref<64x32xf32, #tpu.memory_space<vmem>>, vector<64x32xf32>
    %cst_93 = arith.constant dense<0.000000e+00> : vector<8x32xf32>
    %146 = tpu.matmul %144, %145, %cst_93 {dimension_numbers = #tpu.dot_dimension_numbers<[1], [0], [0], [1], [0, 0, 1, 1], [], []>} : vector<8x64xf32>, vector<64x32xf32>, vector<8x32xf32> -> vector<8x32xf32>
    %c0_94 = arith.constant 0 : index
    %c0_95 = arith.constant 0 : index
    %147 = vector.load %arg17[%c0_94, %c0_95] : memref<1x32xf32, #tpu.memory_space<vmem>>, vector<1x32xf32>
    %148 = vector.shape_cast %147 : vector<1x32xf32> to vector<32xf32>
    %149 = vector.shape_cast %148 : vector<32xf32> to vector<1x32xf32>
    %150 = vector.broadcast %149 : vector<1x32xf32> to vector<8x32xf32>
    %151 = arith.addf %146, %150 : vector<8x32xf32>
    %152 = arith.addf %108, %151 : vector<8x32xf32>
    %c0_96 = arith.constant 0 : index
    %c0_97 = arith.constant 0 : index
    %c0_98 = arith.constant 0 : index
    %153 = vector.load %arg20[%c0_96, %c0_97, %c0_98] : memref<1x8x32xf32, #tpu.memory_space<vmem>>, vector<1x8x32xf32>
    %154 = vector.shape_cast %153 : vector<1x8x32xf32> to vector<8x32xf32>
    %155 = vector.shape_cast %152 : vector<8x32xf32> to vector<1x8x32xf32>
    tpu.vector_store %arg20[%c0_96, %c0_97, %c0_98], %155 {strides = array<i32>} : memref<1x8x32xf32, #tpu.memory_space<vmem>>, vector<1x8x32xf32>,
    return
  }
  func.func @transform_0(%arg0: i32, %arg1: i32) -> (i32, i32, i32) {
    %c0_i32 = arith.constant 0 : i32
    %c0_i32_0 = arith.constant 0 : i32
    return %arg0, %arg1, %c0_i32 : i32, i32, i32
  }
  func.func @transform_1(%arg0: i32, %arg1: i32) -> (i32, i32, i32) {
    %c0_i32 = arith.constant 0 : i32
    %c0_i32_0 = arith.constant 0 : i32
    %c0_i32_1 = arith.constant 0 : i32
    return %arg0, %c0_i32, %c0_i32_0 : i32, i32, i32
  }
  func.func @transform_2(%arg0: i32, %arg1: i32) -> (i32, i32, i32) {
    %c0_i32 = arith.constant 0 : i32
    %c0_i32_0 = arith.constant 0 : i32
    %c0_i32_1 = arith.constant 0 : i32
    %c0_i32_2 = arith.constant 0 : i32
    return %c0_i32, %c0_i32_0, %c0_i32_1 : i32, i32, i32
  }
  func.func @transform_3(%arg0: i32, %arg1: i32) -> (i32, i32, i32) {
    %c0_i32 = arith.constant 0 : i32
    %c0_i32_0 = arith.constant 0 : i32
    %c0_i32_1 = arith.constant 0 : i32
    %c0_i32_2 = arith.constant 0 : i32
    return %c0_i32, %c0_i32_0, %c0_i32_1 : i32, i32, i32
  }
  func.func @transform_4(%arg0: i32, %arg1: i32) -> (i32, i32, i32) {
    %c0_i32 = arith.constant 0 : i32
    %c0_i32_0 = arith.constant 0 : i32
    %c0_i32_1 = arith.constant 0 : i32
    %c0_i32_2 = arith.constant 0 : i32
    return %c0_i32, %c0_i32_0, %c0_i32_1 : i32, i32, i32
  }
  func.func @transform_5(%arg0: i32, %arg1: i32) -> (i32, i32, i32) {
    %c0_i32 = arith.constant 0 : i32
    %c0_i32_0 = arith.constant 0 : i32
    %c0_i32_1 = arith.constant 0 : i32
    %c0_i32_2 = arith.constant 0 : i32
    return %c0_i32, %c0_i32_0, %c0_i32_1 : i32, i32, i32
  }
  func.func @transform_6(%arg0: i32, %arg1: i32) -> (i32, i32, i32) {
    %c0_i32 = arith.constant 0 : i32
    %c0_i32_0 = arith.constant 0 : i32
    %c0_i32_1 = arith.constant 0 : i32
    %c0_i32_2 = arith.constant 0 : i32
    return %c0_i32, %c0_i32_0, %c0_i32_1 : i32, i32, i32
  }
  func.func @transform_7(%arg0: i32, %arg1: i32) -> (i32, i32, i32) {
    %c0_i32 = arith.constant 0 : i32
    %c0_i32_0 = arith.constant 0 : i32
    %c0_i32_1 = arith.constant 0 : i32
    %c0_i32_2 = arith.constant 0 : i32
    return %c0_i32, %c0_i32_0, %c0_i32_1 : i32, i32, i32
  }
  func.func @transform_8(%arg0: i32, %arg1: i32) -> (i32, i32, i32) {
    %c0_i32 = arith.constant 0 : i32
    %c0_i32_0 = arith.constant 0 : i32
    %c0_i32_1 = arith.constant 0 : i32
    %c0_i32_2 = arith.constant 0 : i32
    return %c0_i32, %c0_i32_0, %c0_i32_1 : i32, i32, i32
  }
  func.func @transform_9(%arg0: i32, %arg1: i32) -> (i32, i32) {
    %c0_i32 = arith.constant 0 : i32
    %c0_i32_0 = arith.constant 0 : i32
    %c0_i32_1 = arith.constant 0 : i32
    return %c0_i32, %c0_i32_0 : i32, i32
  }
  func.func @transform_10(%arg0: i32, %arg1: i32) -> (i32, i32) {
    %c0_i32 = arith.constant 0 : i32
    %c0_i32_0 = arith.constant 0 : i32
    %c0_i32_1 = arith.constant 0 : i32
    return %c0_i32, %c0_i32_0 : i32, i32
  }
  func.func @transform_11(%arg0: i32, %arg1: i32) -> (i32, i32) {
    %c0_i32 = arith.constant 0 : i32
    %c0_i32_0 = arith.constant 0 : i32
    %c0_i32_1 = arith.constant 0 : i32
    return %c0_i32, %c0_i32_0 : i32, i32
  }
  func.func @transform_12(%arg0: i32, %arg1: i32) -> (i32, i32) {
    %c0_i32 = arith.constant 0 : i32
    %c0_i32_0 = arith.constant 0 : i32
    %c0_i32_1 = arith.constant 0 : i32
    return %c0_i32, %c0_i32_0 : i32, i32
  }
  func.func @transform_13(%arg0: i32, %arg1: i32) -> (i32, i32) {
    %c0_i32 = arith.constant 0 : i32
    %c0_i32_0 = arith.constant 0 : i32
    %c0_i32_1 = arith.constant 0 : i32
    return %c0_i32, %c0_i32_0 : i32, i32
  }
  func.func @transform_14(%arg0: i32, %arg1: i32) -> (i32, i32) {
    %c0_i32 = arith.constant 0 : i32
    %c0_i32_0 = arith.constant 0 : i32
    %c0_i32_1 = arith.constant 0 : i32
    return %c0_i32, %c0_i32_0 : i32, i32
  }
  func.func @transform_15(%arg0: i32, %arg1: i32) -> (i32, i32) {
    %c0_i32 = arith.constant 0 : i32
    %c0_i32_0 = arith.constant 0 : i32
    %c0_i32_1 = arith.constant 0 : i32
    return %c0_i32, %c0_i32_0 : i32, i32
  }
  func.func @transform_16(%arg0: i32, %arg1: i32) -> (i32, i32) {
    %c0_i32 = arith.constant 0 : i32
    %c0_i32_0 = arith.constant 0 : i32
    %c0_i32_1 = arith.constant 0 : i32
    return %c0_i32, %c0_i32_0 : i32, i32
  }
  func.func @transform_17(%arg0: i32, %arg1: i32) -> (i32, i32) {
    %c0_i32 = arith.constant 0 : i32
    %c0_i32_0 = arith.constant 0 : i32
    %c0_i32_1 = arith.constant 0 : i32
    return %c0_i32, %c0_i32_0 : i32, i32
  }
  func.func @transform_18(%arg0: i32, %arg1: i32) -> (i32, i32, i32) {
    %c0_i32 = arith.constant 0 : i32
    %c0_i32_0 = arith.constant 0 : i32
    return %arg0, %arg1, %c0_i32 : i32, i32, i32
  }
  func.func @transform_19(%arg0: i32, %arg1: i32) -> (i32, i32, i32, i32) {
    %c0_i32 = arith.constant 0 : i32
    %c0_i32_0 = arith.constant 0 : i32
    %c0_i32_1 = arith.constant 0 : i32
    return %arg0, %c0_i32, %arg1, %c0_i32_0 : i32, i32, i32, i32
  }
}

module attributes {stable_mosaic.version = 11 : i64} {
  func.func @decoder_layer_kernel(%arg0: i32, %arg1: i32, %arg2: memref<1x8x32xf32, #tpu.memory_space<vmem>>, %arg3: memref<1x8x32xf32, #tpu.memory_space<vmem>>, %arg4: memref<4x32x8xf32, #tpu.memory_space<vmem>>, %arg5: memref<4x1x8xf32, #tpu.memory_space<vmem>>, %arg6: memref<4x32x8xf32, #tpu.memory_space<vmem>>, %arg7: memref<4x1x8xf32, #tpu.memory_space<vmem>>, %arg8: memref<4x32x8xf32, #tpu.memory_space<vmem>>, %arg9: memref<4x1x8xf32, #tpu.memory_space<vmem>>, %arg10: memref<4x8x32xf32, #tpu.memory_space<vmem>>, %arg11: memref<1x32xf32, #tpu.memory_space<vmem>>, %arg12: memref<1x32xf32, #tpu.memory_space<vmem>>, %arg13: memref<1x32xf32, #tpu.memory_space<vmem>>, %arg14: memref<32x64xf32, #tpu.memory_space<vmem>>, %arg15: memref<1x64xf32, #tpu.memory_space<vmem>>, %arg16: memref<64x32xf32, #tpu.memory_space<vmem>>, %arg17: memref<1x32xf32, #tpu.memory_space<vmem>>, %arg18: memref<1x32xf32, #tpu.memory_space<vmem>>, %arg19: memref<1x32xf32, #tpu.memory_space<vmem>>, %arg20: memref<1x8x32xf32, #tpu.memory_space<vmem>>, %arg21: memref<1x4x8x8xf32, #tpu.memory_space<vmem>>, %arg22: memref<4x8x8xf32, #tpu.memory_space<vmem>>, %arg23: memref<4x8x8xf32, #tpu.memory_space<vmem>>, %arg24: memref<4x8x8xf32, #tpu.memory_space<vmem>>) attributes {dimension_semantics = [#tpu.dimension_semantics<parallel>, #tpu.dimension_semantics<arbitrary>], iteration_bounds = array<i64: 2, 1>, scalar_prefetch = 0 : i64, scratch_operands = 3 : i64, tpu.core_type = #tpu.core_type<tc>, window_params = [{transform_indices = @transform_0, window_bounds = array<i64: 1, 8, 32>}, {transform_indices = @transform_1, window_bounds = array<i64: 1, 8, 32>}, {pipeline_mode = #tpu.pipeline_mode<synchronous>, transform_indices = @transform_2, window_bounds = array<i64: 4, 32, 8>}, {pipeline_mode = #tpu.pipeline_mode<synchronous>, transform_indices = @transform_3, window_bounds = array<i64: 4, 1, 8>}, {pipeline_mode = #tpu.pipeline_mode<synchronous>, transform_indices = @transform_4, window_bounds = array<i64: 4, 32, 8>}, {pipeline_mode = #tpu.pipeline_mode<synchronous>, transform_indices = @transform_5, window_bounds = array<i64: 4, 1, 8>}, {pipeline_mode = #tpu.pipeline_mode<synchronous>, transform_indices = @transform_6, window_bounds = array<i64: 4, 32, 8>}, {pipeline_mode = #tpu.pipeline_mode<synchronous>, transform_indices = @transform_7, window_bounds = array<i64: 4, 1, 8>}, {pipeline_mode = #tpu.pipeline_mode<synchronous>, transform_indices = @transform_8, window_bounds = array<i64: 4, 8, 32>}, {pipeline_mode = #tpu.pipeline_mode<synchronous>, transform_indices = @transform_9, window_bounds = array<i64: 1, 32>}, {pipeline_mode = #tpu.pipeline_mode<synchronous>, transform_indices = @transform_10, window_bounds = array<i64: 1, 32>}, {pipeline_mode = #tpu.pipeline_mode<synchronous>, transform_indices = @transform_11, window_bounds = array<i64: 1, 32>}, {pipeline_mode = #tpu.pipeline_mode<synchronous>, transform_indices = @transform_12, window_bounds = array<i64: 32, 64>}, {pipeline_mode = #tpu.pipeline_mode<synchronous>, transform_indices = @transform_13, window_bounds = array<i64: 1, 64>}, {pipeline_mode = #tpu.pipeline_mode<synchronous>, transform_indices = @transform_14, window_bounds = array<i64: 64, 32>}, {pipeline_mode = #tpu.pipeline_mode<synchronous>, transform_indices = @transform_15, window_bounds = array<i64: 1, 32>}, {pipeline_mode = #tpu.pipeline_mode<synchronous>, transform_indices = @transform_16, window_bounds = array<i64: 1, 32>}, {pipeline_mode = #tpu.pipeline_mode<synchronous>, transform_indices = @transform_17, window_bounds = array<i64: 1, 32>}, {transform_indices = @transform_18, window_bounds = array<i64: 1, 8, 32>}, {transform_indices = @transform_19, window_bounds = array<i64: 1, 4, 8, 8>}]} {
    %c0_i32 = arith.constant 0 : i32
    %0 = arith.cmpi eq, %arg1, %c0_i32 : i32
    %1 = arith.extui %0 : i1 to i32
    %c0_i32_0 = arith.constant 0 : i32
    %2 = arith.cmpi ne, %1, %c0_i32_0 : i32
    scf.if %2 {
      %c0_99 = arith.constant 0 : index
      %c0_100 = arith.constant 0 : index
      %c0_101 = arith.constant 0 : index
      %156 = vector.load %arg3[%c0_99, %c0_100, %c0_101] : memref<1x8x32xf32, #tpu.memory_space<vmem>>, vector<1x8x32xf32>
      %157 = vector.shape_cast %156 : vector<1x8x32xf32> to vector<8x32xf32>
      %c0_102 = arith.constant 0 : index
      %c0_103 = arith.constant 0 : index
      %c0_104 = arith.constant 0 : index
      %158 = vector.load %arg6[%c0_102, %c0_103, %c0_104] : memref<4x32x8xf32, #tpu.memory_space<vmem>>, vector<1x32x8xf32>
      %159 = vector.shape_cast %158 : vector<1x32x8xf32> to vector<32x8xf32>
      %cst_105 = arith.constant dense<0.000000e+00> : vector<8x8xf32>
      %160 = tpu.matmul %157, %159, %cst_105 {dimension_numbers = #tpu.dot_dimension_numbers<[1], [0], [0], [1], [0, 0, 1, 1], [], []>} : vector<8x32xf32>, vector<32x8xf32>, vector<8x8xf32> -> vector<8x8xf32>
      %c0_106 = arith.constant 0 : index
      %c0_107 = arith.constant 0 : index
      %c0_108 = arith.constant 0 : index
      %161 = vector.load %arg7[%c0_106, %c0_107, %c0_108] : memref<4x1x8xf32, #tpu.memory_space<vmem>>, vector<1x1x8xf32>
      %162 = vector.shape_cast %161 : vector<1x1x8xf32> to vector<1x8xf32>
      %163 = vector.broadcast %162 : vector<1x8xf32> to vector<8x8xf32>
      %164 = arith.addf %160, %163 : vector<8x8xf32>
      %c0_109 = arith.constant 0 : index
      %c0_110 = arith.constant 0 : index
      %c0_111 = arith.constant 0 : index
      %165 = vector.load %arg23[%c0_109, %c0_110, %c0_111] : memref<4x8x8xf32, #tpu.memory_space<vmem>>, vector<1x8x8xf32>
      %166 = vector.shape_cast %165 : vector<1x8x8xf32> to vector<8x8xf32>
      %167 = vector.shape_cast %164 : vector<8x8xf32> to vector<1x8x8xf32>
      tpu.vector_store %arg23[%c0_109, %c0_110, %c0_111], %167 {strides = array<i32>} : memref<4x8x8xf32, #tpu.memory_space<vmem>>, vector<1x8x8xf32>,
      %c0_112 = arith.constant 0 : index
      %c0_113 = arith.constant 0 : index
      %c0_114 = arith.constant 0 : index
      %168 = vector.load %arg8[%c0_112, %c0_113, %c0_114] : memref<4x32x8xf32, #tpu.memory_space<vmem>>, vector<1x32x8xf32>
      %169 = vector.shape_cast %168 : vector<1x32x8xf32> to vector<32x8xf32>
      %cst_115 = arith.constant dense<0.000000e+00> : vector<8x8xf32>
      %170 = tpu.matmul %157, %169, %cst_115 {dimension_numbers = #tpu.dot_dimension_numbers<[1], [0], [0], [1], [0, 0, 1, 1], [], []>} : vector<8x32xf32>, vector<32x8xf32>, vector<8x8xf32> -> vector<8x8xf32>
      %c0_116 = arith.constant 0 : index
      %c0_117 = arith.constant 0 : index
      %c0_118 = arith.constant 0 : index
      %171 = vector.load %arg9[%c0_116, %c0_117, %c0_118] : memref<4x1x8xf32, #tpu.memory_space<vmem>>, vector<1x1x8xf32>
      %172 = vector.shape_cast %171 : vector<1x1x8xf32> to vector<1x8xf32>
      %173 = vector.broadcast %172 : vector<1x8xf32> to vector<8x8xf32>
      %174 = arith.addf %170, %173 : vector<8x8xf32>
      %c0_119 = arith.constant 0 : index
      %c0_120 = arith.constant 0 : index
      %c0_121 = arith.constant 0 : index
      %175 = vector.load %arg24[%c0_119, %c0_120, %c0_121] : memref<4x8x8xf32, #tpu.memory_space<vmem>>, vector<1x8x8xf32>
      %176 = vector.shape_cast %175 : vector<1x8x8xf32> to vector<8x8xf32>
      %177 = vector.shape_cast %174 : vector<8x8xf32> to vector<1x8x8xf32>
      tpu.vector_store %arg24[%c0_119, %c0_120, %c0_121], %177 {strides = array<i32>} : memref<4x8x8xf32, #tpu.memory_space<vmem>>, vector<1x8x8xf32>,
      %c1_122 = arith.constant 1 : index
      %c0_123 = arith.constant 0 : index
      %c0_124 = arith.constant 0 : index
      %178 = vector.load %arg6[%c1_122, %c0_123, %c0_124] : memref<4x32x8xf32, #tpu.memory_space<vmem>>, vector<1x32x8xf32>
      %179 = vector.shape_cast %178 : vector<1x32x8xf32> to vector<32x8xf32>
      %cst_125 = arith.constant dense<0.000000e+00> : vector<8x8xf32>
      %180 = tpu.matmul %157, %179, %cst_125 {dimension_numbers = #tpu.dot_dimension_numbers<[1], [0], [0], [1], [0, 0, 1, 1], [], []>} : vector<8x32xf32>, vector<32x8xf32>, vector<8x8xf32> -> vector<8x8xf32>
      %c1_126 = arith.constant 1 : index
      %c0_127 = arith.constant 0 : index
      %c0_128 = arith.constant 0 : index
      %181 = vector.load %arg7[%c1_126, %c0_127, %c0_128] : memref<4x1x8xf32, #tpu.memory_space<vmem>>, vector<1x1x8xf32>
      %182 = vector.shape_cast %181 : vector<1x1x8xf32> to vector<1x8xf32>
      %183 = vector.broadcast %182 : vector<1x8xf32> to vector<8x8xf32>
      %184 = arith.addf %180, %183 : vector<8x8xf32>
      %c1_129 = arith.constant 1 : index
      %c0_130 = arith.constant 0 : index
      %c0_131 = arith.constant 0 : index
      %185 = vector.load %arg23[%c1_129, %c0_130, %c0_131] : memref<4x8x8xf32, #tpu.memory_space<vmem>>, vector<1x8x8xf32>
      %186 = vector.shape_cast %185 : vector<1x8x8xf32> to vector<8x8xf32>
      %187 = vector.shape_cast %184 : vector<8x8xf32> to vector<1x8x8xf32>
      tpu.vector_store %arg23[%c1_129, %c0_130, %c0_131], %187 {strides = array<i32>} : memref<4x8x8xf32, #tpu.memory_space<vmem>>, vector<1x8x8xf32>,
      %c1_132 = arith.constant 1 : index
      %c0_133 = arith.constant 0 : index
      %c0_134 = arith.constant 0 : index
      %188 = vector.load %arg8[%c1_132, %c0_133, %c0_134] : memref<4x32x8xf32, #tpu.memory_space<vmem>>, vector<1x32x8xf32>
      %189 = vector.shape_cast %188 : vector<1x32x8xf32> to vector<32x8xf32>
      %cst_135 = arith.constant dense<0.000000e+00> : vector<8x8xf32>
      %190 = tpu.matmul %157, %189, %cst_135 {dimension_numbers = #tpu.dot_dimension_numbers<[1], [0], [0], [1], [0, 0, 1, 1], [], []>} : vector<8x32xf32>, vector<32x8xf32>, vector<8x8xf32> -> vector<8x8xf32>
      %c1_136 = arith.constant 1 : index
      %c0_137 = arith.constant 0 : index
      %c0_138 = arith.constant 0 : index
      %191 = vector.load %arg9[%c1_136, %c0_137, %c0_138] : memref<4x1x8xf32, #tpu.memory_space<vmem>>, vector<1x1x8xf32>
      %192 = vector.shape_cast %191 : vector<1x1x8xf32> to vector<1x8xf32>
      %193 = vector.broadcast %192 : vector<1x8xf32> to vector<8x8xf32>
      %194 = arith.addf %190, %193 : vector<8x8xf32>
      %c1_139 = arith.constant 1 : index
      %c0_140 = arith.constant 0 : index
      %c0_141 = arith.constant 0 : index
      %195 = vector.load %arg24[%c1_139, %c0_140, %c0_141] : memref<4x8x8xf32, #tpu.memory_space<vmem>>, vector<1x8x8xf32>
      %196 = vector.shape_cast %195 : vector<1x8x8xf32> to vector<8x8xf32>
      %197 = vector.shape_cast %194 : vector<8x8xf32> to vector<1x8x8xf32>
      tpu.vector_store %arg24[%c1_139, %c0_140, %c0_141], %197 {strides = array<i32>} : memref<4x8x8xf32, #tpu.memory_space<vmem>>, vector<1x8x8xf32>,
      %c2_142 = arith.constant 2 : index
      %c0_143 = arith.constant 0 : index
      %c0_144 = arith.constant 0 : index
      %198 = vector.load %arg6[%c2_142, %c0_143, %c0_144] : memref<4x32x8xf32, #tpu.memory_space<vmem>>, vector<1x32x8xf32>
      %199 = vector.shape_cast %198 : vector<1x32x8xf32> to vector<32x8xf32>
      %cst_145 = arith.constant dense<0.000000e+00> : vector<8x8xf32>
      %200 = tpu.matmul %157, %199, %cst_145 {dimension_numbers = #tpu.dot_dimension_numbers<[1], [0], [0], [1], [0, 0, 1, 1], [], []>} : vector<8x32xf32>, vector<32x8xf32>, vector<8x8xf32> -> vector<8x8xf32>
      %c2_146 = arith.constant 2 : index
      %c0_147 = arith.constant 0 : index
      %c0_148 = arith.constant 0 : index
      %201 = vector.load %arg7[%c2_146, %c0_147, %c0_148] : memref<4x1x8xf32, #tpu.memory_space<vmem>>, vector<1x1x8xf32>
      %202 = vector.shape_cast %201 : vector<1x1x8xf32> to vector<1x8xf32>
      %203 = vector.broadcast %202 : vector<1x8xf32> to vector<8x8xf32>
      %204 = arith.addf %200, %203 : vector<8x8xf32>
      %c2_149 = arith.constant 2 : index
      %c0_150 = arith.constant 0 : index
      %c0_151 = arith.constant 0 : index
      %205 = vector.load %arg23[%c2_149, %c0_150, %c0_151] : memref<4x8x8xf32, #tpu.memory_space<vmem>>, vector<1x8x8xf32>
      %206 = vector.shape_cast %205 : vector<1x8x8xf32> to vector<8x8xf32>
      %207 = vector.shape_cast %204 : vector<8x8xf32> to vector<1x8x8xf32>
      tpu.vector_store %arg23[%c2_149, %c0_150, %c0_151], %207 {strides = array<i32>} : memref<4x8x8xf32, #tpu.memory_space<vmem>>, vector<1x8x8xf32>,
      %c2_152 = arith.constant 2 : index
      %c0_153 = arith.constant 0 : index
      %c0_154 = arith.constant 0 : index
      %208 = vector.load %arg8[%c2_152, %c0_153, %c0_154] : memref<4x32x8xf32, #tpu.memory_space<vmem>>, vector<1x32x8xf32>
      %209 = vector.shape_cast %208 : vector<1x32x8xf32> to vector<32x8xf32>
      %cst_155 = arith.constant dense<0.000000e+00> : vector<8x8xf32>
      %210 = tpu.matmul %157, %209, %cst_155 {dimension_numbers = #tpu.dot_dimension_numbers<[1], [0], [0], [1], [0, 0, 1, 1], [], []>} : vector<8x32xf32>, vector<32x8xf32>, vector<8x8xf32> -> vector<8x8xf32>
      %c2_156 = arith.constant 2 : index
      %c0_157 = arith.constant 0 : index
      %c0_158 = arith.constant 0 : index
      %211 = vector.load %arg9[%c2_156, %c0_157, %c0_158] : memref<4x1x8xf32, #tpu.memory_space<vmem>>, vector<1x1x8xf32>
      %212 = vector.shape_cast %211 : vector<1x1x8xf32> to vector<1x8xf32>
      %213 = vector.broadcast %212 : vector<1x8xf32> to vector<8x8xf32>
      %214 = arith.addf %210, %213 : vector<8x8xf32>
      %c2_159 = arith.constant 2 : index
      %c0_160 = arith.constant 0 : index
      %c0_161 = arith.constant 0 : index
      %215 = vector.load %arg24[%c2_159, %c0_160, %c0_161] : memref<4x8x8xf32, #tpu.memory_space<vmem>>, vector<1x8x8xf32>
      %216 = vector.shape_cast %215 : vector<1x8x8xf32> to vector<8x8xf32>
      %217 = vector.shape_cast %214 : vector<8x8xf32> to vector<1x8x8xf32>
      tpu.vector_store %arg24[%c2_159, %c0_160, %c0_161], %217 {strides = array<i32>} : memref<4x8x8xf32, #tpu.memory_space<vmem>>, vector<1x8x8xf32>,
      %c3_162 = arith.constant 3 : index
      %c0_163 = arith.constant 0 : index
      %c0_164 = arith.constant 0 : index
      %218 = vector.load %arg6[%c3_162, %c0_163, %c0_164] : memref<4x32x8xf32, #tpu.memory_space<vmem>>, vector<1x32x8xf32>
      %219 = vector.shape_cast %218 : vector<1x32x8xf32> to vector<32x8xf32>
      %cst_165 = arith.constant dense<0.000000e+00> : vector<8x8xf32>
      %220 = tpu.matmul %157, %219, %cst_165 {dimension_numbers = #tpu.dot_dimension_numbers<[1], [0], [0], [1], [0, 0, 1, 1], [], []>} : vector<8x32xf32>, vector<32x8xf32>, vector<8x8xf32> -> vector<8x8xf32>
      %c3_166 = arith.constant 3 : index
      %c0_167 = arith.constant 0 : index
      %c0_168 = arith.constant 0 : index
      %221 = vector.load %arg7[%c3_166, %c0_167, %c0_168] : memref<4x1x8xf32, #tpu.memory_space<vmem>>, vector<1x1x8xf32>
      %222 = vector.shape_cast %221 : vector<1x1x8xf32> to vector<1x8xf32>
      %223 = vector.broadcast %222 : vector<1x8xf32> to vector<8x8xf32>
      %224 = arith.addf %220, %223 : vector<8x8xf32>
      %c3_169 = arith.constant 3 : index
      %c0_170 = arith.constant 0 : index
      %c0_171 = arith.constant 0 : index
      %225 = vector.load %arg23[%c3_169, %c0_170, %c0_171] : memref<4x8x8xf32, #tpu.memory_space<vmem>>, vector<1x8x8xf32>
      %226 = vector.shape_cast %225 : vector<1x8x8xf32> to vector<8x8xf32>
      %227 = vector.shape_cast %224 : vector<8x8xf32> to vector<1x8x8xf32>
      tpu.vector_store %arg23[%c3_169, %c0_170, %c0_171], %227 {strides = array<i32>} : memref<4x8x8xf32, #tpu.memory_space<vmem>>, vector<1x8x8xf32>,
      %c3_172 = arith.constant 3 : index
      %c0_173 = arith.constant 0 : index
      %c0_174 = arith.constant 0 : index
      %228 = vector.load %arg8[%c3_172, %c0_173, %c0_174] : memref<4x32x8xf32, #tpu.memory_space<vmem>>, vector<1x32x8xf32>
      %229 = vector.shape_cast %228 : vector<1x32x8xf32> to vector<32x8xf32>
      %cst_175 = arith.constant dense<0.000000e+00> : vector<8x8xf32>
      %230 = tpu.matmul %157, %229, %cst_175 {dimension_numbers = #tpu.dot_dimension_numbers<[1], [0], [0], [1], [0, 0, 1, 1], [], []>} : vector<8x32xf32>, vector<32x8xf32>, vector<8x8xf32> -> vector<8x8xf32>
      %c3_176 = arith.constant 3 : index
      %c0_177 = arith.constant 0 : index
      %c0_178 = arith.constant 0 : index
      %231 = vector.load %arg9[%c3_176, %c0_177, %c0_178] : memref<4x1x8xf32, #tpu.memory_space<vmem>>, vector<1x1x8xf32>
      %232 = vector.shape_cast %231 : vector<1x1x8xf32> to vector<1x8xf32>
      %233 = vector.broadcast %232 : vector<1x8xf32> to vector<8x8xf32>
      %234 = arith.addf %230, %233 : vector<8x8xf32>
      %c3_179 = arith.constant 3 : index
      %c0_180 = arith.constant 0 : index
      %c0_181 = arith.constant 0 : index
      %235 = vector.load %arg24[%c3_179, %c0_180, %c0_181] : memref<4x8x8xf32, #tpu.memory_space<vmem>>, vector<1x8x8xf32>
      %236 = vector.shape_cast %235 : vector<1x8x8xf32> to vector<8x8xf32>
      %237 = vector.shape_cast %234 : vector<8x8xf32> to vector<1x8x8xf32>
      tpu.vector_store %arg24[%c3_179, %c0_180, %c0_181], %237 {strides = array<i32>} : memref<4x8x8xf32, #tpu.memory_space<vmem>>, vector<1x8x8xf32>,
    } else {
    }
    %c0 = arith.constant 0 : index
    %c0_1 = arith.constant 0 : index
    %c0_2 = arith.constant 0 : index
    %3 = vector.load %arg2[%c0, %c0_1, %c0_2] : memref<1x8x32xf32, #tpu.memory_space<vmem>>, vector<1x8x32xf32>
    %4 = vector.shape_cast %3 : vector<1x8x32xf32> to vector<8x32xf32>
    %c0_3 = arith.constant 0 : index
    %c0_4 = arith.constant 0 : index
    %5 = vector.load %arg12[%c0_3, %c0_4] : memref<1x32xf32, #tpu.memory_space<vmem>>, vector<1x32xf32>
    %6 = vector.shape_cast %5 : vector<1x32xf32> to vector<32xf32>
    %c0_5 = arith.constant 0 : index
    %c0_6 = arith.constant 0 : index
    %7 = vector.load %arg13[%c0_5, %c0_6] : memref<1x32xf32, #tpu.memory_space<vmem>>, vector<1x32xf32>
    %8 = vector.shape_cast %7 : vector<1x32xf32> to vector<32xf32>
    %cst = arith.constant dense<0.000000e+00> : vector<8xf32>
    %9 = vector.multi_reduction <add>, %4, %cst [1] : vector<8x32xf32> to vector<8xf32>
    %10 = vector.shape_cast %9 : vector<8xf32> to vector<8x1xf32>
    %cst_7 = arith.constant 3.200000e+01 : f32
    %11 = vector.broadcast %cst_7 : f32 to vector<8x1xf32>
    %12 = arith.divf %10, %11 : vector<8x1xf32>
    %13 = vector.broadcast %12 : vector<8x1xf32> to vector<8x32xf32>
    %14 = arith.subf %4, %13 : vector<8x32xf32>
    %15 = arith.mulf %14, %14 : vector<8x32xf32>
    %cst_8 = arith.constant dense<0.000000e+00> : vector<8xf32>
    %16 = vector.multi_reduction <add>, %15, %cst_8 [1] : vector<8x32xf32> to vector<8xf32>
    %17 = vector.shape_cast %16 : vector<8xf32> to vector<8x1xf32>
    %cst_9 = arith.constant 0.0322580636 : f32
    %18 = vector.broadcast %cst_9 : f32 to vector<8x1xf32>
    %19 = arith.mulf %17, %18 : vector<8x1xf32>
    %20 = math.sqrt %19 : vector<8x1xf32>
    %cst_10 = arith.constant 9.99999997E-7 : f32
    %21 = vector.broadcast %cst_10 : f32 to vector<8x1xf32>
    %22 = arith.addf %20, %21 : vector<8x1xf32>
    %23 = tpu.reciprocal %22 : vector<8x1xf32> -> vector<8x1xf32>
    %24 = vector.broadcast %12 : vector<8x1xf32> to vector<8x32xf32>
    %25 = arith.subf %4, %24 : vector<8x32xf32>
    %26 = vector.broadcast %23 : vector<8x1xf32> to vector<8x32xf32>
    %27 = arith.mulf %25, %26 : vector<8x32xf32>
    %28 = vector.shape_cast %6 : vector<32xf32> to vector<1x32xf32>
    %29 = vector.broadcast %28 : vector<1x32xf32> to vector<8x32xf32>
    %30 = arith.mulf %27, %29 : vector<8x32xf32>
    %31 = vector.shape_cast %8 : vector<32xf32> to vector<1x32xf32>
    %32 = vector.broadcast %31 : vector<1x32xf32> to vector<8x32xf32>
    %33 = arith.addf %30, %32 : vector<8x32xf32>
    %c0_11 = arith.constant 0 : index
    %c0_12 = arith.constant 0 : index
    %c0_13 = arith.constant 0 : index
    %34 = vector.load %arg4[%c0_11, %c0_12, %c0_13] : memref<4x32x8xf32, #tpu.memory_space<vmem>>, vector<1x32x8xf32>
    %35 = vector.shape_cast %34 : vector<1x32x8xf32> to vector<32x8xf32>
    %cst_14 = arith.constant dense<0.000000e+00> : vector<8x8xf32>
    %36 = tpu.matmul %33, %35, %cst_14 {dimension_numbers = #tpu.dot_dimension_numbers<[1], [0], [0], [1], [0, 0, 1, 1], [], []>} : vector<8x32xf32>, vector<32x8xf32>, vector<8x8xf32> -> vector<8x8xf32>
    %c0_15 = arith.constant 0 : index
    %c0_16 = arith.constant 0 : index
    %c0_17 = arith.constant 0 : index
    %37 = vector.load %arg5[%c0_15, %c0_16, %c0_17] : memref<4x1x8xf32, #tpu.memory_space<vmem>>, vector<1x1x8xf32>
    %38 = vector.shape_cast %37 : vector<1x1x8xf32> to vector<1x8xf32>
    %39 = vector.broadcast %38 : vector<1x8xf32> to vector<8x8xf32>
    %40 = arith.addf %36, %39 : vector<8x8xf32>
    %cst_18 = arith.constant 0.353553385 : f32
    %41 = vector.broadcast %cst_18 : f32 to vector<8x8xf32>
    %42 = arith.mulf %40, %41 : vector<8x8xf32>
    %c0_19 = arith.constant 0 : index
    %c0_20 = arith.constant 0 : index
    %c0_21 = arith.constant 0 : index
    %43 = vector.load %arg22[%c0_19, %c0_20, %c0_21] : memref<4x8x8xf32, #tpu.memory_space<vmem>>, vector<1x8x8xf32>
    %44 = vector.shape_cast %43 : vector<1x8x8xf32> to vector<8x8xf32>
    %45 = vector.shape_cast %42 : vector<8x8xf32> to vector<1x8x8xf32>
    tpu.vector_store %arg22[%c0_19, %c0_20, %c0_21], %45 {strides = array<i32>} : memref<4x8x8xf32, #tpu.memory_space<vmem>>, vector<1x8x8xf32>,
    %c1 = arith.constant 1 : index
    %c0_22 = arith.constant 0 : index
    %c0_23 = arith.constant 0 : index
    %46 = vector.load %arg4[%c1, %c0_22, %c0_23] : memref<4x32x8xf32, #tpu.memory_space<vmem>>, vector<1x32x8xf32>
    %47 = vector.shape_cast %46 : vector<1x32x8xf32> to vector<32x8xf32>
    %cst_24 = arith.constant dense<0.000000e+00> : vector<8x8xf32>
    %48 = tpu.matmul %33, %47, %cst_24 {dimension_numbers = #tpu.dot_dimension_numbers<[1], [0], [0], [1], [0, 0, 1, 1], [], []>} : vector<8x32xf32>, vector<32x8xf32>, vector<8x8xf32> -> vector<8x8xf32>
    %c1_25 = arith.constant 1 : index
    %c0_26 = arith.constant 0 : index
    %c0_27 = arith.constant 0 : index
    %49 = vector.load %arg5[%c1_25, %c0_26, %c0_27] : memref<4x1x8xf32, #tpu.memory_space<vmem>>, vector<1x1x8xf32>
    %50 = vector.shape_cast %49 : vector<1x1x8xf32> to vector<1x8xf32>
    %51 = vector.broadcast %50 : vector<1x8xf32> to vector<8x8xf32>
    %52 = arith.addf %48, %51 : vector<8x8xf32>
    %cst_28 = arith.constant 0.353553385 : f32
    %53 = vector.broadcast %cst_28 : f32 to vector<8x8xf32>
    %54 = arith.mulf %52, %53 : vector<8x8xf32>
    %c1_29 = arith.constant 1 : index
    %c0_30 = arith.constant 0 : index
    %c0_31 = arith.constant 0 : index
    %55 = vector.load %arg22[%c1_29, %c0_30, %c0_31] : memref<4x8x8xf32, #tpu.memory_space<vmem>>, vector<1x8x8xf32>
    %56 = vector.shape_cast %55 : vector<1x8x8xf32> to vector<8x8xf32>
    %57 = vector.shape_cast %54 : vector<8x8xf32> to vector<1x8x8xf32>
    tpu.vector_store %arg22[%c1_29, %c0_30, %c0_31], %57 {strides = array<i32>} : memref<4x8x8xf32, #tpu.memory_space<vmem>>, vector<1x8x8xf32>,
    %c2 = arith.constant 2 : index
    %c0_32 = arith.constant 0 : index
    %c0_33 = arith.constant 0 : index
    %58 = vector.load %arg4[%c2, %c0_32, %c0_33] : memref<4x32x8xf32, #tpu.memory_space<vmem>>, vector<1x32x8xf32>
    %59 = vector.shape_cast %58 : vector<1x32x8xf32> to vector<32x8xf32>
    %cst_34 = arith.constant dense<0.000000e+00> : vector<8x8xf32>
    %60 = tpu.matmul %33, %59, %cst_34 {dimension_numbers = #tpu.dot_dimension_numbers<[1], [0], [0], [1], [0, 0, 1, 1], [], []>} : vector<8x32xf32>, vector<32x8xf32>, vector<8x8xf32> -> vector<8x8xf32>
    %c2_35 = arith.constant 2 : index
    %c0_36 = arith.constant 0 : index
    %c0_37 = arith.constant 0 : index
    %61 = vector.load %arg5[%c2_35, %c0_36, %c0_37] : memref<4x1x8xf32, #tpu.memory_space<vmem>>, vector<1x1x8xf32>
    %62 = vector.shape_cast %61 : vector<1x1x8xf32> to vector<1x8xf32>
    %63 = vector.broadcast %62 : vector<1x8xf32> to vector<8x8xf32>
    %64 = arith.addf %60, %63 : vector<8x8xf32>
    %cst_38 = arith.constant 0.353553385 : f32
    %65 = vector.broadcast %cst_38 : f32 to vector<8x8xf32>
    %66 = arith.mulf %64, %65 : vector<8x8xf32>
    %c2_39 = arith.constant 2 : index
    %c0_40 = arith.constant 0 : index
    %c0_41 = arith.constant 0 : index
    %67 = vector.load %arg22[%c2_39, %c0_40, %c0_41] : memref<4x8x8xf32, #tpu.memory_space<vmem>>, vector<1x8x8xf32>
    %68 = vector.shape_cast %67 : vector<1x8x8xf32> to vector<8x8xf32>
    %69 = vector.shape_cast %66 : vector<8x8xf32> to vector<1x8x8xf32>
    tpu.vector_store %arg22[%c2_39, %c0_40, %c0_41], %69 {strides = array<i32>} : memref<4x8x8xf32, #tpu.memory_space<vmem>>, vector<1x8x8xf32>,
    %c3 = arith.constant 3 : index
    %c0_42 = arith.constant 0 : index
    %c0_43 = arith.constant 0 : index
    %70 = vector.load %arg4[%c3, %c0_42, %c0_43] : memref<4x32x8xf32, #tpu.memory_space<vmem>>, vector<1x32x8xf32>
    %71 = vector.shape_cast %70 : vector<1x32x8xf32> to vector<32x8xf32>
    %cst_44 = arith.constant dense<0.000000e+00> : vector<8x8xf32>
    %72 = tpu.matmul %33, %71, %cst_44 {dimension_numbers = #tpu.dot_dimension_numbers<[1], [0], [0], [1], [0, 0, 1, 1], [], []>} : vector<8x32xf32>, vector<32x8xf32>, vector<8x8xf32> -> vector<8x8xf32>
    %c3_45 = arith.constant 3 : index
    %c0_46 = arith.constant 0 : index
    %c0_47 = arith.constant 0 : index
    %73 = vector.load %arg5[%c3_45, %c0_46, %c0_47] : memref<4x1x8xf32, #tpu.memory_space<vmem>>, vector<1x1x8xf32>
    %74 = vector.shape_cast %73 : vector<1x1x8xf32> to vector<1x8xf32>
    %75 = vector.broadcast %74 : vector<1x8xf32> to vector<8x8xf32>
    %76 = arith.addf %72, %75 : vector<8x8xf32>
    %cst_48 = arith.constant 0.353553385 : f32
    %77 = vector.broadcast %cst_48 : f32 to vector<8x8xf32>
    %78 = arith.mulf %76, %77 : vector<8x8xf32>
    %c3_49 = arith.constant 3 : index
    %c0_50 = arith.constant 0 : index
    %c0_51 = arith.constant 0 : index
    %79 = vector.load %arg22[%c3_49, %c0_50, %c0_51] : memref<4x8x8xf32, #tpu.memory_space<vmem>>, vector<1x8x8xf32>
    %80 = vector.shape_cast %79 : vector<1x8x8xf32> to vector<8x8xf32>
    %81 = vector.shape_cast %78 : vector<8x8xf32> to vector<1x8x8xf32>
    tpu.vector_store %arg22[%c3_49, %c0_50, %c0_51], %81 {strides = array<i32>} : memref<4x8x8xf32, #tpu.memory_space<vmem>>, vector<1x8x8xf32>,
    %c0_52 = arith.constant 0 : index
    %c0_53 = arith.constant 0 : index
    %c0_54 = arith.constant 0 : index
    %82 = vector.load %arg22[%c0_52, %c0_53, %c0_54] : memref<4x8x8xf32, #tpu.memory_space<vmem>>, vector<4x8x8xf32>
    %c0_55 = arith.constant 0 : index
    %c0_56 = arith.constant 0 : index
    %c0_57 = arith.constant 0 : index
    %83 = vector.load %arg23[%c0_55, %c0_56, %c0_57] : memref<4x8x8xf32, #tpu.memory_space<vmem>>, vector<4x8x8xf32>
    %c0_58 = arith.constant 0 : index
    %c0_59 = arith.constant 0 : index
    %c0_60 = arith.constant 0 : index
    %84 = vector.load %arg24[%c0_58, %c0_59, %c0_60] : memref<4x8x8xf32, #tpu.memory_space<vmem>>, vector<4x8x8xf32>
    %cst_61 = arith.constant dense<0.000000e+00> : vector<4x8x8xf32>
    %85 = tpu.matmul %82, %83, %cst_61 {dimension_numbers = #tpu.dot_dimension_numbers<[2], [2], [1], [1], [0, 0, 0, 1, 1, 1], [0], [0]>} : vector<4x8x8xf32>, vector<4x8x8xf32>, vector<4x8x8xf32> -> vector<4x8x8xf32>
    %cst_62 = arith.constant dense<0xFF800000> : vector<4x8xf32>
    %86 = vector.multi_reduction <maximumf>, %85, %cst_62 [2] : vector<4x8x8xf32> to vector<4x8xf32>
    %87 = vector.shape_cast %86 : vector<4x8xf32> to vector<4x8x1xf32>
    %88 = vector.broadcast %87 : vector<4x8x1xf32> to vector<4x8x8xf32>
    %89 = arith.subf %85, %88 : vector<4x8x8xf32>
    %90 = math.exp %89 : vector<4x8x8xf32>
    %cst_63 = arith.constant dense<0.000000e+00> : vector<4x8xf32>
    %91 = vector.multi_reduction <add>, %90, %cst_63 [2] : vector<4x8x8xf32> to vector<4x8xf32>
    %92 = vector.shape_cast %91 : vector<4x8xf32> to vector<4x8x1xf32>
    %93 = tpu.reciprocal %92 {approx = true} : vector<4x8x1xf32> -> vector<4x8x1xf32>
    %94 = vector.broadcast %93 : vector<4x8x1xf32> to vector<4x8x8xf32>
    %95 = arith.mulf %90, %94 : vector<4x8x8xf32>
    %c0_64 = arith.constant 0 : index
    %c0_65 = arith.constant 0 : index
    %c0_66 = arith.constant 0 : index
    %c0_67 = arith.constant 0 : index
    %96 = vector.load %arg21[%c0_64, %c0_65, %c0_66, %c0_67] : memref<1x4x8x8xf32, #tpu.memory_space<vmem>>, vector<1x4x8x8xf32>
    %97 = vector.shape_cast %96 : vector<1x4x8x8xf32> to vector<4x8x8xf32>
    %98 = vector.shape_cast %95 : vector<4x8x8xf32> to vector<1x4x8x8xf32>
    tpu.vector_store %arg21[%c0_64, %c0_65, %c0_66, %c0_67], %98 {strides = array<i32>} : memref<1x4x8x8xf32, #tpu.memory_space<vmem>>, vector<1x4x8x8xf32>,
    %cst_68 = arith.constant dense<0.000000e+00> : vector<4x8x8xf32>
    %99 = tpu.matmul %95, %84, %cst_68 {dimension_numbers = #tpu.dot_dimension_numbers<[2], [1], [1], [2], [0, 0, 0, 1, 1, 2], [0], [0]>} : vector<4x8x8xf32>, vector<4x8x8xf32>, vector<4x8x8xf32> -> vector<4x8x8xf32>
    %c0_69 = arith.constant 0 : index
    %c0_70 = arith.constant 0 : index
    %c0_71 = arith.constant 0 : index
    %100 = vector.load %arg10[%c0_69, %c0_70, %c0_71] : memref<4x8x32xf32, #tpu.memory_space<vmem>>, vector<4x8x32xf32>
    %cst_72 = arith.constant dense<0.000000e+00> : vector<4x8x32xf32>
    %101 = tpu.matmul %99, %100, %cst_72 {dimension_numbers = #tpu.dot_dimension_numbers<[2], [1], [1], [2], [0, 0, 0, 1, 1, 2], [0], [0]>} : vector<4x8x8xf32>, vector<4x8x32xf32>, vector<4x8x32xf32> -> vector<4x8x32xf32>
    %cst_73 = arith.constant dense<0.000000e+00> : vector<8x32xf32>
    %102 = vector.multi_reduction <add>, %101, %cst_73 [0] : vector<4x8x32xf32> to vector<8x32xf32>
    %c0_74 = arith.constant 0 : index
    %c0_75 = arith.constant 0 : index
    %103 = vector.load %arg11[%c0_74, %c0_75] : memref<1x32xf32, #tpu.memory_space<vmem>>, vector<1x32xf32>
    %104 = vector.shape_cast %103 : vector<1x32xf32> to vector<32xf32>
    %105 = vector.shape_cast %104 : vector<32xf32> to vector<1x32xf32>
    %106 = vector.broadcast %105 : vector<1x32xf32> to vector<8x32xf32>
    %107 = arith.addf %102, %106 : vector<8x32xf32>
    %108 = arith.addf %4, %107 : vector<8x32xf32>
    %c0_76 = arith.constant 0 : index
    %c0_77 = arith.constant 0 : index
    %109 = vector.load %arg18[%c0_76, %c0_77] : memref<1x32xf32, #tpu.memory_space<vmem>>, vector<1x32xf32>
    %110 = vector.shape_cast %109 : vector<1x32xf32> to vector<32xf32>
    %c0_78 = arith.constant 0 : index
    %c0_79 = arith.constant 0 : index
    %111 = vector.load %arg19[%c0_78, %c0_79] : memref<1x32xf32, #tpu.memory_space<vmem>>, vector<1x32xf32>
    %112 = vector.shape_cast %111 : vector<1x32xf32> to vector<32xf32>
    %cst_80 = arith.constant dense<0.000000e+00> : vector<8xf32>
    %113 = vector.multi_reduction <add>, %108, %cst_80 [1] : vector<8x32xf32> to vector<8xf32>
    %114 = vector.shape_cast %113 : vector<8xf32> to vector<8x1xf32>
    %cst_81 = arith.constant 3.200000e+01 : f32
    %115 = vector.broadcast %cst_81 : f32 to vector<8x1xf32>
    %116 = arith.divf %114, %115 : vector<8x1xf32>
    %117 = vector.broadcast %116 : vector<8x1xf32> to vector<8x32xf32>
    %118 = arith.subf %108, %117 : vector<8x32xf32>
    %119 = arith.mulf %118, %118 : vector<8x32xf32>
    %cst_82 = arith.constant dense<0.000000e+00> : vector<8xf32>
    %120 = vector.multi_reduction <add>, %119, %cst_82 [1] : vector<8x32xf32> to vector<8xf32>
    %121 = vector.shape_cast %120 : vector<8xf32> to vector<8x1xf32>
    %cst_83 = arith.constant 0.0322580636 : f32
    %122 = vector.broadcast %cst_83 : f32 to vector<8x1xf32>
    %123 = arith.mulf %121, %122 : vector<8x1xf32>
    %124 = math.sqrt %123 : vector<8x1xf32>
    %cst_84 = arith.constant 9.99999997E-7 : f32
    %125 = vector.broadcast %cst_84 : f32 to vector<8x1xf32>
    %126 = arith.addf %124, %125 : vector<8x1xf32>
    %127 = tpu.reciprocal %126 : vector<8x1xf32> -> vector<8x1xf32>
    %128 = vector.broadcast %116 : vector<8x1xf32> to vector<8x32xf32>
    %129 = arith.subf %108, %128 : vector<8x32xf32>
    %130 = vector.broadcast %127 : vector<8x1xf32> to vector<8x32xf32>
    %131 = arith.mulf %129, %130 : vector<8x32xf32>
    %132 = vector.shape_cast %110 : vector<32xf32> to vector<1x32xf32>
    %133 = vector.broadcast %132 : vector<1x32xf32> to vector<8x32xf32>
    %134 = arith.mulf %131, %133 : vector<8x32xf32>
    %135 = vector.shape_cast %112 : vector<32xf32> to vector<1x32xf32>
    %136 = vector.broadcast %135 : vector<1x32xf32> to vector<8x32xf32>
    %137 = arith.addf %134, %136 : vector<8x32xf32>
    %c0_85 = arith.constant 0 : index
    %c0_86 = arith.constant 0 : index
    %138 = vector.load %arg14[%c0_85, %c0_86] : memref<32x64xf32, #tpu.memory_space<vmem>>, vector<32x64xf32>
    %cst_87 = arith.constant dense<0.000000e+00> : vector<8x64xf32>
    %139 = tpu.matmul %137, %138, %cst_87 {dimension_numbers = #tpu.dot_dimension_numbers<[1], [0], [0], [1], [0, 0, 1, 1], [], []>} : vector<8x32xf32>, vector<32x64xf32>, vector<8x64xf32> -> vector<8x64xf32>
    %c0_88 = arith.constant 0 : index
    %c0_89 = arith.constant 0 : index
    %140 = vector.load %arg15[%c0_88, %c0_89] : memref<1x64xf32, #tpu.memory_space<vmem>>, vector<1x64xf32>
    %141 = vector.broadcast %140 : vector<1x64xf32> to vector<8x64xf32>
    %142 = arith.addf %139, %141 : vector<8x64xf32>
    %cst_90 = arith.constant 0.000000e+00 : f32
    %143 = vector.broadcast %cst_90 : f32 to vector<8x64xf32>
    %144 = arith.maximumf %142, %143 : vector<8x64xf32>
    %c0_91 = arith.constant 0 : index
    %c0_92 = arith.constant 0 : index
    %145 = vector.load %arg16[%c0_91, %c0_92] : memref<64x32xf32, #tpu.memory_space<vmem>>, vector<64x32xf32>
    %cst_93 = arith.constant dense<0.000000e+00> : vector<8x32xf32>
    %146 = tpu.matmul %144, %145, %cst_93 {dimension_numbers = #tpu.dot_dimension_numbers<[1], [0], [0], [1], [0, 0, 1, 1], [], []>} : vector<8x64xf32>, vector<64x32xf32>, vector<8x32xf32> -> vector<8x32xf32>
    %c0_94 = arith.constant 0 : index
    %c0_95 = arith.constant 0 : index
    %147 = vector.load %arg17[%c0_94, %c0_95] : memref<1x32xf32, #tpu.memory_space<vmem>>, vector<1x32xf32>
    %148 = vector.shape_cast %147 : vector<1x32xf32> to vector<32xf32>
    %149 = vector.shape_cast %148 : vector<32xf32> to vector<1x32xf32>
    %150 = vector.broadcast %149 : vector<1x32xf32> to vector<8x32xf32>
    %151 = arith.addf %146, %150 : vector<8x32xf32>
    %152 = arith.addf %108, %151 : vector<8x32xf32>
    %c0_96 = arith.constant 0 : index
    %c0_97 = arith.constant 0 : index
    %c0_98 = arith.constant 0 : index
    %153 = vector.load %arg20[%c0_96, %c0_97, %c0_98] : memref<1x8x32xf32, #tpu.memory_space<vmem>>, vector<1x8x32xf32>
    %154 = vector.shape_cast %153 : vector<1x8x32xf32> to vector<8x32xf32>
    %155 = vector.shape_cast %152 : vector<8x32xf32> to vector<1x8x32xf32>
    tpu.vector_store %arg20[%c0_96, %c0_97, %c0_98], %155 {strides = array<i32>} : memref<1x8x32xf32, #tpu.memory_space<vmem>>, vector<1x8x32xf32>,
    return
  }
  func.func @transform_0(%arg0: i32, %arg1: i32) -> (i32, i32, i32) {
    %c0_i32 = arith.constant 0 : i32
    %c0_i32_0 = arith.constant 0 : i32
    return %arg0, %arg1, %c0_i32 : i32, i32, i32
  }
  func.func @transform_1(%arg0: i32, %arg1: i32) -> (i32, i32, i32) {
    %c0_i32 = arith.constant 0 : i32
    %c0_i32_0 = arith.constant 0 : i32
    %c0_i32_1 = arith.constant 0 : i32
    return %arg0, %c0_i32, %c0_i32_0 : i32, i32, i32
  }
  func.func @transform_2(%arg0: i32, %arg1: i32) -> (i32, i32, i32) {
    %c0_i32 = arith.constant 0 : i32
    %c0_i32_0 = arith.constant 0 : i32
    %c0_i32_1 = arith.constant 0 : i32
    %c0_i32_2 = arith.constant 0 : i32
    return %c0_i32, %c0_i32_0, %c0_i32_1 : i32, i32, i32
  }
  func.func @transform_3(%arg0: i32, %arg1: i32) -> (i32, i32, i32) {
    %c0_i32 = arith.constant 0 : i32
    %c0_i32_0 = arith.constant 0 : i32
    %c0_i32_1 = arith.constant 0 : i32
    %c0_i32_2 = arith.constant 0 : i32
    return %c0_i32, %c0_i32_0, %c0_i32_1 : i32, i32, i32
  }
  func.func @transform_4(%arg0: i32, %arg1: i32) -> (i32, i32, i32) {
    %c0_i32 = arith.constant 0 : i32
    %c0_i32_0 = arith.constant 0 : i32
    %c0_i32_1 = arith.constant 0 : i32
    %c0_i32_2 = arith.constant 0 : i32
    return %c0_i32, %c0_i32_0, %c0_i32_1 : i32, i32, i32
  }
  func.func @transform_5(%arg0: i32, %arg1: i32) -> (i32, i32, i32) {
    %c0_i32 = arith.constant 0 : i32
    %c0_i32_0 = arith.constant 0 : i32
    %c0_i32_1 = arith.constant 0 : i32
    %c0_i32_2 = arith.constant 0 : i32
    return %c0_i32, %c0_i32_0, %c0_i32_1 : i32, i32, i32
  }
  func.func @transform_6(%arg0: i32, %arg1: i32) -> (i32, i32, i32) {
    %c0_i32 = arith.constant 0 : i32
    %c0_i32_0 = arith.constant 0 : i32
    %c0_i32_1 = arith.constant 0 : i32
    %c0_i32_2 = arith.constant 0 : i32
    return %c0_i32, %c0_i32_0, %c0_i32_1 : i32, i32, i32
  }
  func.func @transform_7(%arg0: i32, %arg1: i32) -> (i32, i32, i32) {
    %c0_i32 = arith.constant 0 : i32
    %c0_i32_0 = arith.constant 0 : i32
    %c0_i32_1 = arith.constant 0 : i32
    %c0_i32_2 = arith.constant 0 : i32
    return %c0_i32, %c0_i32_0, %c0_i32_1 : i32, i32, i32
  }
  func.func @transform_8(%arg0: i32, %arg1: i32) -> (i32, i32, i32) {
    %c0_i32 = arith.constant 0 : i32
    %c0_i32_0 = arith.constant 0 : i32
    %c0_i32_1 = arith.constant 0 : i32
    %c0_i32_2 = arith.constant 0 : i32
    return %c0_i32, %c0_i32_0, %c0_i32_1 : i32, i32, i32
  }
  func.func @transform_9(%arg0: i32, %arg1: i32) -> (i32, i32) {
    %c0_i32 = arith.constant 0 : i32
    %c0_i32_0 = arith.constant 0 : i32
    %c0_i32_1 = arith.constant 0 : i32
    return %c0_i32, %c0_i32_0 : i32, i32
  }
  func.func @transform_10(%arg0: i32, %arg1: i32) -> (i32, i32) {
    %c0_i32 = arith.constant 0 : i32
    %c0_i32_0 = arith.constant 0 : i32
    %c0_i32_1 = arith.constant 0 : i32
    return %c0_i32, %c0_i32_0 : i32, i32
  }
  func.func @transform_11(%arg0: i32, %arg1: i32) -> (i32, i32) {
    %c0_i32 = arith.constant 0 : i32
    %c0_i32_0 = arith.constant 0 : i32
    %c0_i32_1 = arith.constant 0 : i32
    return %c0_i32, %c0_i32_0 : i32, i32
  }
  func.func @transform_12(%arg0: i32, %arg1: i32) -> (i32, i32) {
    %c0_i32 = arith.constant 0 : i32
    %c0_i32_0 = arith.constant 0 : i32
    %c0_i32_1 = arith.constant 0 : i32
    return %c0_i32, %c0_i32_0 : i32, i32
  }
  func.func @transform_13(%arg0: i32, %arg1: i32) -> (i32, i32) {
    %c0_i32 = arith.constant 0 : i32
    %c0_i32_0 = arith.constant 0 : i32
    %c0_i32_1 = arith.constant 0 : i32
    return %c0_i32, %c0_i32_0 : i32, i32
  }
  func.func @transform_14(%arg0: i32, %arg1: i32) -> (i32, i32) {
    %c0_i32 = arith.constant 0 : i32
    %c0_i32_0 = arith.constant 0 : i32
    %c0_i32_1 = arith.constant 0 : i32
    return %c0_i32, %c0_i32_0 : i32, i32
  }
  func.func @transform_15(%arg0: i32, %arg1: i32) -> (i32, i32) {
    %c0_i32 = arith.constant 0 : i32
    %c0_i32_0 = arith.constant 0 : i32
    %c0_i32_1 = arith.constant 0 : i32
    return %c0_i32, %c0_i32_0 : i32, i32
  }
  func.func @transform_16(%arg0: i32, %arg1: i32) -> (i32, i32) {
    %c0_i32 = arith.constant 0 : i32
    %c0_i32_0 = arith.constant 0 : i32
    %c0_i32_1 = arith.constant 0 : i32
    return %c0_i32, %c0_i32_0 : i32, i32
  }
  func.func @transform_17(%arg0: i32, %arg1: i32) -> (i32, i32) {
    %c0_i32 = arith.constant 0 : i32
    %c0_i32_0 = arith.constant 0 : i32
    %c0_i32_1 = arith.constant 0 : i32
    return %c0_i32, %c0_i32_0 : i32, i32
  }
  func.func @transform_18(%arg0: i32, %arg1: i32) -> (i32, i32, i32) {
    %c0_i32 = arith.constant 0 : i32
    %c0_i32_0 = arith.constant 0 : i32
    return %arg0, %arg1, %c0_i32 : i32, i32, i32
  }
  func.func @transform_19(%arg0: i32, %arg1: i32) -> (i32, i32, i32, i32) {
    %c0_i32 = arith.constant 0 : i32
    %c0_i32_0 = arith.constant 0 : i32
    %c0_i32_1 = arith.constant 0 : i32
    return %arg0, %c0_i32, %arg1, %c0_i32_0 : i32, i32, i32, i32
  }
}

</mosaic_0001>

<llo_original>
// kernel: tpu_custom_call.1
$region0: #{tpu_custom_call.1}
  #allocation0 [shape = 'u32[]', space=smem, size = 0x4, offset = 0x4, fixed_abs, tag = 'smem constant byte address 0x4 - core index']
  #allocation1 [shape = 'u32[72,128]{1,0:T(1,128)}', space=vmem, size = 0x9000, scoped, tag = 'internal scratch']
  #allocation2 [shape = 'f32[4,8,8]{2,1,0:T(8,128)}', space=vmem, size = 0x4000, scoped, tag = 'scratch operand']
  #allocation3 [shape = 'f32[4,8,8]{2,1,0:T(8,128)}', space=vmem, size = 0x4000, scoped, tag = 'scratch operand']
  #allocation4 [shape = 'f32[4,8,8]{2,1,0:T(8,128)}', space=vmem, size = 0x4000, scoped, tag = 'scratch operand']
  %s0 = inlined_call_operand.vmem [shape: f32[2,8,32], index: 0, kind: input, shape index: {}]
  %s1 = inlined_call_operand.vmem [shape: f32[2,8,32], index: 1, kind: input, shape index: {}]
  %s2 = inlined_call_operand.vmem [shape: f32[4,32,8], index: 2, kind: input, shape index: {}]
  %s3 = inlined_call_operand.vmem [shape: f32[4,1,8], index: 3, kind: input, shape index: {}]
  %s4 = inlined_call_operand.vmem [shape: f32[4,32,8], index: 4, kind: input, shape index: {}]
  %s5 = inlined_call_operand.vmem [shape: f32[4,1,8], index: 5, kind: input, shape index: {}]
  %s6 = inlined_call_operand.vmem [shape: f32[4,32,8], index: 6, kind: input, shape index: {}]
  %s7 = inlined_call_operand.vmem [shape: f32[4,1,8], index: 7, kind: input, shape index: {}]
  %s8 = inlined_call_operand.vmem [shape: f32[4,8,32], index: 8, kind: input, shape index: {}]
  %s9 = inlined_call_operand.vmem [shape: f32[1,32], index: 9, kind: input, shape index: {}]
  %s10 = inlined_call_operand.vmem [shape: f32[1,32], index: 10, kind: input, shape index: {}]
  %s11 = inlined_call_operand.vmem [shape: f32[1,32], index: 11, kind: input, shape index: {}]
  %s12 = inlined_call_operand.vmem [shape: f32[32,64], index: 12, kind: input, shape index: {}]
  %s13 = inlined_call_operand.vmem [shape: f32[1,64], index: 13, kind: input, shape index: {}]
  %s14 = inlined_call_operand.vmem [shape: f32[64,32], index: 14, kind: input, shape index: {}]
  %s15 = inlined_call_operand.vmem [shape: f32[1,32], index: 15, kind: input, shape index: {}]
  %s16 = inlined_call_operand.vmem [shape: f32[1,32], index: 16, kind: input, shape index: {}]
  %s17 = inlined_call_operand.vmem [shape: f32[1,32], index: 17, kind: input, shape index: {}]
  %s18 = inlined_call_operand.hbm [shape: f32[2,8,32], index: 18, kind: output, shape index: {0}]
  %s19 = inlined_call_operand.hbm [shape: f32[2,4,8,8], index: 19, kind: output, shape index: {1}]
  %20 = xla_tuple %s18, %s19
  %s21 = sld [smem:[#allocation0]]
  $region117: #{tpu_custom_call.1} parent=0
    _
  %s23 = ssub.s32 1, %s21
  %s24 = scalar_select 0, %s23, %s21
  $region1: #{tpu_custom_call.1} parent=0
    #allocation5 [shape = 'u8[8192]{0}', space=vmem, size = 0x2000, scoped, tag = 'output window, operand 0']
    #allocation6 [shape = 's32[2]{0}', space=sflag, size = 0x8, scoped, tag = 'scoped memory for tpu_custom_call.1']
    #allocation7 [shape = 'u8[32768]{0}', space=vmem, size = 0x8000, scoped, tag = 'output window, operand 1']
    #allocation8 [shape = 's32[2]{0}', space=sflag, size = 0x8, scoped, tag = 'scoped memory for tpu_custom_call.1']
    %25 = vsyncpa [#allocation6], 0
    %s26 = scalar_lea.sflag [#allocation6], 1
    %27 = vsyncpa %s26, 0
    %28 = vsyncpa [#allocation8], 0
    %s29 = scalar_lea.sflag [#allocation8], 1
    %30 = vsyncpa %s29, 0
    loop: start=0, step=1, limit=4
    $region2: #{tpu_custom_call.1} parent=1 // loop_pre_header
      _
    $region3: #{tpu_custom_call.1} parent=1 // loop_header
      %s32 = sphi 0, %s36
      %p33 = scmp.ge.s32.totalorder %s32, 4
      %s39 = sphi 0, %s51
      %s40 = sphi 0, %s47
      %s41 = sphi 0, %s39
      %s42 = sphi 0, %s40
      %s43 = sphi 0, %s41
      %s44 = sphi 0, %s42
      %s56 = sphi 0, %s58
      %s59 = sphi 0, %s56
      %s60 = sphi 0, %s59
      %s76 = sphi 0, %s60
      %s82 = sphi 0, %s84
      %s85 = sphi 0, %s82
      %s86 = sphi 0, %s85
      %s102 = sphi 0, %s86
      %s106 = sphi 0, %s106
      %s108 = sphi 0, %s106
      %s109 = sphi 0, %s108
      %s123 = sphi 0, %s109
      %s127 = sphi 0, %s127
      %s129 = sphi 0, %s127
      %s130 = sphi 0, %s129
      %s144 = sphi 0, %s130
      %s148 = sphi 0, %s148
      %s150 = sphi 0, %s148
      %s151 = sphi 0, %s150
      %s165 = sphi 0, %s151
      %s169 = sphi 0, %s169
      %s171 = sphi 0, %s169
      %s172 = sphi 0, %s171
      %s186 = sphi 0, %s172
      %s190 = sphi 0, %s190
      %s192 = sphi 0, %s190
      %s193 = sphi 0, %s192
      %s207 = sphi 0, %s193
      %s211 = sphi 0, %s211
      %s213 = sphi 0, %s211
      %s214 = sphi 0, %s213
      %s228 = sphi 0, %s214
      %s232 = sphi 0, %s232
      %s234 = sphi 0, %s232
      %s235 = sphi 0, %s234
      %s249 = sphi 0, %s235
      %s253 = sphi 0, %s253
      %s255 = sphi 0, %s253
      %s256 = sphi 0, %s255
      %s270 = sphi 0, %s256
      %s274 = sphi 0, %s274
      %s276 = sphi 0, %s274
      %s277 = sphi 0, %s276
      %s291 = sphi 0, %s277
      %s295 = sphi 0, %s295
      %s297 = sphi 0, %s295
      %s298 = sphi 0, %s297
      %s312 = sphi 0, %s298
      %s316 = sphi 0, %s316
      %s318 = sphi 0, %s316
      %s319 = sphi 0, %s318
      %s333 = sphi 0, %s319
      %s337 = sphi 0, %s337
      %s339 = sphi 0, %s337
      %s340 = sphi 0, %s339
      %s354 = sphi 0, %s340
      %s358 = sphi 0, %s358
      %s360 = sphi 0, %s358
      %s361 = sphi 0, %s360
      %s375 = sphi 0, %s361
      %s379 = sphi 0, %s379
      %s381 = sphi 0, %s379
      %s382 = sphi 0, %s381
      %s396 = sphi 0, %s382
      %s400 = sphi 0, %s400
      %s402 = sphi 0, %s400
      %s403 = sphi 0, %s402
      %s417 = sphi 0, %s403
      %s421 = sphi 0, %s421
      %s423 = sphi 0, %s421
      %s424 = sphi 0, %s423
      %s438 = sphi 0, %s424
      %s446 = sphi 0, %s448
      %s449 = sphi 0, %s446
      %s450 = sphi 0, %s449
      %s466 = sphi 0, %s450
      %s474 = sphi 0, %s476
      %s477 = sphi 0, %s474
      %s478 = sphi 0, %s477
      %s494 = sphi 0, %s478
    $region4: #{tpu_custom_call.1} parent=1 // loop_header_branch
      %35 = sbr.rel (%p33) target = $region8
    $region5: #{tpu_custom_call.1} parent=1 // loop_body
      %s37 = ssub.s32 %s32, 1
      %s38 = ssub.s32 %s32, 2
      %s45 = sadd.s32 1, %s40
      %p46 = scmp.ge.s32.totalorder %s45, 1
      %s47 = scalar_select %p46, 0, %s45
      %s48 = sadd.s32 1, %s39
      %s49 = scalar_select %p46, %s48, %s39
      %p50 = scmp.ge.s32.totalorder %s49, 2
      %s51 = scalar_select %p50, 0, %s49
      %s52 = ssub.s32 %s39, %s51
      %s53 = ssub.s32 %s40, %s47
      %s54 = sor.u32 %s52, %s53
      %p55 = scmp.eq.s32.totalorder %s54, 0
      %s57 = sadd.s32 %s56, 1
      %s58 = scalar_select %p55, %s56, %s57
      %p61 = pneg %p55
      %p62 = scmp.eq.s32.totalorder %s32, 1
      %p63 = por %p61, %p62
      %p64 = scmp.ne.s32.totalorder %s56, %s59
      %p65 = scmp.eq.s32.totalorder %s32, 0
      %p66 = por %p64, %p65
      %p67 = scmp.ne.s32.totalorder %s56, %s59
      %p68 = scmp.eq.s32.totalorder %s37, 1
      %p69 = por %p67, %p68
      %p70 = scmp.ne.s32.totalorder %s59, %s60
      %p71 = scmp.eq.s32.totalorder %s37, 0
      %p72 = por %p70, %p71
      %p73 = scmp.ne.s32.totalorder %s59, %s60
      %p74 = scmp.eq.s32.totalorder %s38, 1
      %p75 = por %p73, %p74
      %p77 = scmp.ne.s32.totalorder %s60, %s76
      %p78 = scmp.eq.s32.totalorder %s38, 0
      %p79 = por %p77, %p78
      %s80 = ssub.s32 %s39, %s51
      %p81 = scmp.eq.s32.totalorder %s80, 0
      %s83 = sadd.s32 %s82, 1
      %s84 = scalar_select %p81, %s82, %s83
      %p87 = pneg %p81
      %p88 = scmp.eq.s32.totalorder %s32, 1
      %p89 = por %p87, %p88
      %p90 = scmp.ne.s32.totalorder %s82, %s85
      %p91 = scmp.eq.s32.totalorder %s32, 0
      %p92 = por %p90, %p91
      %p93 = scmp.ne.s32.totalorder %s82, %s85
      %p94 = scmp.eq.s32.totalorder %s37, 1
      %p95 = por %p93, %p94
      %p96 = scmp.ne.s32.totalorder %s85, %s86
      %p97 = scmp.eq.s32.totalorder %s37, 0
      %p98 = por %p96, %p97
      %p99 = scmp.ne.s32.totalorder %s85, %s86
      %p100 = scmp.eq.s32.totalorder %s38, 1
      %p101 = por %p99, %p100
      %p103 = scmp.ne.s32.totalorder %s86, %s102
      %p104 = scmp.eq.s32.totalorder %s38, 0
      %p105 = por %p103, %p104
      %s107 = sadd.s32 %s106, 1
      %p110 = scmp.eq.s32.totalorder %s32, 1
      %p111 = scmp.ne.s32.totalorder %s106, %s108
      %p112 = scmp.eq.s32.totalorder %s32, 0
      %p113 = por %p111, %p112
      %p114 = scmp.ne.s32.totalorder %s106, %s108
      %p115 = scmp.eq.s32.totalorder %s37, 1
      %p116 = por %p114, %p115
      %p117 = scmp.ne.s32.totalorder %s108, %s109
      %p118 = scmp.eq.s32.totalorder %s37, 0
      %p119 = por %p117, %p118
      %p120 = scmp.ne.s32.totalorder %s108, %s109
      %p121 = scmp.eq.s32.totalorder %s38, 1
      %p122 = por %p120, %p121
      %p124 = scmp.ne.s32.totalorder %s109, %s123
      %p125 = scmp.eq.s32.totalorder %s38, 0
      %p126 = por %p124, %p125
      %s128 = sadd.s32 %s127, 1
      %p131 = scmp.eq.s32.totalorder %s32, 1
      %p132 = scmp.ne.s32.totalorder %s127, %s129
      %p133 = scmp.eq.s32.totalorder %s32, 0
      %p134 = por %p132, %p133
      %p135 = scmp.ne.s32.totalorder %s127, %s129
      %p136 = scmp.eq.s32.totalorder %s37, 1
      %p137 = por %p135, %p136
      %p138 = scmp.ne.s32.totalorder %s129, %s130
      %p139 = scmp.eq.s32.totalorder %s37, 0
      %p140 = por %p138, %p139
      %p141 = scmp.ne.s32.totalorder %s129, %s130
      %p142 = scmp.eq.s32.totalorder %s38, 1
      %p143 = por %p141, %p142
      %p145 = scmp.ne.s32.totalorder %s130, %s144
      %p146 = scmp.eq.s32.totalorder %s38, 0
      %p147 = por %p145, %p146
      %s149 = sadd.s32 %s148, 1
      %p152 = scmp.eq.s32.totalorder %s32, 1
      %p153 = scmp.ne.s32.totalorder %s148, %s150
      %p154 = scmp.eq.s32.totalorder %s32, 0
      %p155 = por %p153, %p154
      %p156 = scmp.ne.s32.totalorder %s148, %s150
      %p157 = scmp.eq.s32.totalorder %s37, 1
      %p158 = por %p156, %p157
      %p159 = scmp.ne.s32.totalorder %s150, %s151
      %p160 = scmp.eq.s32.totalorder %s37, 0
      %p161 = por %p159, %p160
      %p162 = scmp.ne.s32.totalorder %s150, %s151
      %p163 = scmp.eq.s32.totalorder %s38, 1
      %p164 = por %p162, %p163
      %p166 = scmp.ne.s32.totalorder %s151, %s165
      %p167 = scmp.eq.s32.totalorder %s38, 0
      %p168 = por %p166, %p167
      %s170 = sadd.s32 %s169, 1
      %p173 = scmp.eq.s32.totalorder %s32, 1
      %p174 = scmp.ne.s32.totalorder %s169, %s171
      %p175 = scmp.eq.s32.totalorder %s32, 0
      %p176 = por %p174, %p175
      %p177 = scmp.ne.s32.totalorder %s169, %s171
      %p178 = scmp.eq.s32.totalorder %s37, 1
      %p179 = por %p177, %p178
      %p180 = scmp.ne.s32.totalorder %s171, %s172
      %p181 = scmp.eq.s32.totalorder %s37, 0
      %p182 = por %p180, %p181
      %p183 = scmp.ne.s32.totalorder %s171, %s172
      %p184 = scmp.eq.s32.totalorder %s38, 1
      %p185 = por %p183, %p184
      %p187 = scmp.ne.s32.totalorder %s172, %s186
      %p188 = scmp.eq.s32.totalorder %s38, 0
      %p189 = por %p187, %p188
      %s191 = sadd.s32 %s190, 1
      %p194 = scmp.eq.s32.totalorder %s32, 1
      %p195 = scmp.ne.s32.totalorder %s190, %s192
      %p196 = scmp.eq.s32.totalorder %s32, 0
      %p197 = por %p195, %p196
      %p198 = scmp.ne.s32.totalorder %s190, %s192
      %p199 = scmp.eq.s32.totalorder %s37, 1
      %p200 = por %p198, %p199
      %p201 = scmp.ne.s32.totalorder %s192, %s193
      %p202 = scmp.eq.s32.totalorder %s37, 0
      %p203 = por %p201, %p202
      %p204 = scmp.ne.s32.totalorder %s192, %s193
      %p205 = scmp.eq.s32.totalorder %s38, 1
      %p206 = por %p204, %p205
      %p208 = scmp.ne.s32.totalorder %s193, %s207
      %p209 = scmp.eq.s32.totalorder %s38, 0
      %p210 = por %p208, %p209
      %s212 = sadd.s32 %s211, 1
      %p215 = scmp.eq.s32.totalorder %s32, 1
      %p216 = scmp.ne.s32.totalorder %s211, %s213
      %p217 = scmp.eq.s32.totalorder %s32, 0
      %p218 = por %p216, %p217
      %p219 = scmp.ne.s32.totalorder %s211, %s213
      %p220 = scmp.eq.s32.totalorder %s37, 1
      %p221 = por %p219, %p220
      %p222 = scmp.ne.s32.totalorder %s213, %s214
      %p223 = scmp.eq.s32.totalorder %s37, 0
      %p224 = por %p222, %p223
      %p225 = scmp.ne.s32.totalorder %s213, %s214
      %p226 = scmp.eq.s32.totalorder %s38, 1
      %p227 = por %p225, %p226
      %p229 = scmp.ne.s32.totalorder %s214, %s228
      %p230 = scmp.eq.s32.totalorder %s38, 0
      %p231 = por %p229, %p230
      %s233 = sadd.s32 %s232, 1
      %p236 = scmp.eq.s32.totalorder %s32, 1
      %p237 = scmp.ne.s32.totalorder %s232, %s234
      %p238 = scmp.eq.s32.totalorder %s32, 0
      %p239 = por %p237, %p238
      %p240 = scmp.ne.s32.totalorder %s232, %s234
      %p241 = scmp.eq.s32.totalorder %s37, 1
      %p242 = por %p240, %p241
      %p243 = scmp.ne.s32.totalorder %s234, %s235
      %p244 = scmp.eq.s32.totalorder %s37, 0
      %p245 = por %p243, %p244
      %p246 = scmp.ne.s32.totalorder %s234, %s235
      %p247 = scmp.eq.s32.totalorder %s38, 1
      %p248 = por %p246, %p247
      %p250 = scmp.ne.s32.totalorder %s235, %s249
      %p251 = scmp.eq.s32.totalorder %s38, 0
      %p252 = por %p250, %p251
      %s254 = sadd.s32 %s253, 1
      %p257 = scmp.eq.s32.totalorder %s32, 1
      %p258 = scmp.ne.s32.totalorder %s253, %s255
      %p259 = scmp.eq.s32.totalorder %s32, 0
      %p260 = por %p258, %p259
      %p261 = scmp.ne.s32.totalorder %s253, %s255
      %p262 = scmp.eq.s32.totalorder %s37, 1
      %p263 = por %p261, %p262
      %p264 = scmp.ne.s32.totalorder %s255, %s256
      %p265 = scmp.eq.s32.totalorder %s37, 0
      %p266 = por %p264, %p265
      %p267 = scmp.ne.s32.totalorder %s255, %s256
      %p268 = scmp.eq.s32.totalorder %s38, 1
      %p269 = por %p267, %p268
      %p271 = scmp.ne.s32.totalorder %s256, %s270
      %p272 = scmp.eq.s32.totalorder %s38, 0
      %p273 = por %p271, %p272
      %s275 = sadd.s32 %s274, 1
      %p278 = scmp.eq.s32.totalorder %s32, 1
      %p279 = scmp.ne.s32.totalorder %s274, %s276
      %p280 = scmp.eq.s32.totalorder %s32, 0
      %p281 = por %p279, %p280
      %p282 = scmp.ne.s32.totalorder %s274, %s276
      %p283 = scmp.eq.s32.totalorder %s37, 1
      %p284 = por %p282, %p283
      %p285 = scmp.ne.s32.totalorder %s276, %s277
      %p286 = scmp.eq.s32.totalorder %s37, 0
      %p287 = por %p285, %p286
      %p288 = scmp.ne.s32.totalorder %s276, %s277
      %p289 = scmp.eq.s32.totalorder %s38, 1
      %p290 = por %p288, %p289
      %p292 = scmp.ne.s32.totalorder %s277, %s291
      %p293 = scmp.eq.s32.totalorder %s38, 0
      %p294 = por %p292, %p293
      %s296 = sadd.s32 %s295, 1
      %p299 = scmp.eq.s32.totalorder %s32, 1
      %p300 = scmp.ne.s32.totalorder %s295, %s297
      %p301 = scmp.eq.s32.totalorder %s32, 0
      %p302 = por %p300, %p301
      %p303 = scmp.ne.s32.totalorder %s295, %s297
      %p304 = scmp.eq.s32.totalorder %s37, 1
      %p305 = por %p303, %p304
      %p306 = scmp.ne.s32.totalorder %s297, %s298
      %p307 = scmp.eq.s32.totalorder %s37, 0
      %p308 = por %p306, %p307
      %p309 = scmp.ne.s32.totalorder %s297, %s298
      %p310 = scmp.eq.s32.totalorder %s38, 1
      %p311 = por %p309, %p310
      %p313 = scmp.ne.s32.totalorder %s298, %s312
      %p314 = scmp.eq.s32.totalorder %s38, 0
      %p315 = por %p313, %p314
      %s317 = sadd.s32 %s316, 1
      %p320 = scmp.eq.s32.totalorder %s32, 1
      %p321 = scmp.ne.s32.totalorder %s316, %s318
      %p322 = scmp.eq.s32.totalorder %s32, 0
      %p323 = por %p321, %p322
      %p324 = scmp.ne.s32.totalorder %s316, %s318
      %p325 = scmp.eq.s32.totalorder %s37, 1
      %p326 = por %p324, %p325
      %p327 = scmp.ne.s32.totalorder %s318, %s319
      %p328 = scmp.eq.s32.totalorder %s37, 0
      %p329 = por %p327, %p328
      %p330 = scmp.ne.s32.totalorder %s318, %s319
      %p331 = scmp.eq.s32.totalorder %s38, 1
      %p332 = por %p330, %p331
      %p334 = scmp.ne.s32.totalorder %s319, %s333
      %p335 = scmp.eq.s32.totalorder %s38, 0
      %p336 = por %p334, %p335
      %s338 = sadd.s32 %s337, 1
      %p341 = scmp.eq.s32.totalorder %s32, 1
      %p342 = scmp.ne.s32.totalorder %s337, %s339
      %p343 = scmp.eq.s32.totalorder %s32, 0
      %p344 = por %p342, %p343
      %p345 = scmp.ne.s32.totalorder %s337, %s339
      %p346 = scmp.eq.s32.totalorder %s37, 1
      %p347 = por %p345, %p346
      %p348 = scmp.ne.s32.totalorder %s339, %s340
      %p349 = scmp.eq.s32.totalorder %s37, 0
      %p350 = por %p348, %p349
      %p351 = scmp.ne.s32.totalorder %s339, %s340
      %p352 = scmp.eq.s32.totalorder %s38, 1
      %p353 = por %p351, %p352
      %p355 = scmp.ne.s32.totalorder %s340, %s354
      %p356 = scmp.eq.s32.totalorder %s38, 0
      %p357 = por %p355, %p356
      %s359 = sadd.s32 %s358, 1
      %p362 = scmp.eq.s32.totalorder %s32, 1
      %p363 = scmp.ne.s32.totalorder %s358, %s360
      %p364 = scmp.eq.s32.totalorder %s32, 0
      %p365 = por %p363, %p364
      %p366 = scmp.ne.s32.totalorder %s358, %s360
      %p367 = scmp.eq.s32.totalorder %s37, 1
      %p368 = por %p366, %p367
      %p369 = scmp.ne.s32.totalorder %s360, %s361
      %p370 = scmp.eq.s32.totalorder %s37, 0
      %p371 = por %p369, %p370
      %p372 = scmp.ne.s32.totalorder %s360, %s361
      %p373 = scmp.eq.s32.totalorder %s38, 1
      %p374 = por %p372, %p373
      %p376 = scmp.ne.s32.totalorder %s361, %s375
      %p377 = scmp.eq.s32.totalorder %s38, 0
      %p378 = por %p376, %p377
      %s380 = sadd.s32 %s379, 1
      %p383 = scmp.eq.s32.totalorder %s32, 1
      %p384 = scmp.ne.s32.totalorder %s379, %s381
      %p385 = scmp.eq.s32.totalorder %s32, 0
      %p386 = por %p384, %p385
      %p387 = scmp.ne.s32.totalorder %s379, %s381
      %p388 = scmp.eq.s32.totalorder %s37, 1
      %p389 = por %p387, %p388
      %p390 = scmp.ne.s32.totalorder %s381, %s382
      %p391 = scmp.eq.s32.totalorder %s37, 0
      %p392 = por %p390, %p391
      %p393 = scmp.ne.s32.totalorder %s381, %s382
      %p394 = scmp.eq.s32.totalorder %s38, 1
      %p395 = por %p393, %p394
      %p397 = scmp.ne.s32.totalorder %s382, %s396
      %p398 = scmp.eq.s32.totalorder %s38, 0
      %p399 = por %p397, %p398
      %s401 = sadd.s32 %s400, 1
      %p404 = scmp.eq.s32.totalorder %s32, 1
      %p405 = scmp.ne.s32.totalorder %s400, %s402
      %p406 = scmp.eq.s32.totalorder %s32, 0
      %p407 = por %p405, %p406
      %p408 = scmp.ne.s32.totalorder %s400, %s402
      %p409 = scmp.eq.s32.totalorder %s37, 1
      %p410 = por %p408, %p409
      %p411 = scmp.ne.s32.totalorder %s402, %s403
      %p412 = scmp.eq.s32.totalorder %s37, 0
      %p413 = por %p411, %p412
      %p414 = scmp.ne.s32.totalorder %s402, %s403
      %p415 = scmp.eq.s32.totalorder %s38, 1
      %p416 = por %p414, %p415
      %p418 = scmp.ne.s32.totalorder %s403, %s417
      %p419 = scmp.eq.s32.totalorder %s38, 0
      %p420 = por %p418, %p419
      %s422 = sadd.s32 %s421, 1
      %p425 = scmp.eq.s32.totalorder %s32, 1
      %p426 = scmp.ne.s32.totalorder %s421, %s423
      %p427 = scmp.eq.s32.totalorder %s32, 0
      %p428 = por %p426, %p427
      %p429 = scmp.ne.s32.totalorder %s421, %s423
      %p430 = scmp.eq.s32.totalorder %s37, 1
      %p431 = por %p429, %p430
      %p432 = scmp.ne.s32.totalorder %s423, %s424
      %p433 = scmp.eq.s32.totalorder %s37, 0
      %p434 = por %p432, %p433
      %p435 = scmp.ne.s32.totalorder %s423, %s424
      %p436 = scmp.eq.s32.totalorder %s38, 1
      %p437 = por %p435, %p436
      %p439 = scmp.ne.s32.totalorder %s424, %s438
      %p440 = scmp.eq.s32.totalorder %s38, 0
      %p441 = por %p439, %p440
      %s442 = ssub.s32 %s39, %s51
      %s443 = ssub.s32 %s40, %s47
      %s444 = sor.u32 %s442, %s443
      %p445 = scmp.eq.s32.totalorder %s444, 0
      %s447 = sadd.s32 %s446, 1
      %s448 = scalar_select %p445, %s446, %s447
      %p451 = pneg %p445
      %p452 = scmp.eq.s32.totalorder %s32, 1
      %p453 = por %p451, %p452
      %p454 = scmp.ne.s32.totalorder %s446, %s449
      %p455 = scmp.eq.s32.totalorder %s32, 0
      %p456 = por %p454, %p455
      %p457 = scmp.ne.s32.totalorder %s446, %s449
      %p458 = scmp.eq.s32.totalorder %s37, 1
      %p459 = por %p457, %p458
      %p460 = scmp.ne.s32.totalorder %s449, %s450
      %p461 = scmp.eq.s32.totalorder %s37, 0
      %p462 = por %p460, %p461
      %p463 = scmp.ne.s32.totalorder %s449, %s450
      %p464 = scmp.eq.s32.totalorder %s38, 1
      %p465 = por %p463, %p464
      %p467 = scmp.ne.s32.totalorder %s450, %s466
      %p468 = scmp.eq.s32.totalorder %s38, 0
      %p469 = por %p467, %p468
      %s470 = ssub.s32 %s39, %s51
      %s471 = ssub.s32 %s40, %s47
      %s472 = sor.u32 %s470, %s471
      %p473 = scmp.eq.s32.totalorder %s472, 0
      %s475 = sadd.s32 %s474, 1
      %s476 = scalar_select %p473, %s474, %s475
      %p479 = pneg %p473
      %p480 = scmp.eq.s32.totalorder %s32, 1
      %p481 = por %p479, %p480
      %p482 = scmp.ne.s32.totalorder %s474, %s477
      %p483 = scmp.eq.s32.totalorder %s32, 0
      %p484 = por %p482, %p483
      %p485 = scmp.ne.s32.totalorder %s474, %s477
      %p486 = scmp.eq.s32.totalorder %s37, 1
      %p487 = por %p485, %p486
      %p488 = scmp.ne.s32.totalorder %s477, %s478
      %p489 = scmp.eq.s32.totalorder %s37, 0
      %p490 = por %p488, %p489
      %p491 = scmp.ne.s32.totalorder %s477, %s478
      %p492 = scmp.eq.s32.totalorder %s38, 1
      %p493 = por %p491, %p492
      %p495 = scmp.ne.s32.totalorder %s478, %s494
      %p496 = scmp.eq.s32.totalorder %s38, 0
      %p497 = por %p495, %p496
      %p498 = scmp.le.s32.totalorder 1, %s32
      %p499 = scmp.lt.s32.totalorder %s32, 3
      %p500 = pnand %p498, %p499
      %p501 = pneg %p500
      // Predicated region
      $region9: #{tpu_custom_call.1} parent=5 // pred_check
        _
      $region10: #{tpu_custom_call.1} parent=5 // pred_check_branch
        %503 = sbr.rel (%p500) target = $region12
      $region11: #{tpu_custom_call.1} parent=5 // pred_region
        %s504 = ssub.s32 %s32, 1
        // Predicated region
        $region13: #{tpu_custom_call.1} parent=11 // pred_check
          %p505 = pneg %p98
        $region14: #{tpu_custom_call.1} parent=11 // pred_check_branch
          %507 = sbr.rel (%p505) target = $region16
        $region15: #{tpu_custom_call.1} parent=11 // pred_region
          %p508 = scmp.lt.s32.totalorder %s41, 1
          %s509 = scalar_select %p508, %s41, 1
          %s510 = smul.addr %s509, 8
          %s511 = scalar_lea.vmem %s1, %s510
        $region16: #{tpu_custom_call.1} parent=11 // pred_fallthru
          _
        // Predicated region
        $region17: #{tpu_custom_call.1} parent=11 // pred_check
          %p512 = pneg %p119
        $region18: #{tpu_custom_call.1} parent=11 // pred_check_branch
          %514 = sbr.rel (%p512) target = $region20
        $region19: #{tpu_custom_call.1} parent=11 // pred_region
          _
        $region20: #{tpu_custom_call.1} parent=11 // pred_fallthru
          _
        // Predicated region
        $region21: #{tpu_custom_call.1} parent=11 // pred_check
          %p515 = pneg %p140
        $region22: #{tpu_custom_call.1} parent=11 // pred_check_branch
          %517 = sbr.rel (%p515) target = $region24
        $region23: #{tpu_custom_call.1} parent=11 // pred_region
          _
        $region24: #{tpu_custom_call.1} parent=11 // pred_fallthru
          _
        // Predicated region
        $region25: #{tpu_custom_call.1} parent=11 // pred_check
          %p518 = pneg %p161
        $region26: #{tpu_custom_call.1} parent=11 // pred_check_branch
          %520 = sbr.rel (%p518) target = $region28
        $region27: #{tpu_custom_call.1} parent=11 // pred_region
          _
        $region28: #{tpu_custom_call.1} parent=11 // pred_fallthru
          _
        // Predicated region
        $region29: #{tpu_custom_call.1} parent=11 // pred_check
          %p521 = pneg %p182
        $region30: #{tpu_custom_call.1} parent=11 // pred_check_branch
          %523 = sbr.rel (%p521) target = $region32
        $region31: #{tpu_custom_call.1} parent=11 // pred_region
          _
        $region32: #{tpu_custom_call.1} parent=11 // pred_fallthru
          _
        // Predicated region
        $region33: #{tpu_custom_call.1} parent=11 // pred_check
          %p524 = pneg %p203
        $region34: #{tpu_custom_call.1} parent=11 // pred_check_branch
          %526 = sbr.rel (%p524) target = $region36
        $region35: #{tpu_custom_call.1} parent=11 // pred_region
          _
        $region36: #{tpu_custom_call.1} parent=11 // pred_fallthru
          _
        // Predicated region
        $region37: #{tpu_custom_call.1} parent=11 // pred_check
          %p527 = pneg %p224
        $region38: #{tpu_custom_call.1} parent=11 // pred_check_branch
          %529 = sbr.rel (%p527) target = $region40
        $region39: #{tpu_custom_call.1} parent=11 // pred_region
          _
        $region40: #{tpu_custom_call.1} parent=11 // pred_fallthru
          _
        // Predicated region
        $region41: #{tpu_custom_call.1} parent=11 // pred_check
          %p530 = pneg %p245
        $region42: #{tpu_custom_call.1} parent=11 // pred_check_branch
          %532 = sbr.rel (%p530) target = $region44
        $region43: #{tpu_custom_call.1} parent=11 // pred_region
          _
        $region44: #{tpu_custom_call.1} parent=11 // pred_fallthru
          _
        // Predicated region
        $region45: #{tpu_custom_call.1} parent=11 // pred_check
          %p533 = pneg %p266
        $region46: #{tpu_custom_call.1} parent=11 // pred_check_branch
          %535 = sbr.rel (%p533) target = $region48
        $region47: #{tpu_custom_call.1} parent=11 // pred_region
          _
        $region48: #{tpu_custom_call.1} parent=11 // pred_fallthru
          _
        // Predicated region
        $region49: #{tpu_custom_call.1} parent=11 // pred_check
          %p536 = pneg %p287
        $region50: #{tpu_custom_call.1} parent=11 // pred_check_branch
          %538 = sbr.rel (%p536) target = $region52
        $region51: #{tpu_custom_call.1} parent=11 // pred_region
          _
        $region52: #{tpu_custom_call.1} parent=11 // pred_fallthru
          _
        // Predicated region
        $region53: #{tpu_custom_call.1} parent=11 // pred_check
          %p539 = pneg %p308
        $region54: #{tpu_custom_call.1} parent=11 // pred_check_branch
          %541 = sbr.rel (%p539) target = $region56
        $region55: #{tpu_custom_call.1} parent=11 // pred_region
          _
        $region56: #{tpu_custom_call.1} parent=11 // pred_fallthru
          _
        // Predicated region
        $region57: #{tpu_custom_call.1} parent=11 // pred_check
          %p542 = pneg %p329
        $region58: #{tpu_custom_call.1} parent=11 // pred_check_branch
          %544 = sbr.rel (%p542) target = $region60
        $region59: #{tpu_custom_call.1} parent=11 // pred_region
          _
        $region60: #{tpu_custom_call.1} parent=11 // pred_fallthru
          _
        // Predicated region
        $region61: #{tpu_custom_call.1} parent=11 // pred_check
          %p545 = pneg %p350
        $region62: #{tpu_custom_call.1} parent=11 // pred_check_branch
          %547 = sbr.rel (%p545) target = $region64
        $region63: #{tpu_custom_call.1} parent=11 // pred_region
          _
        $region64: #{tpu_custom_call.1} parent=11 // pred_fallthru
          _
        // Predicated region
        $region65: #{tpu_custom_call.1} parent=11 // pred_check
          %p548 = pneg %p371
        $region66: #{tpu_custom_call.1} parent=11 // pred_check_branch
          %550 = sbr.rel (%p548) target = $region68
        $region67: #{tpu_custom_call.1} parent=11 // pred_region
          _
        $region68: #{tpu_custom_call.1} parent=11 // pred_fallthru
          _
        // Predicated region
        $region69: #{tpu_custom_call.1} parent=11 // pred_check
          %p551 = pneg %p392
        $region70: #{tpu_custom_call.1} parent=11 // pred_check_branch
          %553 = sbr.rel (%p551) target = $region72
        $region71: #{tpu_custom_call.1} parent=11 // pred_region
          _
        $region72: #{tpu_custom_call.1} parent=11 // pred_fallthru
          _
        // Predicated region
        $region73: #{tpu_custom_call.1} parent=11 // pred_check
          %p554 = pneg %p413
        $region74: #{tpu_custom_call.1} parent=11 // pred_check_branch
          %556 = sbr.rel (%p554) target = $region76
        $region75: #{tpu_custom_call.1} parent=11 // pred_region
          _
        $region76: #{tpu_custom_call.1} parent=11 // pred_fallthru
          _
        // Predicated region
        $region77: #{tpu_custom_call.1} parent=11 // pred_check
          %p557 = pneg %p434
        $region78: #{tpu_custom_call.1} parent=11 // pred_check_branch
          %559 = sbr.rel (%p557) target = $region80
        $region79: #{tpu_custom_call.1} parent=11 // pred_region
          _
        $region80: #{tpu_custom_call.1} parent=11 // pred_fallthru
          _
      $region12: #{tpu_custom_call.1} parent=5 // pred_fallthru
        _
      %p560 = scmp.lt.s32.totalorder %s32, 2
      // Predicated region
      $region81: #{tpu_custom_call.1} parent=5 // pred_check
        %p561 = pneg %p560
      $region82: #{tpu_custom_call.1} parent=5 // pred_check_branch
        %563 = sbr.rel (%p561) target = $region84
      $region83: #{tpu_custom_call.1} parent=5 // pred_region
        // Predicated region
        $region85: #{tpu_custom_call.1} parent=83 // pred_check
          %p564 = pneg %p66
        $region86: #{tpu_custom_call.1} parent=83 // pred_check_branch
          %566 = sbr.rel (%p564) target = $region88
        $region87: #{tpu_custom_call.1} parent=83 // pred_region
          %p567 = scmp.lt.s32.totalorder %s39, 1
          %s568 = scalar_select %p567, %s39, 1
          %p569 = scmp.lt.s32.totalorder %s40, 0
          %s570 = scalar_select %p569, %s40, 0
          %s571 = sadd.s32 %s570, %s568
          %s572 = smul.addr %s571, 8
          %s573 = scalar_lea.vmem %s0, %s572
        $region88: #{tpu_custom_call.1} parent=83 // pred_fallthru
          _
      $region84: #{tpu_custom_call.1} parent=5 // pred_fallthru
        _
      %p574 = scmp.le.s32.totalorder 1, %s32
      %p575 = scmp.lt.s32.totalorder %s32, 3
      %p576 = pnand %p574, %p575
      %p577 = pneg %p576
      // Predicated region
      $region89: #{tpu_custom_call.1} parent=5 // pred_check
        _
      $region90: #{tpu_custom_call.1} parent=5 // pred_check_branch
        %579 = sbr.rel (%p576) target = $region92
      $region91: #{tpu_custom_call.1} parent=5 // pred_region
        %s580 = ssub.s32 %s32, 1
        %p581 = scmp.lt.s32.totalorder %s41, 1
        %s582 = scalar_select %p581, %s41, 1
        %p583 = scmp.lt.s32.totalorder %s42, 0
        %s584 = scalar_select %p583, %s42, 0
        %s585 = sadd.s32 %s584, %s582
        %s586 = smul.addr %s585, 8
        %s587 = scalar_lea.vmem %s0, %s586
        %p588 = pneg %p72
        %p589 = pneg %p69
        %p590 = scmp.lt.s32.totalorder %s41, 1
        %s591 = scalar_select %p590, %s41, 1
        %s592 = smul.addr %s591, 8
        %s593 = scalar_lea.vmem %s1, %s592
        %p594 = pneg %p98
        %p595 = pneg %p95
        %p596 = pneg %p119
        %p597 = pneg %p116
        %p598 = pneg %p140
        %p599 = pneg %p137
        %p600 = pneg %p161
        %p601 = pneg %p158
        %p602 = pneg %p182
        %p603 = pneg %p179
        %p604 = pneg %p203
        %p605 = pneg %p200
        %p606 = pneg %p224
        %p607 = pneg %p221
        %p608 = pneg %p245
        %p609 = pneg %p242
        %p610 = pneg %p266
        %p611 = pneg %p263
        %p612 = pneg %p287
        %p613 = pneg %p284
        %p614 = pneg %p308
        %p615 = pneg %p305
        %p616 = pneg %p329
        %p617 = pneg %p326
        %p618 = pneg %p350
        %p619 = pneg %p347
        %p620 = pneg %p371
        %p621 = pneg %p368
        %p622 = pneg %p392
        %p623 = pneg %p389
        %p624 = pneg %p413
        %p625 = pneg %p410
        %p626 = pneg %p434
        %p627 = pneg %p431
        %p628 = pneg %p462
        %p629 = pneg %p459
        %s630 = sand.u32 %s449, 1
        %s631 = scalar_lea.sflag [#allocation6], %s630
        %s632 = sand.u32 %s449, 1
        %s633 = smul.addr %s632, 8
        %s634 = scalar_lea.vmem [#allocation5], %s633
        %p635 = pneg %p490
        %p636 = pneg %p487
        %s637 = sand.u32 %s477, 1
        %s638 = scalar_lea.sflag [#allocation8], %s637
        %s639 = sand.u32 %s477, 1
        %s640 = smul.addr %s639, 32
        %s641 = scalar_lea.vmem [#allocation7], %s640
        %p642 = scmp.lt.s32.totalorder %s41, 1
        %s643 = scalar_select %p642, %s41, 1
        %p644 = scmp.lt.s32.totalorder %s42, 0
        %s645 = scalar_select %p644, %s42, 0
        %s646 = sadd.s32 %s645, %s643
        %s647 = smul.addr %s646, 8
        %s648 = scalar_lea.vmem %s0, %s647
        %p649 = scmp.lt.s32.totalorder %s41, 1
        %s650 = scalar_select %p649, %s41, 1
        %s651 = smul.addr %s650, 8
        %s652 = scalar_lea.vmem %s1, %s651
        %p653 = scmp.eq.s32.totalorder %s42, 0
        // Predicated region
        $region93: #{tpu_custom_call.1} parent=91 // pred_check
          %p654 = pneg %p653
        $region94: #{tpu_custom_call.1} parent=91 // pred_check_branch
          %656 = sbr.rel (%p654) target = $region96
        $region95: #{tpu_custom_call.1} parent=91 // pred_region
          %v657 = vld [vmem:[%s652] sm:$0xff]
          %v658 = vld [vmem:[%s4] sm:$0xff]
          %v659 = vld [vmem:[%s4 + $0x8] sm:$0xff]
          %v660 = vld [vmem:[%s4 + $0x10] sm:$0xff]
          %v661 = vld [vmem:[%s4 + $0x18] sm:$0xff]
          %v662 = vld [vmem:[%s5] sm:$0x1]
          %v664 = vperm.slane %v662, 0
          %vm666 = vcmask 261120
          %v668 = vsel %vm666, %v657, 0
          %670 = vmatpush.msra.mxu0 0.0
          %671 = vmatpush.msra.mxu0 0.0
          %672 = vmatpush.msra.mxu0 0.0
          %673 = vmatpush.msra.mxu0 0.0
          %674 = vmatpush.msra.mxu0 0.0
          %675 = vmatpush.msra.mxu0 0.0
          %676 = vmatpush.msra.mxu0 0.0
          %677 = vmatpush.msra.mxu0 0.0
          %678 = vmatpush.msra.mxu0 0.0
          %679 = vmatpush.msra.mxu0 0.0
          %680 = vmatpush.msra.mxu0 0.0
          %681 = vmatpush.msra.mxu0 0.0
          %682 = vmatpush.msra.mxu0 %v661
          %683 = vmatpush.msra.mxu0 %v660
          %684 = vmatpush.msra.mxu0 %v659
          %685 = vmatpush.msra.mxu0 %v658
          %686 = vmatmul.f32.gmra.mxu0 %v668
          %v687 = vpop.f32.mrf.mxu0
          %v688 = vadd.f32 %v664, %v687
          %689 = vdwg.mxu0
          %vm690 = vcmask 64512
          %691 = vst.msk [vmem:[#allocation3] sm:$0xff] %vm690, %v688
          %v692 = vld [vmem:[%s6] sm:$0xff]
          %v693 = vld [vmem:[%s6 + $0x8] sm:$0xff]
          %v694 = vld [vmem:[%s6 + $0x10] sm:$0xff]
          %v695 = vld [vmem:[%s6 + $0x18] sm:$0xff]
          %v696 = vld [vmem:[%s7] sm:$0x1]
          %v698 = vperm.slane %v696, 0
          %700 = vmatpush.msra.mxu0 0.0
          %701 = vmatpush.msra.mxu0 0.0
          %702 = vmatpush.msra.mxu0 0.0
          %703 = vmatpush.msra.mxu0 0.0
          %704 = vmatpush.msra.mxu0 0.0
          %705 = vmatpush.msra.mxu0 0.0
          %706 = vmatpush.msra.mxu0 0.0
          %707 = vmatpush.msra.mxu0 0.0
          %708 = vmatpush.msra.mxu0 0.0
          %709 = vmatpush.msra.mxu0 0.0
          %710 = vmatpush.msra.mxu0 0.0
          %711 = vmatpush.msra.mxu0 0.0
          %712 = vmatpush.msra.mxu0 %v695
          %713 = vmatpush.msra.mxu0 %v694
          %714 = vmatpush.msra.mxu0 %v693
          %715 = vmatpush.msra.mxu0 %v692
          %716 = vmatmul.f32.gmra.mxu0 %v668
          %v717 = vpop.f32.mrf.mxu0
          %v718 = vadd.f32 %v698, %v717
          %719 = vdwg.mxu0
          %720 = vst.msk [vmem:[#allocation4] sm:$0xff] %vm690, %v718
          %s721 = scalar_lea.vmem %s4, 32
          %v722 = vld [vmem:[%s721] sm:$0xff]
          %v723 = vld [vmem:[%s721 + $0x8] sm:$0xff]
          %v724 = vld [vmem:[%s721 + $0x10] sm:$0xff]
          %v725 = vld [vmem:[%s721 + $0x18] sm:$0xff]
          %s726 = scalar_lea.vmem %s5, 1
          %v727 = vld [vmem:[%s726] sm:$0x1]
          %v729 = vperm.slane %v727, 0
          %731 = vmatpush.msra.mxu0 0.0
          %732 = vmatpush.msra.mxu0 0.0
          %733 = vmatpush.msra.mxu0 0.0
          %734 = vmatpush.msra.mxu0 0.0
          %735 = vmatpush.msra.mxu0 0.0
          %736 = vmatpush.msra.mxu0 0.0
          %737 = vmatpush.msra.mxu0 0.0
          %738 = vmatpush.msra.mxu0 0.0
          %739 = vmatpush.msra.mxu0 0.0
          %740 = vmatpush.msra.mxu0 0.0
          %741 = vmatpush.msra.mxu0 0.0
          %742 = vmatpush.msra.mxu0 0.0
          %743 = vmatpush.msra.mxu0 %v725
          %744 = vmatpush.msra.mxu0 %v724
          %745 = vmatpush.msra.mxu0 %v723
          %746 = vmatpush.msra.mxu0 %v722
          %747 = vmatmul.f32.gmra.mxu0 %v668
          %v748 = vpop.f32.mrf.mxu0
          %v749 = vadd.f32 %v729, %v748
          %750 = vdwg.mxu0
          %s751 = scalar_lea.vmem [#allocation3], 8
          %752 = vst.msk [vmem:[%s751] sm:$0xff] %vm690, %v749
          %s753 = scalar_lea.vmem %s6, 32
          %v754 = vld [vmem:[%s753] sm:$0xff]
          %v755 = vld [vmem:[%s753 + $0x8] sm:$0xff]
          %v756 = vld [vmem:[%s753 + $0x10] sm:$0xff]
          %v757 = vld [vmem:[%s753 + $0x18] sm:$0xff]
          %s758 = scalar_lea.vmem %s7, 1
          %v759 = vld [vmem:[%s758] sm:$0x1]
          %v761 = vperm.slane %v759, 0
          %763 = vmatpush.msra.mxu0 0.0
          %764 = vmatpush.msra.mxu0 0.0
          %765 = vmatpush.msra.mxu0 0.0
          %766 = vmatpush.msra.mxu0 0.0
          %767 = vmatpush.msra.mxu0 0.0
          %768 = vmatpush.msra.mxu0 0.0
          %769 = vmatpush.msra.mxu0 0.0
          %770 = vmatpush.msra.mxu0 0.0
          %771 = vmatpush.msra.mxu0 0.0
          %772 = vmatpush.msra.mxu0 0.0
          %773 = vmatpush.msra.mxu0 0.0
          %774 = vmatpush.msra.mxu0 0.0
          %775 = vmatpush.msra.mxu0 %v757
          %776 = vmatpush.msra.mxu0 %v756
          %777 = vmatpush.msra.mxu0 %v755
          %778 = vmatpush.msra.mxu0 %v754
          %779 = vmatmul.f32.gmra.mxu0 %v668
          %v780 = vpop.f32.mrf.mxu0
          %v781 = vadd.f32 %v761, %v780
          %782 = vdwg.mxu0
          %s783 = scalar_lea.vmem [#allocation4], 8
          %784 = vst.msk [vmem:[%s783] sm:$0xff] %vm690, %v781
          %s785 = scalar_lea.vmem %s4, 64
          %v786 = vld [vmem:[%s785] sm:$0xff]
          %v787 = vld [vmem:[%s785 + $0x8] sm:$0xff]
          %v788 = vld [vmem:[%s785 + $0x10] sm:$0xff]
          %v789 = vld [vmem:[%s785 + $0x18] sm:$0xff]
          %s790 = scalar_lea.vmem %s5, 2
          %v791 = vld [vmem:[%s790] sm:$0x1]
          %v793 = vperm.slane %v791, 0
          %795 = vmatpush.msra.mxu0 0.0
          %796 = vmatpush.msra.mxu0 0.0
          %797 = vmatpush.msra.mxu0 0.0
          %798 = vmatpush.msra.mxu0 0.0
          %799 = vmatpush.msra.mxu0 0.0
          %800 = vmatpush.msra.mxu0 0.0
          %801 = vmatpush.msra.mxu0 0.0
          %802 = vmatpush.msra.mxu0 0.0
          %803 = vmatpush.msra.mxu0 0.0
          %804 = vmatpush.msra.mxu0 0.0
          %805 = vmatpush.msra.mxu0 0.0
          %806 = vmatpush.msra.mxu0 0.0
          %807 = vmatpush.msra.mxu0 %v789
          %808 = vmatpush.msra.mxu0 %v788
          %809 = vmatpush.msra.mxu0 %v787
          %810 = vmatpush.msra.mxu0 %v786
          %811 = vmatmul.f32.gmra.mxu0 %v668
          %v812 = vpop.f32.mrf.mxu0
          %v813 = vadd.f32 %v793, %v812
          %814 = vdwg.mxu0
          %s815 = scalar_lea.vmem [#allocation3], 16
          %816 = vst.msk [vmem:[%s815] sm:$0xff] %vm690, %v813
          %s817 = scalar_lea.vmem %s6, 64
          %v818 = vld [vmem:[%s817] sm:$0xff]
          %v819 = vld [vmem:[%s817 + $0x8] sm:$0xff]
          %v820 = vld [vmem:[%s817 + $0x10] sm:$0xff]
          %v821 = vld [vmem:[%s817 + $0x18] sm:$0xff]
          %s822 = scalar_lea.vmem %s7, 2
          %v823 = vld [vmem:[%s822] sm:$0x1]
          %v825 = vperm.slane %v823, 0
          %827 = vmatpush.msra.mxu0 0.0
          %828 = vmatpush.msra.mxu0 0.0
          %829 = vmatpush.msra.mxu0 0.0
          %830 = vmatpush.msra.mxu0 0.0
          %831 = vmatpush.msra.mxu0 0.0
          %832 = vmatpush.msra.mxu0 0.0
          %833 = vmatpush.msra.mxu0 0.0
          %834 = vmatpush.msra.mxu0 0.0
          %835 = vmatpush.msra.mxu0 0.0
          %836 = vmatpush.msra.mxu0 0.0
          %837 = vmatpush.msra.mxu0 0.0
          %838 = vmatpush.msra.mxu0 0.0
          %839 = vmatpush.msra.mxu0 %v821
          %840 = vmatpush.msra.mxu0 %v820
          %841 = vmatpush.msra.mxu0 %v819
          %842 = vmatpush.msra.mxu0 %v818
          %843 = vmatmul.f32.gmra.mxu0 %v668
          %v844 = vpop.f32.mrf.mxu0
          %v845 = vadd.f32 %v825, %v844
          %846 = vdwg.mxu0
          %s847 = scalar_lea.vmem [#allocation4], 16
          %848 = vst.msk [vmem:[%s847] sm:$0xff] %vm690, %v845
          %s849 = scalar_lea.vmem %s4, 96
          %v850 = vld [vmem:[%s849] sm:$0xff]
          %v851 = vld [vmem:[%s849 + $0x8] sm:$0xff]
          %v852 = vld [vmem:[%s849 + $0x10] sm:$0xff]
          %v853 = vld [vmem:[%s849 + $0x18] sm:$0xff]
          %s854 = scalar_lea.vmem %s5, 3
          %v855 = vld [vmem:[%s854] sm:$0x1]
          %v857 = vperm.slane %v855, 0
          %859 = vmatpush.msra.mxu0 0.0
          %860 = vmatpush.msra.mxu0 0.0
          %861 = vmatpush.msra.mxu0 0.0
          %862 = vmatpush.msra.mxu0 0.0
          %863 = vmatpush.msra.mxu0 0.0
          %864 = vmatpush.msra.mxu0 0.0
          %865 = vmatpush.msra.mxu0 0.0
          %866 = vmatpush.msra.mxu0 0.0
          %867 = vmatpush.msra.mxu0 0.0
          %868 = vmatpush.msra.mxu0 0.0
          %869 = vmatpush.msra.mxu0 0.0
          %870 = vmatpush.msra.mxu0 0.0
          %871 = vmatpush.msra.mxu0 %v853
          %872 = vmatpush.msra.mxu0 %v852
          %873 = vmatpush.msra.mxu0 %v851
          %874 = vmatpush.msra.mxu0 %v850
          %875 = vmatmul.f32.gmra.mxu0 %v668
          %v876 = vpop.f32.mrf.mxu0
          %v877 = vadd.f32 %v857, %v876
          %878 = vdwg.mxu0
          %s879 = scalar_lea.vmem [#allocation3], 24
          %880 = vst.msk [vmem:[%s879] sm:$0xff] %vm690, %v877
          %s881 = scalar_lea.vmem %s6, 96
          %v882 = vld [vmem:[%s881] sm:$0xff]
          %v883 = vld [vmem:[%s881 + $0x8] sm:$0xff]
          %v884 = vld [vmem:[%s881 + $0x10] sm:$0xff]
          %v885 = vld [vmem:[%s881 + $0x18] sm:$0xff]
          %s886 = scalar_lea.vmem %s7, 3
          %v887 = vld [vmem:[%s886] sm:$0x1]
          %v889 = vperm.slane %v887, 0
          %891 = vmatpush.msra.mxu0 0.0
          %892 = vmatpush.msra.mxu0 0.0
          %893 = vmatpush.msra.mxu0 0.0
          %894 = vmatpush.msra.mxu0 0.0
          %895 = vmatpush.msra.mxu0 0.0
          %896 = vmatpush.msra.mxu0 0.0
          %897 = vmatpush.msra.mxu0 0.0
          %898 = vmatpush.msra.mxu0 0.0
          %899 = vmatpush.msra.mxu0 0.0
          %900 = vmatpush.msra.mxu0 0.0
          %901 = vmatpush.msra.mxu0 0.0
          %902 = vmatpush.msra.mxu0 0.0
          %903 = vmatpush.msra.mxu0 %v885
          %904 = vmatpush.msra.mxu0 %v884
          %905 = vmatpush.msra.mxu0 %v883
          %906 = vmatpush.msra.mxu0 %v882
          %907 = vmatmul.f32.gmra.mxu0 %v668
          %v908 = vpop.f32.mrf.mxu0
          %v909 = vadd.f32 %v889, %v908
          %910 = vdwg.mxu0
          %s911 = scalar_lea.vmem [#allocation4], 24
          %912 = vst.msk [vmem:[%s911] sm:$0xff] %vm690, %v909
        $region96: #{tpu_custom_call.1} parent=91 // pred_fallthru
          _
        %v913 = vld [vmem:[%s648] sm:$0xff]
        %v914 = vld [vmem:[%s10] sm:$0x1]
        %v915 = vld [vmem:[%s11] sm:$0x1]
        %vm916 = vcmask 261120
        %v917 = vsel %vm916, %v913, 0.0
        %918 = vadd.xlane.f32.xlu0 %v917
        %v919 = vpop.xlane.xlu0 %918
        %v920 = vrcp.pop 32.0
        %v921 = vmul.f32 32.0, %v920
        %v922 = vsub.f32 1.0, %v921
        %v923 = vmul.f32 %v920, %v922
        %v924 = vadd.f32 %v920, %v923
        %vm925 = vweird.f32 %v920
        %v926 = vsel %vm925, %v920, %v924
        %v927 = vmul.f32 %v919, %v926
        %v928 = vsub.f32 %v913, %v927
        %v929 = vmul.f32 %v928, %v928
        %v930 = vsel %vm916, %v929, 0.0
        %931 = vadd.xlane.f32.xlu0 %v930
        %v932 = vpop.xlane.xlu0 %931
        %v933 = vmul.f32 %v932, 0.032258064
        %v934 = vrsqrt.pop %v933
        %v935 = vmul.f32 %v934, %v933
        %v936 = vmul.f32 %v935, %v934
        %v937 = vmul.f32 0.5, %v936
        %v938 = vsub.f32 1.5, %v937
        %v939 = vmul.f32 %v934, %v938
        %v940 = vmul.f32 %v933, %v939
        %vm941 = vcmp.eq.f32.partialorder %v933, inf
        %v942 = vsel %vm941, %v933, %v940
        %vm943 = vcmp.eq.f32.partialorder %v933, 0.0
        %v944 = vand.u32 %v933, 2147483648
        %v945 = vsel %vm943, %v944, %v942
        %v946 = vadd.f32 %v945, 1e-06
        %v947 = vrcp.pop %v946
        %v948 = vmul.f32 %v946, %v947
        %v949 = vsub.f32 1.0, %v948
        %v950 = vmul.f32 %v947, %v949
        %v951 = vadd.f32 %v947, %v950
        %vm952 = vweird.f32 %v946
        %vm953 = vweird.f32 %v947
        %vm954 = vmor %vm952, %vm953
        %v955 = vsel %vm954, %v947, %v951
        %v956 = vand.u32 2147483647, %v946
        %vm957 = vcmp.eq.f32.partialorder %v956, 8.507059e+37
        %v958 = vand.u32 %v946, 2147483648
        %v959 = vor.u32 1.1754944e-38, %v958
        %v960 = vsel %vm957, %v959, %v955
        %v961 = vmul.f32 %v928, %v960
        %v963 = vperm.slane %v914, 0
        %v965 = vmul.f32 %v961, %v963
        %v967 = vperm.slane %v915, 0
        %v969 = vadd.f32 %v965, %v967
        %v970 = vld [vmem:[%s2] sm:$0xff]
        %v971 = vld [vmem:[%s2 + $0x8] sm:$0xff]
        %v972 = vld [vmem:[%s2 + $0x10] sm:$0xff]
        %v973 = vld [vmem:[%s2 + $0x18] sm:$0xff]
        %v974 = vld [vmem:[%s3] sm:$0x1]
        %v976 = vperm.slane %v974, 0
        %v979 = vsel %vm916, %v969, 0
        %981 = vmatpush.msra.mxu0 0.0
        %982 = vmatpush.msra.mxu0 0.0
        %983 = vmatpush.msra.mxu0 0.0
        %984 = vmatpush.msra.mxu0 0.0
        %985 = vmatpush.msra.mxu0 0.0
        %986 = vmatpush.msra.mxu0 0.0
        %987 = vmatpush.msra.mxu0 0.0
        %988 = vmatpush.msra.mxu0 0.0
        %989 = vmatpush.msra.mxu0 0.0
        %990 = vmatpush.msra.mxu0 0.0
        %991 = vmatpush.msra.mxu0 0.0
        %992 = vmatpush.msra.mxu0 0.0
        %993 = vmatpush.msra.mxu0 %v973
        %994 = vmatpush.msra.mxu0 %v972
        %995 = vmatpush.msra.mxu0 %v971
        %996 = vmatpush.msra.mxu0 %v970
        %997 = vmatmul.f32.gmra.mxu0 %v979
        %v998 = vpop.f32.mrf.mxu0
        %v999 = vadd.f32 %v976, %v998
        %1000 = vdwg.mxu0
        %v1001 = vmul.f32 %v999, 0.35355338
        %vm1002 = vcmask 64512
        %1003 = vst.msk [vmem:[#allocation2] sm:$0xff] %vm1002, %v1001
        %s1004 = scalar_lea.vmem %s2, 32
        %v1005 = vld [vmem:[%s1004] sm:$0xff]
        %v1006 = vld [vmem:[%s1004 + $0x8] sm:$0xff]
        %v1007 = vld [vmem:[%s1004 + $0x10] sm:$0xff]
        %v1008 = vld [vmem:[%s1004 + $0x18] sm:$0xff]
        %s1009 = scalar_lea.vmem %s3, 1
        %v1010 = vld [vmem:[%s1009] sm:$0x1]
        %v1012 = vperm.slane %v1010, 0
        %1014 = vmatpush.msra.mxu0 0.0
        %1015 = vmatpush.msra.mxu0 0.0
        %1016 = vmatpush.msra.mxu0 0.0
        %1017 = vmatpush.msra.mxu0 0.0
        %1018 = vmatpush.msra.mxu0 0.0
        %1019 = vmatpush.msra.mxu0 0.0
        %1020 = vmatpush.msra.mxu0 0.0
        %1021 = vmatpush.msra.mxu0 0.0
        %1022 = vmatpush.msra.mxu0 0.0
        %1023 = vmatpush.msra.mxu0 0.0
        %1024 = vmatpush.msra.mxu0 0.0
        %1025 = vmatpush.msra.mxu0 0.0
        %1026 = vmatpush.msra.mxu0 %v1008
        %1027 = vmatpush.msra.mxu0 %v1007
        %1028 = vmatpush.msra.mxu0 %v1006
        %1029 = vmatpush.msra.mxu0 %v1005
        %1030 = vmatmul.f32.gmra.mxu0 %v979
        %v1031 = vpop.f32.mrf.mxu0
        %v1032 = vadd.f32 %v1012, %v1031
        %1033 = vdwg.mxu0
        %v1034 = vmul.f32 %v1032, 0.35355338
        %s1035 = scalar_lea.vmem [#allocation2], 8
        %1036 = vst.msk [vmem:[%s1035] sm:$0xff] %vm1002, %v1034
        %s1037 = scalar_lea.vmem %s2, 64
        %v1038 = vld [vmem:[%s1037] sm:$0xff]
        %v1039 = vld [vmem:[%s1037 + $0x8] sm:$0xff]
        %v1040 = vld [vmem:[%s1037 + $0x10] sm:$0xff]
        %v1041 = vld [vmem:[%s1037 + $0x18] sm:$0xff]
        %s1042 = scalar_lea.vmem %s3, 2
        %v1043 = vld [vmem:[%s1042] sm:$0x1]
        %v1045 = vperm.slane %v1043, 0
        %1047 = vmatpush.msra.mxu0 0.0
        %1048 = vmatpush.msra.mxu0 0.0
        %1049 = vmatpush.msra.mxu0 0.0
        %1050 = vmatpush.msra.mxu0 0.0
        %1051 = vmatpush.msra.mxu0 0.0
        %1052 = vmatpush.msra.mxu0 0.0
        %1053 = vmatpush.msra.mxu0 0.0
        %1054 = vmatpush.msra.mxu0 0.0
        %1055 = vmatpush.msra.mxu0 0.0
        %1056 = vmatpush.msra.mxu0 0.0
        %1057 = vmatpush.msra.mxu0 0.0
        %1058 = vmatpush.msra.mxu0 0.0
        %1059 = vmatpush.msra.mxu0 %v1041
        %1060 = vmatpush.msra.mxu0 %v1040
        %1061 = vmatpush.msra.mxu0 %v1039
        %1062 = vmatpush.msra.mxu0 %v1038
        %1063 = vmatmul.f32.gmra.mxu0 %v979
        %v1064 = vpop.f32.mrf.mxu0
        %v1065 = vadd.f32 %v1045, %v1064
        %1066 = vdwg.mxu0
        %v1067 = vmul.f32 %v1065, 0.35355338
        %s1068 = scalar_lea.vmem [#allocation2], 16
        %1069 = vst.msk [vmem:[%s1068] sm:$0xff] %vm1002, %v1067
        %s1070 = scalar_lea.vmem %s2, 96
        %v1071 = vld [vmem:[%s1070] sm:$0xff]
        %v1072 = vld [vmem:[%s1070 + $0x8] sm:$0xff]
        %v1073 = vld [vmem:[%s1070 + $0x10] sm:$0xff]
        %v1074 = vld [vmem:[%s1070 + $0x18] sm:$0xff]
        %s1075 = scalar_lea.vmem %s3, 3
        %v1076 = vld [vmem:[%s1075] sm:$0x1]
        %v1078 = vperm.slane %v1076, 0
        %1080 = vmatpush.msra.mxu0 0.0
        %1081 = vmatpush.msra.mxu0 0.0
        %1082 = vmatpush.msra.mxu0 0.0
        %1083 = vmatpush.msra.mxu0 0.0
        %1084 = vmatpush.msra.mxu0 0.0
        %1085 = vmatpush.msra.mxu0 0.0
        %1086 = vmatpush.msra.mxu0 0.0
        %1087 = vmatpush.msra.mxu0 0.0
        %1088 = vmatpush.msra.mxu0 0.0
        %1089 = vmatpush.msra.mxu0 0.0
        %1090 = vmatpush.msra.mxu0 0.0
        %1091 = vmatpush.msra.mxu0 0.0
        %1092 = vmatpush.msra.mxu0 %v1074
        %1093 = vmatpush.msra.mxu0 %v1073
        %1094 = vmatpush.msra.mxu0 %v1072
        %1095 = vmatpush.msra.mxu0 %v1071
        %1096 = vmatmul.f32.gmra.mxu0 %v979
        %v1097 = vpop.f32.mrf.mxu0
        %v1098 = vadd.f32 %v1078, %v1097
        %1099 = vdwg.mxu0
        %v1100 = vmul.f32 %v1098, 0.35355338
        %s1101 = scalar_lea.vmem [#allocation2], 24
        %1102 = vst.msk [vmem:[%s1101] sm:$0xff] %vm1002, %v1100
        %v1103 = vld [vmem:[#allocation2] sm:$0xff]
        %v1104 = vld [vmem:[#allocation2 + $0x8] sm:$0xff]
        %v1105 = vld [vmem:[#allocation2 + $0x10] sm:$0xff]
        %v1106 = vld [vmem:[#allocation2 + $0x18] sm:$0xff]
        %v1107 = vld [vmem:[#allocation3] sm:$0xff]
        %v1108 = vld [vmem:[#allocation3 + $0x8] sm:$0xff]
        %v1109 = vld [vmem:[#allocation3 + $0x10] sm:$0xff]
        %v1110 = vld [vmem:[#allocation3 + $0x18] sm:$0xff]
        %v1111 = vld [vmem:[#allocation4] sm:$0xff]
        %v1112 = vld [vmem:[#allocation4 + $0x8] sm:$0xff]
        %v1113 = vld [vmem:[#allocation4 + $0x10] sm:$0xff]
        %v1114 = vld [vmem:[#allocation4 + $0x18] sm:$0xff]
        %v1116 = vsel %vm1002, %v1103, 0
        %v1119 = vsel %vm1002, %v1107, 0
        %1121 = vmatpush.xpose.msra.mxu0 0.0
        %1122 = vmatpush.xpose.msra.mxu0 0.0
        %1123 = vmatpush.xpose.msra.mxu0 0.0
        %1124 = vmatpush.xpose.msra.mxu0 0.0
        %1125 = vmatpush.xpose.msra.mxu0 0.0
        %1126 = vmatpush.xpose.msra.mxu0 0.0
        %1127 = vmatpush.xpose.msra.mxu0 0.0
        %1128 = vmatpush.xpose.msra.mxu0 0.0
        %1129 = vmatpush.xpose.msra.mxu0 0.0
        %1130 = vmatpush.xpose.msra.mxu0 0.0
        %1131 = vmatpush.xpose.msra.mxu0 0.0
        %1132 = vmatpush.xpose.msra.mxu0 0.0
        %1133 = vmatpush.xpose.msra.mxu0 0.0
        %1134 = vmatpush.xpose.msra.mxu0 0.0
        %1135 = vmatpush.xpose.msra.mxu0 0.0
        %1136 = vmatpush.xpose.msra.mxu0 %v1119
        %1137 = vmatmul.f32.gmra.mxu0 %v1116
        %v1138 = vpop.f32.mrf.mxu0
        %v1139 = vadd.f32 0.0, %v1138
        %1140 = vdwg.mxu0
        %v1142 = vsel %vm1002, %v1104, 0
        %v1145 = vsel %vm1002, %v1108, 0
        %1147 = vmatpush.xpose.msra.mxu0 0.0
        %1148 = vmatpush.xpose.msra.mxu0 0.0
        %1149 = vmatpush.xpose.msra.mxu0 0.0
        %1150 = vmatpush.xpose.msra.mxu0 0.0
        %1151 = vmatpush.xpose.msra.mxu0 0.0
        %1152 = vmatpush.xpose.msra.mxu0 0.0
        %1153 = vmatpush.xpose.msra.mxu0 0.0
        %1154 = vmatpush.xpose.msra.mxu0 0.0
        %1155 = vmatpush.xpose.msra.mxu0 0.0
        %1156 = vmatpush.xpose.msra.mxu0 0.0
        %1157 = vmatpush.xpose.msra.mxu0 0.0
        %1158 = vmatpush.xpose.msra.mxu0 0.0
        %1159 = vmatpush.xpose.msra.mxu0 0.0
        %1160 = vmatpush.xpose.msra.mxu0 0.0
        %1161 = vmatpush.xpose.msra.mxu0 0.0
        %1162 = vmatpush.xpose.msra.mxu0 %v1145
        %1163 = vmatmul.f32.gmra.mxu0 %v1142
        %v1164 = vpop.f32.mrf.mxu0
        %v1165 = vadd.f32 0.0, %v1164
        %1166 = vdwg.mxu0
        %v1168 = vsel %vm1002, %v1105, 0
        %v1171 = vsel %vm1002, %v1109, 0
        %1173 = vmatpush.xpose.msra.mxu0 0.0
        %1174 = vmatpush.xpose.msra.mxu0 0.0
        %1175 = vmatpush.xpose.msra.mxu0 0.0
        %1176 = vmatpush.xpose.msra.mxu0 0.0
        %1177 = vmatpush.xpose.msra.mxu0 0.0
        %1178 = vmatpush.xpose.msra.mxu0 0.0
        %1179 = vmatpush.xpose.msra.mxu0 0.0
        %1180 = vmatpush.xpose.msra.mxu0 0.0
        %1181 = vmatpush.xpose.msra.mxu0 0.0
        %1182 = vmatpush.xpose.msra.mxu0 0.0
        %1183 = vmatpush.xpose.msra.mxu0 0.0
        %1184 = vmatpush.xpose.msra.mxu0 0.0
        %1185 = vmatpush.xpose.msra.mxu0 0.0
        %1186 = vmatpush.xpose.msra.mxu0 0.0
        %1187 = vmatpush.xpose.msra.mxu0 0.0
        %1188 = vmatpush.xpose.msra.mxu0 %v1171
        %1189 = vmatmul.f32.gmra.mxu0 %v1168
        %v1190 = vpop.f32.mrf.mxu0
        %v1191 = vadd.f32 0.0, %v1190
        %1192 = vdwg.mxu0
        %v1194 = vsel %vm1002, %v1106, 0
        %v1197 = vsel %vm1002, %v1110, 0
        %1199 = vmatpush.xpose.msra.mxu0 0.0
        %1200 = vmatpush.xpose.msra.mxu0 0.0
        %1201 = vmatpush.xpose.msra.mxu0 0.0
        %1202 = vmatpush.xpose.msra.mxu0 0.0
        %1203 = vmatpush.xpose.msra.mxu0 0.0
        %1204 = vmatpush.xpose.msra.mxu0 0.0
        %1205 = vmatpush.xpose.msra.mxu0 0.0
        %1206 = vmatpush.xpose.msra.mxu0 0.0
        %1207 = vmatpush.xpose.msra.mxu0 0.0
        %1208 = vmatpush.xpose.msra.mxu0 0.0
        %1209 = vmatpush.xpose.msra.mxu0 0.0
        %1210 = vmatpush.xpose.msra.mxu0 0.0
        %1211 = vmatpush.xpose.msra.mxu0 0.0
        %1212 = vmatpush.xpose.msra.mxu0 0.0
        %1213 = vmatpush.xpose.msra.mxu0 0.0
        %1214 = vmatpush.xpose.msra.mxu0 %v1197
        %1215 = vmatmul.f32.gmra.mxu0 %v1194
        %v1216 = vpop.f32.mrf.mxu0
        %v1217 = vadd.f32 0.0, %v1216
        %1218 = vdwg.mxu0
        %v1219 = vsel %vm1002, %v1139, -inf
        %1220 = vmax.xlane.f32.xlu0 %v1219
        %v1221 = vpop.xlane.xlu0 %1220
        %v1222 = vsel %vm1002, %v1165, -inf
        %1223 = vmax.xlane.f32.xlu0 %v1222
        %v1224 = vpop.xlane.xlu0 %1223
        %v1225 = vsel %vm1002, %v1191, -inf
        %1226 = vmax.xlane.f32.xlu0 %v1225
        %v1227 = vpop.xlane.xlu0 %1226
        %v1228 = vsel %vm1002, %v1217, -inf
        %1229 = vmax.xlane.f32.xlu0 %v1228
        %v1230 = vpop.xlane.xlu0 %1229
        %v1231 = vsub.f32 %v1139, %v1221
        %v1232 = vsub.f32 %v1165, %v1224
        %v1233 = vsub.f32 %v1191, %v1227
        %v1234 = vsub.f32 %v1217, %v1230
        %v1235 = vmul.f32 %v1231, 1.442695
        %v1236 = vpow.pop %v1235
        %v1237 = vmul.f32 %v1232, 1.442695
        %v1238 = vpow.pop %v1237
        %v1239 = vmul.f32 %v1233, 1.442695
        %v1240 = vpow.pop %v1239
        %v1241 = vmul.f32 %v1234, 1.442695
        %v1242 = vpow.pop %v1241
        %v1243 = vsel %vm1002, %v1236, 0.0
        %1244 = vadd.xlane.f32.xlu0 %v1243
        %v1245 = vpop.xlane.xlu0 %1244
        %v1246 = vsel %vm1002, %v1238, 0.0
        %1247 = vadd.xlane.f32.xlu0 %v1246
        %v1248 = vpop.xlane.xlu0 %1247
        %v1249 = vsel %vm1002, %v1240, 0.0
        %1250 = vadd.xlane.f32.xlu0 %v1249
        %v1251 = vpop.xlane.xlu0 %1250
        %v1252 = vsel %vm1002, %v1242, 0.0
        %1253 = vadd.xlane.f32.xlu0 %v1252
        %v1254 = vpop.xlane.xlu0 %1253
        %v1255 = vrcp.pop %v1245
        %v1256 = vrcp.pop %v1248
        %v1257 = vrcp.pop %v1251
        %v1258 = vrcp.pop %v1254
        %v1259 = vmul.f32 %v1236, %v1255
        %v1260 = vmul.f32 %v1238, %v1256
        %v1261 = vmul.f32 %v1240, %v1257
        %v1262 = vmul.f32 %v1242, %v1258
        %1263 = vst.msk [vmem:[%s641] sm:$0xff] %vm1002, %v1259
        %1264 = vst.msk [vmem:[%s641 + $0x8] sm:$0xff] %vm1002, %v1260
        %1265 = vst.msk [vmem:[%s641 + $0x10] sm:$0xff] %vm1002, %v1261
        %1266 = vst.msk [vmem:[%s641 + $0x18] sm:$0xff] %vm1002, %v1262
        %v1268 = vsel %vm1002, %v1259, 0
        %1270 = vmatpush.msra.mxu0 0.0
        %1271 = vmatpush.msra.mxu0 0.0
        %1272 = vmatpush.msra.mxu0 0.0
        %1273 = vmatpush.msra.mxu0 0.0
        %1274 = vmatpush.msra.mxu0 0.0
        %1275 = vmatpush.msra.mxu0 0.0
        %1276 = vmatpush.msra.mxu0 0.0
        %1277 = vmatpush.msra.mxu0 0.0
        %1278 = vmatpush.msra.mxu0 0.0
        %1279 = vmatpush.msra.mxu0 0.0
        %1280 = vmatpush.msra.mxu0 0.0
        %1281 = vmatpush.msra.mxu0 0.0
        %1282 = vmatpush.msra.mxu0 0.0
        %1283 = vmatpush.msra.mxu0 0.0
        %1284 = vmatpush.msra.mxu0 0.0
        %1285 = vmatpush.msra.mxu0 %v1111
        %1286 = vmatmul.f32.gmra.mxu0 %v1268
        %v1287 = vpop.f32.mrf.mxu0
        %v1288 = vadd.f32 0.0, %v1287
        %1289 = vdwg.mxu0
        %v1291 = vsel %vm1002, %v1260, 0
        %1293 = vmatpush.msra.mxu0 0.0
        %1294 = vmatpush.msra.mxu0 0.0
        %1295 = vmatpush.msra.mxu0 0.0
        %1296 = vmatpush.msra.mxu0 0.0
        %1297 = vmatpush.msra.mxu0 0.0
        %1298 = vmatpush.msra.mxu0 0.0
        %1299 = vmatpush.msra.mxu0 0.0
        %1300 = vmatpush.msra.mxu0 0.0
        %1301 = vmatpush.msra.mxu0 0.0
        %1302 = vmatpush.msra.mxu0 0.0
        %1303 = vmatpush.msra.mxu0 0.0
        %1304 = vmatpush.msra.mxu0 0.0
        %1305 = vmatpush.msra.mxu0 0.0
        %1306 = vmatpush.msra.mxu0 0.0
        %1307 = vmatpush.msra.mxu0 0.0
        %1308 = vmatpush.msra.mxu0 %v1112
        %1309 = vmatmul.f32.gmra.mxu0 %v1291
        %v1310 = vpop.f32.mrf.mxu0
        %v1311 = vadd.f32 0.0, %v1310
        %1312 = vdwg.mxu0
        %v1314 = vsel %vm1002, %v1261, 0
        %1316 = vmatpush.msra.mxu0 0.0
        %1317 = vmatpush.msra.mxu0 0.0
        %1318 = vmatpush.msra.mxu0 0.0
        %1319 = vmatpush.msra.mxu0 0.0
        %1320 = vmatpush.msra.mxu0 0.0
        %1321 = vmatpush.msra.mxu0 0.0
        %1322 = vmatpush.msra.mxu0 0.0
        %1323 = vmatpush.msra.mxu0 0.0
        %1324 = vmatpush.msra.mxu0 0.0
        %1325 = vmatpush.msra.mxu0 0.0
        %1326 = vmatpush.msra.mxu0 0.0
        %1327 = vmatpush.msra.mxu0 0.0
        %1328 = vmatpush.msra.mxu0 0.0
        %1329 = vmatpush.msra.mxu0 0.0
        %1330 = vmatpush.msra.mxu0 0.0
        %1331 = vmatpush.msra.mxu0 %v1113
        %1332 = vmatmul.f32.gmra.mxu0 %v1314
        %v1333 = vpop.f32.mrf.mxu0
        %v1334 = vadd.f32 0.0, %v1333
        %1335 = vdwg.mxu0
        %v1337 = vsel %vm1002, %v1262, 0
        %1339 = vmatpush.msra.mxu0 0.0
        %1340 = vmatpush.msra.mxu0 0.0
        %1341 = vmatpush.msra.mxu0 0.0
        %1342 = vmatpush.msra.mxu0 0.0
        %1343 = vmatpush.msra.mxu0 0.0
        %1344 = vmatpush.msra.mxu0 0.0
        %1345 = vmatpush.msra.mxu0 0.0
        %1346 = vmatpush.msra.mxu0 0.0
        %1347 = vmatpush.msra.mxu0 0.0
        %1348 = vmatpush.msra.mxu0 0.0
        %1349 = vmatpush.msra.mxu0 0.0
        %1350 = vmatpush.msra.mxu0 0.0
        %1351 = vmatpush.msra.mxu0 0.0
        %1352 = vmatpush.msra.mxu0 0.0
        %1353 = vmatpush.msra.mxu0 0.0
        %1354 = vmatpush.msra.mxu0 %v1114
        %1355 = vmatmul.f32.gmra.mxu0 %v1337
        %v1356 = vpop.f32.mrf.mxu0
        %v1357 = vadd.f32 0.0, %v1356
        %1358 = vdwg.mxu0
        %v1359 = vld [vmem:[%s8] sm:$0xff]
        %v1360 = vld [vmem:[%s8 + $0x8] sm:$0xff]
        %v1361 = vld [vmem:[%s8 + $0x10] sm:$0xff]
        %v1362 = vld [vmem:[%s8 + $0x18] sm:$0xff]
        %v1364 = vsel %vm1002, %v1288, 0
        %1366 = vmatpush.msra.mxu0 0.0
        %1367 = vmatpush.msra.mxu0 0.0
        %1368 = vmatpush.msra.mxu0 0.0
        %1369 = vmatpush.msra.mxu0 0.0
        %1370 = vmatpush.msra.mxu0 0.0
        %1371 = vmatpush.msra.mxu0 0.0
        %1372 = vmatpush.msra.mxu0 0.0
        %1373 = vmatpush.msra.mxu0 0.0
        %1374 = vmatpush.msra.mxu0 0.0
        %1375 = vmatpush.msra.mxu0 0.0
        %1376 = vmatpush.msra.mxu0 0.0
        %1377 = vmatpush.msra.mxu0 0.0
        %1378 = vmatpush.msra.mxu0 0.0
        %1379 = vmatpush.msra.mxu0 0.0
        %1380 = vmatpush.msra.mxu0 0.0
        %1381 = vmatpush.msra.mxu0 %v1359
        %1382 = vmatmul.f32.gmra.mxu0 %v1364
        %v1383 = vpop.f32.mrf.mxu0
        %v1384 = vadd.f32 0.0, %v1383
        %1385 = vdwg.mxu0
        %v1387 = vsel %vm1002, %v1311, 0
        %1389 = vmatpush.msra.mxu0 0.0
        %1390 = vmatpush.msra.mxu0 0.0
        %1391 = vmatpush.msra.mxu0 0.0
        %1392 = vmatpush.msra.mxu0 0.0
        %1393 = vmatpush.msra.mxu0 0.0
        %1394 = vmatpush.msra.mxu0 0.0
        %1395 = vmatpush.msra.mxu0 0.0
        %1396 = vmatpush.msra.mxu0 0.0
        %1397 = vmatpush.msra.mxu0 0.0
        %1398 = vmatpush.msra.mxu0 0.0
        %1399 = vmatpush.msra.mxu0 0.0
        %1400 = vmatpush.msra.mxu0 0.0
        %1401 = vmatpush.msra.mxu0 0.0
        %1402 = vmatpush.msra.mxu0 0.0
        %1403 = vmatpush.msra.mxu0 0.0
        %1404 = vmatpush.msra.mxu0 %v1360
        %1405 = vmatmul.f32.gmra.mxu0 %v1387
        %v1406 = vpop.f32.mrf.mxu0
        %v1407 = vadd.f32 0.0, %v1406
        %1408 = vdwg.mxu0
        %v1410 = vsel %vm1002, %v1334, 0
        %1412 = vmatpush.msra.mxu0 0.0
        %1413 = vmatpush.msra.mxu0 0.0
        %1414 = vmatpush.msra.mxu0 0.0
        %1415 = vmatpush.msra.mxu0 0.0
        %1416 = vmatpush.msra.mxu0 0.0
        %1417 = vmatpush.msra.mxu0 0.0
        %1418 = vmatpush.msra.mxu0 0.0
        %1419 = vmatpush.msra.mxu0 0.0
        %1420 = vmatpush.msra.mxu0 0.0
        %1421 = vmatpush.msra.mxu0 0.0
        %1422 = vmatpush.msra.mxu0 0.0
        %1423 = vmatpush.msra.mxu0 0.0
        %1424 = vmatpush.msra.mxu0 0.0
        %1425 = vmatpush.msra.mxu0 0.0
        %1426 = vmatpush.msra.mxu0 0.0
        %1427 = vmatpush.msra.mxu0 %v1361
        %1428 = vmatmul.f32.gmra.mxu0 %v1410
        %v1429 = vpop.f32.mrf.mxu0
        %v1430 = vadd.f32 0.0, %v1429
        %1431 = vdwg.mxu0
        %v1433 = vsel %vm1002, %v1357, 0
        %1435 = vmatpush.msra.mxu0 0.0
        %1436 = vmatpush.msra.mxu0 0.0
        %1437 = vmatpush.msra.mxu0 0.0
        %1438 = vmatpush.msra.mxu0 0.0
        %1439 = vmatpush.msra.mxu0 0.0
        %1440 = vmatpush.msra.mxu0 0.0
        %1441 = vmatpush.msra.mxu0 0.0
        %1442 = vmatpush.msra.mxu0 0.0
        %1443 = vmatpush.msra.mxu0 0.0
        %1444 = vmatpush.msra.mxu0 0.0
        %1445 = vmatpush.msra.mxu0 0.0
        %1446 = vmatpush.msra.mxu0 0.0
        %1447 = vmatpush.msra.mxu0 0.0
        %1448 = vmatpush.msra.mxu0 0.0
        %1449 = vmatpush.msra.mxu0 0.0
        %1450 = vmatpush.msra.mxu0 %v1362
        %1451 = vmatmul.f32.gmra.mxu0 %v1433
        %v1452 = vpop.f32.mrf.mxu0
        %v1453 = vadd.f32 0.0, %v1452
        %1454 = vdwg.mxu0
        %v1455 = vsel %vm916, %v1384, 0.0
        %v1456 = vsel %vm916, %v1407, 0.0
        %v1457 = vadd.f32 %v1455, %v1456
        %v1458 = vsel %vm916, %v1430, 0.0
        %v1459 = vadd.f32 %v1457, %v1458
        %v1460 = vsel %vm916, %v1453, 0.0
        %v1461 = vadd.f32 %v1459, %v1460
        %v1462 = vld [vmem:[%s9] sm:$0x1]
        %v1464 = vperm.slane %v1462, 0
        %v1466 = vadd.f32 %v1461, %v1464
        %v1467 = vadd.f32 %v913, %v1466
        %v1468 = vld [vmem:[%s16] sm:$0x1]
        %v1469 = vld [vmem:[%s17] sm:$0x1]
        %v1470 = vsel %vm916, %v1467, 0.0
        %1471 = vadd.xlane.f32.xlu0 %v1470
        %v1472 = vpop.xlane.xlu0 %1471
        %v1473 = vmul.f32 %v1472, %v926
        %v1474 = vsub.f32 %v1467, %v1473
        %v1475 = vmul.f32 %v1474, %v1474
        %v1476 = vsel %vm916, %v1475, 0.0
        %1477 = vadd.xlane.f32.xlu0 %v1476
        %v1478 = vpop.xlane.xlu0 %1477
        %v1479 = vmul.f32 %v1478, 0.032258064
        %v1480 = vrsqrt.pop %v1479
        %v1481 = vmul.f32 %v1480, %v1479
        %v1482 = vmul.f32 %v1481, %v1480
        %v1483 = vmul.f32 0.5, %v1482
        %v1484 = vsub.f32 1.5, %v1483
        %v1485 = vmul.f32 %v1480, %v1484
        %v1486 = vmul.f32 %v1479, %v1485
        %vm1487 = vcmp.eq.f32.partialorder %v1479, inf
        %v1488 = vsel %vm1487, %v1479, %v1486
        %vm1489 = vcmp.eq.f32.partialorder %v1479, 0.0
        %v1490 = vand.u32 %v1479, 2147483648
        %v1491 = vsel %vm1489, %v1490, %v1488
        %v1492 = vadd.f32 %v1491, 1e-06
        %v1493 = vrcp.pop %v1492
        %v1494 = vmul.f32 %v1492, %v1493
        %v1495 = vsub.f32 1.0, %v1494
        %v1496 = vmul.f32 %v1493, %v1495
        %v1497 = vadd.f32 %v1493, %v1496
        %vm1498 = vweird.f32 %v1492
        %vm1499 = vweird.f32 %v1493
        %vm1500 = vmor %vm1498, %vm1499
        %v1501 = vsel %vm1500, %v1493, %v1497
        %v1502 = vand.u32 2147483647, %v1492
        %vm1503 = vcmp.eq.f32.partialorder %v1502, 8.507059e+37
        %v1504 = vand.u32 %v1492, 2147483648
        %v1505 = vor.u32 1.1754944e-38, %v1504
        %v1506 = vsel %vm1503, %v1505, %v1501
        %v1507 = vmul.f32 %v1474, %v1506
        %v1509 = vperm.slane %v1468, 0
        %v1511 = vmul.f32 %v1507, %v1509
        %v1513 = vperm.slane %v1469, 0
        %v1515 = vadd.f32 %v1511, %v1513
        %v1516 = vld [vmem:[%s12] sm:$0xff]
        %v1517 = vld [vmem:[%s12 + $0x8] sm:$0xff]
        %v1518 = vld [vmem:[%s12 + $0x10] sm:$0xff]
        %v1519 = vld [vmem:[%s12 + $0x18] sm:$0xff]
        %v1520 = vld [vmem:[%s13] sm:$0x1]
        %v1522 = vperm.slane %v1520, 0
        %v1525 = vsel %vm916, %v1515, 0
        %1527 = vmatpush.msra.mxu0 0.0
        %1528 = vmatpush.msra.mxu0 0.0
        %1529 = vmatpush.msra.mxu0 0.0
        %1530 = vmatpush.msra.mxu0 0.0
        %1531 = vmatpush.msra.mxu0 0.0
        %1532 = vmatpush.msra.mxu0 0.0
        %1533 = vmatpush.msra.mxu0 0.0
        %1534 = vmatpush.msra.mxu0 0.0
        %1535 = vmatpush.msra.mxu0 0.0
        %1536 = vmatpush.msra.mxu0 0.0
        %1537 = vmatpush.msra.mxu0 0.0
        %1538 = vmatpush.msra.mxu0 0.0
        %1539 = vmatpush.msra.mxu0 %v1519
        %1540 = vmatpush.msra.mxu0 %v1518
        %1541 = vmatpush.msra.mxu0 %v1517
        %1542 = vmatpush.msra.mxu0 %v1516
        %1543 = vmatmul.f32.gmra.mxu0 %v1525
        %v1544 = vpop.f32.mrf.mxu0
        %v1545 = vadd.f32 %v1522, %v1544
        %1546 = vdwg.mxu0
        %v1547 = vmax.f32 %v1545, 0.0
        %v1548 = vld [vmem:[%s14] sm:$0xff]
        %v1549 = vld [vmem:[%s14 + $0x8] sm:$0xff]
        %v1550 = vld [vmem:[%s14 + $0x10] sm:$0xff]
        %v1551 = vld [vmem:[%s14 + $0x18] sm:$0xff]
        %v1552 = vld [vmem:[%s14 + $0x20] sm:$0xff]
        %v1553 = vld [vmem:[%s14 + $0x28] sm:$0xff]
        %v1554 = vld [vmem:[%s14 + $0x30] sm:$0xff]
        %v1555 = vld [vmem:[%s14 + $0x38] sm:$0xff]
        %v1556 = vld [vmem:[%s15] sm:$0x1]
        %v1558 = vperm.slane %v1556, 0
        %vm1560 = vcmask 523264
        %v1562 = vsel %vm1560, %v1547, 0
        %1564 = vmatpush.msra.mxu0 0.0
        %1565 = vmatpush.msra.mxu0 0.0
        %1566 = vmatpush.msra.mxu0 0.0
        %1567 = vmatpush.msra.mxu0 0.0
        %1568 = vmatpush.msra.mxu0 0.0
        %1569 = vmatpush.msra.mxu0 0.0
        %1570 = vmatpush.msra.mxu0 0.0
        %1571 = vmatpush.msra.mxu0 0.0
        %1572 = vmatpush.msra.mxu0 %v1555
        %1573 = vmatpush.msra.mxu0 %v1554
        %1574 = vmatpush.msra.mxu0 %v1553
        %1575 = vmatpush.msra.mxu0 %v1552
        %1576 = vmatpush.msra.mxu0 %v1551
        %1577 = vmatpush.msra.mxu0 %v1550
        %1578 = vmatpush.msra.mxu0 %v1549
        %1579 = vmatpush.msra.mxu0 %v1548
        %1580 = vmatmul.f32.gmra.mxu0 %v1562
        %v1581 = vpop.f32.mrf.mxu0
        %v1582 = vadd.f32 %v1558, %v1581
        %1583 = vdwg.mxu0
        %v1584 = vadd.f32 %v1467, %v1582
        %1585 = vst.msk [vmem:[%s634] sm:$0xff] %vm916, %v1584
        %s1586 = sand.u32 %s449, 1
        %s1587 = scalar_lea.sflag [#allocation6], %s1586
        %s1588 = sand.u32 %s449, 1
        %s1589 = smul.addr %s1588, 8
        %s1590 = scalar_lea.vmem [#allocation5], %s1589
        %s1591 = sand.u32 %s477, 1
        %s1592 = scalar_lea.sflag [#allocation8], %s1591
        %s1593 = sand.u32 %s477, 1
        %s1594 = smul.addr %s1593, 32
        %s1595 = scalar_lea.vmem [#allocation7], %s1594
        // Predicated region
        $region97: #{tpu_custom_call.1} parent=91 // pred_check
          %p1596 = pneg %p459
        $region98: #{tpu_custom_call.1} parent=91 // pred_check_branch
          %1598 = sbr.rel (%p1596) target = $region100
        $region99: #{tpu_custom_call.1} parent=91 // pred_region
          %1600 = vsyncadd %s1587, 0
          %s1601 = sadd.s32 %s42, %s41
          %s1602 = smul.addr %s1601, 8
          %s1603 = scalar_lea.hbm %s18, %s1602
          %s1605 = sshll.u32 %s1590, 4
          %s1606 = int_to_ptr.vmem [resolvable:$true] %s1605
          %s1607 = sshll.u32 %s1603, 4
          %s1608 = int_to_ptr.hbm [resolvable:$true] %s1607
          %1610 = dma.vmem_to_hbm [thread:$0]  %s1606, 128, %s1608, %s1587
        $region100: #{tpu_custom_call.1} parent=91 // pred_fallthru
          _
        // Predicated region
        $region101: #{tpu_custom_call.1} parent=91 // pred_check
          %p1611 = pneg %p487
        $region102: #{tpu_custom_call.1} parent=91 // pred_check_branch
          %1613 = sbr.rel (%p1611) target = $region104
        $region103: #{tpu_custom_call.1} parent=91 // pred_region
          %1615 = vsyncadd %s1592, 0
          %s1616 = smul.addr %s41, 4
          %s1617 = sadd.s32 %s42, %s1616
          %s1618 = smul.addr %s1617, 8
          %s1619 = scalar_lea.hbm %s19, %s1618
          %s1620 = sshll.u32 %s1595, 4
          %s1621 = int_to_ptr.vmem [resolvable:$true] %s1620
          %s1622 = sshll.u32 %s1619, 4
          %s1623 = int_to_ptr.hbm [resolvable:$true] %s1622
          %1628 = dma.vmem_to_hbm [thread:$0]  %s1621, 512, %s1623, %s1592, 128, 128, 8
        $region104: #{tpu_custom_call.1} parent=91 // pred_fallthru
          _
      $region92: #{tpu_custom_call.1} parent=5 // pred_fallthru
        _
      %p1629 = scmp.le.s32.totalorder 2, %s32
      // Predicated region
      $region105: #{tpu_custom_call.1} parent=5 // pred_check
        %p1630 = pneg %p1629
      $region106: #{tpu_custom_call.1} parent=5 // pred_check_branch
        %1632 = sbr.rel (%p1630) target = $region108
      $region107: #{tpu_custom_call.1} parent=5 // pred_region
        %s1633 = ssub.s32 %s32, 2
        // Predicated region
        $region109: #{tpu_custom_call.1} parent=107 // pred_check
          %p1634 = pneg %p465
        $region110: #{tpu_custom_call.1} parent=107 // pred_check_branch
          %1636 = sbr.rel (%p1634) target = $region112
        $region111: #{tpu_custom_call.1} parent=107 // pred_region
          %s1637 = sand.u32 %s450, 1
          %s1638 = scalar_lea.sflag [#allocation6], %s1637
          %s1639 = sand.u32 %s450, 1
          %s1640 = smul.addr %s1639, 8
          %s1641 = scalar_lea.vmem [#allocation5], %s1640
          %1643 = dma.done %s1638, 128
        $region112: #{tpu_custom_call.1} parent=107 // pred_fallthru
          _
        // Predicated region
        $region113: #{tpu_custom_call.1} parent=107 // pred_check
          %p1644 = pneg %p493
        $region114: #{tpu_custom_call.1} parent=107 // pred_check_branch
          %1646 = sbr.rel (%p1644) target = $region116
        $region115: #{tpu_custom_call.1} parent=107 // pred_region
          %s1647 = sand.u32 %s478, 1
          %s1648 = scalar_lea.sflag [#allocation8], %s1647
          %s1649 = sand.u32 %s478, 1
          %s1650 = smul.addr %s1649, 32
          %s1651 = scalar_lea.vmem [#allocation7], %s1650
          %1653 = dma.done %s1648, 512
        $region116: #{tpu_custom_call.1} parent=107 // pred_fallthru
          _
      $region108: #{tpu_custom_call.1} parent=5 // pred_fallthru
        _
    $region6: #{tpu_custom_call.1} parent=1 // loop_footer
      %s36 = sadd.s32 1, %s32
    $region7: #{tpu_custom_call.1} parent=1 // loop_footer_branch
      %31 = sbr.rel target = $region3
    $region8: #{tpu_custom_call.1} parent=1 // loop_exit
      _
    %1654 = vsyncpa [#allocation6], 1
    %s1655 = scalar_lea.sflag [#allocation6], 1
    %1656 = vsyncpa %s1655, 1
    %1657 = vsyncpa [#allocation8], 1
    %s1658 = scalar_lea.sflag [#allocation8], 1
    %1659 = vsyncpa %s1658, 1

// kernel: tpu_custom_call.1
$region0: #{tpu_custom_call.1}
  #allocation0 [shape = 'u32[]', space=smem, size = 0x4, offset = 0x4, fixed_abs, tag = 'smem constant byte address 0x4 - core index']
  #allocation1 [shape = 'u32[72,128]{1,0:T(1,128)}', space=vmem, size = 0x9000, scoped, tag = 'internal scratch']
  #allocation2 [shape = 'f32[4,8,8]{2,1,0:T(8,128)}', space=vmem, size = 0x4000, scoped, tag = 'scratch operand']
  #allocation3 [shape = 'f32[4,8,8]{2,1,0:T(8,128)}', space=vmem, size = 0x4000, scoped, tag = 'scratch operand']
  #allocation4 [shape = 'f32[4,8,8]{2,1,0:T(8,128)}', space=vmem, size = 0x4000, scoped, tag = 'scratch operand']
  %s0 = inlined_call_operand.vmem [shape: f32[2,8,32], index: 0, kind: input, shape index: {}]
  %s1 = inlined_call_operand.vmem [shape: f32[2,8,32], index: 1, kind: input, shape index: {}]
  %s2 = inlined_call_operand.vmem [shape: f32[4,32,8], index: 2, kind: input, shape index: {}]
  %s3 = inlined_call_operand.vmem [shape: f32[4,1,8], index: 3, kind: input, shape index: {}]
  %s4 = inlined_call_operand.vmem [shape: f32[4,32,8], index: 4, kind: input, shape index: {}]
  %s5 = inlined_call_operand.vmem [shape: f32[4,1,8], index: 5, kind: input, shape index: {}]
  %s6 = inlined_call_operand.vmem [shape: f32[4,32,8], index: 6, kind: input, shape index: {}]
  %s7 = inlined_call_operand.vmem [shape: f32[4,1,8], index: 7, kind: input, shape index: {}]
  %s8 = inlined_call_operand.vmem [shape: f32[4,8,32], index: 8, kind: input, shape index: {}]
  %s9 = inlined_call_operand.vmem [shape: f32[1,32], index: 9, kind: input, shape index: {}]
  %s10 = inlined_call_operand.vmem [shape: f32[1,32], index: 10, kind: input, shape index: {}]
  %s11 = inlined_call_operand.vmem [shape: f32[1,32], index: 11, kind: input, shape index: {}]
  %s12 = inlined_call_operand.vmem [shape: f32[32,64], index: 12, kind: input, shape index: {}]
  %s13 = inlined_call_operand.vmem [shape: f32[1,64], index: 13, kind: input, shape index: {}]
  %s14 = inlined_call_operand.vmem [shape: f32[64,32], index: 14, kind: input, shape index: {}]
  %s15 = inlined_call_operand.vmem [shape: f32[1,32], index: 15, kind: input, shape index: {}]
  %s16 = inlined_call_operand.vmem [shape: f32[1,32], index: 16, kind: input, shape index: {}]
  %s17 = inlined_call_operand.vmem [shape: f32[1,32], index: 17, kind: input, shape index: {}]
  %s18 = inlined_call_operand.hbm [shape: f32[2,8,32], index: 18, kind: output, shape index: {0}]
  %s19 = inlined_call_operand.hbm [shape: f32[2,4,8,8], index: 19, kind: output, shape index: {1}]
  %20 = xla_tuple %s18, %s19
  %s21 = sld [smem:[#allocation0]]
  $region117: #{tpu_custom_call.1} parent=0
    _
  %s23 = ssub.s32 1, %s21
  %s24 = scalar_select 0, %s23, %s21
  $region1: #{tpu_custom_call.1} parent=0
    #allocation5 [shape = 'u8[8192]{0}', space=vmem, size = 0x2000, scoped, tag = 'output window, operand 0']
    #allocation6 [shape = 's32[2]{0}', space=sflag, size = 0x8, scoped, tag = 'scoped memory for tpu_custom_call.1']
    #allocation7 [shape = 'u8[32768]{0}', space=vmem, size = 0x8000, scoped, tag = 'output window, operand 1']
    #allocation8 [shape = 's32[2]{0}', space=sflag, size = 0x8, scoped, tag = 'scoped memory for tpu_custom_call.1']
    %25 = vsyncpa [#allocation6], 0
    %s26 = scalar_lea.sflag [#allocation6], 1
    %27 = vsyncpa %s26, 0
    %28 = vsyncpa [#allocation8], 0
    %s29 = scalar_lea.sflag [#allocation8], 1
    %30 = vsyncpa %s29, 0
    loop: start=0, step=1, limit=4
    $region2: #{tpu_custom_call.1} parent=1 // loop_pre_header
      _
    $region3: #{tpu_custom_call.1} parent=1 // loop_header
      %s32 = sphi 0, %s36
      %p33 = scmp.ge.s32.totalorder %s32, 4
      %s39 = sphi 0, %s51
      %s40 = sphi 0, %s47
      %s41 = sphi 0, %s39
      %s42 = sphi 0, %s40
      %s43 = sphi 0, %s41
      %s44 = sphi 0, %s42
      %s56 = sphi 0, %s58
      %s59 = sphi 0, %s56
      %s60 = sphi 0, %s59
      %s76 = sphi 0, %s60
      %s82 = sphi 0, %s84
      %s85 = sphi 0, %s82
      %s86 = sphi 0, %s85
      %s102 = sphi 0, %s86
      %s106 = sphi 0, %s106
      %s108 = sphi 0, %s106
      %s109 = sphi 0, %s108
      %s123 = sphi 0, %s109
      %s127 = sphi 0, %s127
      %s129 = sphi 0, %s127
      %s130 = sphi 0, %s129
      %s144 = sphi 0, %s130
      %s148 = sphi 0, %s148
      %s150 = sphi 0, %s148
      %s151 = sphi 0, %s150
      %s165 = sphi 0, %s151
      %s169 = sphi 0, %s169
      %s171 = sphi 0, %s169
      %s172 = sphi 0, %s171
      %s186 = sphi 0, %s172
      %s190 = sphi 0, %s190
      %s192 = sphi 0, %s190
      %s193 = sphi 0, %s192
      %s207 = sphi 0, %s193
      %s211 = sphi 0, %s211
      %s213 = sphi 0, %s211
      %s214 = sphi 0, %s213
      %s228 = sphi 0, %s214
      %s232 = sphi 0, %s232
      %s234 = sphi 0, %s232
      %s235 = sphi 0, %s234
      %s249 = sphi 0, %s235
      %s253 = sphi 0, %s253
      %s255 = sphi 0, %s253
      %s256 = sphi 0, %s255
      %s270 = sphi 0, %s256
      %s274 = sphi 0, %s274
      %s276 = sphi 0, %s274
      %s277 = sphi 0, %s276
      %s291 = sphi 0, %s277
      %s295 = sphi 0, %s295
      %s297 = sphi 0, %s295
      %s298 = sphi 0, %s297
      %s312 = sphi 0, %s298
      %s316 = sphi 0, %s316
      %s318 = sphi 0, %s316
      %s319 = sphi 0, %s318
      %s333 = sphi 0, %s319
      %s337 = sphi 0, %s337
      %s339 = sphi 0, %s337
      %s340 = sphi 0, %s339
      %s354 = sphi 0, %s340
      %s358 = sphi 0, %s358
      %s360 = sphi 0, %s358
      %s361 = sphi 0, %s360
      %s375 = sphi 0, %s361
      %s379 = sphi 0, %s379
      %s381 = sphi 0, %s379
      %s382 = sphi 0, %s381
      %s396 = sphi 0, %s382
      %s400 = sphi 0, %s400
      %s402 = sphi 0, %s400
      %s403 = sphi 0, %s402
      %s417 = sphi 0, %s403
      %s421 = sphi 0, %s421
      %s423 = sphi 0, %s421
      %s424 = sphi 0, %s423
      %s438 = sphi 0, %s424
      %s446 = sphi 0, %s448
      %s449 = sphi 0, %s446
      %s450 = sphi 0, %s449
      %s466 = sphi 0, %s450
      %s474 = sphi 0, %s476
      %s477 = sphi 0, %s474
      %s478 = sphi 0, %s477
      %s494 = sphi 0, %s478
    $region4: #{tpu_custom_call.1} parent=1 // loop_header_branch
      %35 = sbr.rel (%p33) target = $region8
    $region5: #{tpu_custom_call.1} parent=1 // loop_body
      %s37 = ssub.s32 %s32, 1
      %s38 = ssub.s32 %s32, 2
      %s45 = sadd.s32 1, %s40
      %p46 = scmp.ge.s32.totalorder %s45, 1
      %s47 = scalar_select %p46, 0, %s45
      %s48 = sadd.s32 1, %s39
      %s49 = scalar_select %p46, %s48, %s39
      %p50 = scmp.ge.s32.totalorder %s49, 2
      %s51 = scalar_select %p50, 0, %s49
      %s52 = ssub.s32 %s39, %s51
      %s53 = ssub.s32 %s40, %s47
      %s54 = sor.u32 %s52, %s53
      %p55 = scmp.eq.s32.totalorder %s54, 0
      %s57 = sadd.s32 %s56, 1
      %s58 = scalar_select %p55, %s56, %s57
      %p61 = pneg %p55
      %p62 = scmp.eq.s32.totalorder %s32, 1
      %p63 = por %p61, %p62
      %p64 = scmp.ne.s32.totalorder %s56, %s59
      %p65 = scmp.eq.s32.totalorder %s32, 0
      %p66 = por %p64, %p65
      %p67 = scmp.ne.s32.totalorder %s56, %s59
      %p68 = scmp.eq.s32.totalorder %s37, 1
      %p69 = por %p67, %p68
      %p70 = scmp.ne.s32.totalorder %s59, %s60
      %p71 = scmp.eq.s32.totalorder %s37, 0
      %p72 = por %p70, %p71
      %p73 = scmp.ne.s32.totalorder %s59, %s60
      %p74 = scmp.eq.s32.totalorder %s38, 1
      %p75 = por %p73, %p74
      %p77 = scmp.ne.s32.totalorder %s60, %s76
      %p78 = scmp.eq.s32.totalorder %s38, 0
      %p79 = por %p77, %p78
      %s80 = ssub.s32 %s39, %s51
      %p81 = scmp.eq.s32.totalorder %s80, 0
      %s83 = sadd.s32 %s82, 1
      %s84 = scalar_select %p81, %s82, %s83
      %p87 = pneg %p81
      %p88 = scmp.eq.s32.totalorder %s32, 1
      %p89 = por %p87, %p88
      %p90 = scmp.ne.s32.totalorder %s82, %s85
      %p91 = scmp.eq.s32.totalorder %s32, 0
      %p92 = por %p90, %p91
      %p93 = scmp.ne.s32.totalorder %s82, %s85
      %p94 = scmp.eq.s32.totalorder %s37, 1
      %p95 = por %p93, %p94
      %p96 = scmp.ne.s32.totalorder %s85, %s86
      %p97 = scmp.eq.s32.totalorder %s37, 0
      %p98 = por %p96, %p97
      %p99 = scmp.ne.s32.totalorder %s85, %s86
      %p100 = scmp.eq.s32.totalorder %s38, 1
      %p101 = por %p99, %p100
      %p103 = scmp.ne.s32.totalorder %s86, %s102
      %p104 = scmp.eq.s32.totalorder %s38, 0
      %p105 = por %p103, %p104
      %s107 = sadd.s32 %s106, 1
      %p110 = scmp.eq.s32.totalorder %s32, 1
      %p111 = scmp.ne.s32.totalorder %s106, %s108
      %p112 = scmp.eq.s32.totalorder %s32, 0
      %p113 = por %p111, %p112
      %p114 = scmp.ne.s32.totalorder %s106, %s108
      %p115 = scmp.eq.s32.totalorder %s37, 1
      %p116 = por %p114, %p115
      %p117 = scmp.ne.s32.totalorder %s108, %s109
      %p118 = scmp.eq.s32.totalorder %s37, 0
      %p119 = por %p117, %p118
      %p120 = scmp.ne.s32.totalorder %s108, %s109
      %p121 = scmp.eq.s32.totalorder %s38, 1
      %p122 = por %p120, %p121
      %p124 = scmp.ne.s32.totalorder %s109, %s123
      %p125 = scmp.eq.s32.totalorder %s38, 0
      %p126 = por %p124, %p125
      %s128 = sadd.s32 %s127, 1
      %p131 = scmp.eq.s32.totalorder %s32, 1
      %p132 = scmp.ne.s32.totalorder %s127, %s129
      %p133 = scmp.eq.s32.totalorder %s32, 0
      %p134 = por %p132, %p133
      %p135 = scmp.ne.s32.totalorder %s127, %s129
      %p136 = scmp.eq.s32.totalorder %s37, 1
      %p137 = por %p135, %p136
      %p138 = scmp.ne.s32.totalorder %s129, %s130
      %p139 = scmp.eq.s32.totalorder %s37, 0
      %p140 = por %p138, %p139
      %p141 = scmp.ne.s32.totalorder %s129, %s130
      %p142 = scmp.eq.s32.totalorder %s38, 1
      %p143 = por %p141, %p142
      %p145 = scmp.ne.s32.totalorder %s130, %s144
      %p146 = scmp.eq.s32.totalorder %s38, 0
      %p147 = por %p145, %p146
      %s149 = sadd.s32 %s148, 1
      %p152 = scmp.eq.s32.totalorder %s32, 1
      %p153 = scmp.ne.s32.totalorder %s148, %s150
      %p154 = scmp.eq.s32.totalorder %s32, 0
      %p155 = por %p153, %p154
      %p156 = scmp.ne.s32.totalorder %s148, %s150
      %p157 = scmp.eq.s32.totalorder %s37, 1
      %p158 = por %p156, %p157
      %p159 = scmp.ne.s32.totalorder %s150, %s151
      %p160 = scmp.eq.s32.totalorder %s37, 0
      %p161 = por %p159, %p160
      %p162 = scmp.ne.s32.totalorder %s150, %s151
      %p163 = scmp.eq.s32.totalorder %s38, 1
      %p164 = por %p162, %p163
      %p166 = scmp.ne.s32.totalorder %s151, %s165
      %p167 = scmp.eq.s32.totalorder %s38, 0
      %p168 = por %p166, %p167
      %s170 = sadd.s32 %s169, 1
      %p173 = scmp.eq.s32.totalorder %s32, 1
      %p174 = scmp.ne.s32.totalorder %s169, %s171
      %p175 = scmp.eq.s32.totalorder %s32, 0
      %p176 = por %p174, %p175
      %p177 = scmp.ne.s32.totalorder %s169, %s171
      %p178 = scmp.eq.s32.totalorder %s37, 1
      %p179 = por %p177, %p178
      %p180 = scmp.ne.s32.totalorder %s171, %s172
      %p181 = scmp.eq.s32.totalorder %s37, 0
      %p182 = por %p180, %p181
      %p183 = scmp.ne.s32.totalorder %s171, %s172
      %p184 = scmp.eq.s32.totalorder %s38, 1
      %p185 = por %p183, %p184
      %p187 = scmp.ne.s32.totalorder %s172, %s186
      %p188 = scmp.eq.s32.totalorder %s38, 0
      %p189 = por %p187, %p188
      %s191 = sadd.s32 %s190, 1
      %p194 = scmp.eq.s32.totalorder %s32, 1
      %p195 = scmp.ne.s32.totalorder %s190, %s192
      %p196 = scmp.eq.s32.totalorder %s32, 0
      %p197 = por %p195, %p196
      %p198 = scmp.ne.s32.totalorder %s190, %s192
      %p199 = scmp.eq.s32.totalorder %s37, 1
      %p200 = por %p198, %p199
      %p201 = scmp.ne.s32.totalorder %s192, %s193
      %p202 = scmp.eq.s32.totalorder %s37, 0
      %p203 = por %p201, %p202
      %p204 = scmp.ne.s32.totalorder %s192, %s193
      %p205 = scmp.eq.s32.totalorder %s38, 1
      %p206 = por %p204, %p205
      %p208 = scmp.ne.s32.totalorder %s193, %s207
      %p209 = scmp.eq.s32.totalorder %s38, 0
      %p210 = por %p208, %p209
      %s212 = sadd.s32 %s211, 1
      %p215 = scmp.eq.s32.totalorder %s32, 1
      %p216 = scmp.ne.s32.totalorder %s211, %s213
      %p217 = scmp.eq.s32.totalorder %s32, 0
      %p218 = por %p216, %p217
      %p219 = scmp.ne.s32.totalorder %s211, %s213
      %p220 = scmp.eq.s32.totalorder %s37, 1
      %p221 = por %p219, %p220
      %p222 = scmp.ne.s32.totalorder %s213, %s214
      %p223 = scmp.eq.s32.totalorder %s37, 0
      %p224 = por %p222, %p223
      %p225 = scmp.ne.s32.totalorder %s213, %s214
      %p226 = scmp.eq.s32.totalorder %s38, 1
      %p227 = por %p225, %p226
      %p229 = scmp.ne.s32.totalorder %s214, %s228
      %p230 = scmp.eq.s32.totalorder %s38, 0
      %p231 = por %p229, %p230
      %s233 = sadd.s32 %s232, 1
      %p236 = scmp.eq.s32.totalorder %s32, 1
      %p237 = scmp.ne.s32.totalorder %s232, %s234
      %p238 = scmp.eq.s32.totalorder %s32, 0
      %p239 = por %p237, %p238
      %p240 = scmp.ne.s32.totalorder %s232, %s234
      %p241 = scmp.eq.s32.totalorder %s37, 1
      %p242 = por %p240, %p241
      %p243 = scmp.ne.s32.totalorder %s234, %s235
      %p244 = scmp.eq.s32.totalorder %s37, 0
      %p245 = por %p243, %p244
      %p246 = scmp.ne.s32.totalorder %s234, %s235
      %p247 = scmp.eq.s32.totalorder %s38, 1
      %p248 = por %p246, %p247
      %p250 = scmp.ne.s32.totalorder %s235, %s249
      %p251 = scmp.eq.s32.totalorder %s38, 0
      %p252 = por %p250, %p251
      %s254 = sadd.s32 %s253, 1
      %p257 = scmp.eq.s32.totalorder %s32, 1
      %p258 = scmp.ne.s32.totalorder %s253, %s255
      %p259 = scmp.eq.s32.totalorder %s32, 0
      %p260 = por %p258, %p259
      %p261 = scmp.ne.s32.totalorder %s253, %s255
      %p262 = scmp.eq.s32.totalorder %s37, 1
      %p263 = por %p261, %p262
      %p264 = scmp.ne.s32.totalorder %s255, %s256
      %p265 = scmp.eq.s32.totalorder %s37, 0
      %p266 = por %p264, %p265
      %p267 = scmp.ne.s32.totalorder %s255, %s256
      %p268 = scmp.eq.s32.totalorder %s38, 1
      %p269 = por %p267, %p268
      %p271 = scmp.ne.s32.totalorder %s256, %s270
      %p272 = scmp.eq.s32.totalorder %s38, 0
      %p273 = por %p271, %p272
      %s275 = sadd.s32 %s274, 1
      %p278 = scmp.eq.s32.totalorder %s32, 1
      %p279 = scmp.ne.s32.totalorder %s274, %s276
      %p280 = scmp.eq.s32.totalorder %s32, 0
      %p281 = por %p279, %p280
      %p282 = scmp.ne.s32.totalorder %s274, %s276
      %p283 = scmp.eq.s32.totalorder %s37, 1
      %p284 = por %p282, %p283
      %p285 = scmp.ne.s32.totalorder %s276, %s277
      %p286 = scmp.eq.s32.totalorder %s37, 0
      %p287 = por %p285, %p286
      %p288 = scmp.ne.s32.totalorder %s276, %s277
      %p289 = scmp.eq.s32.totalorder %s38, 1
      %p290 = por %p288, %p289
      %p292 = scmp.ne.s32.totalorder %s277, %s291
      %p293 = scmp.eq.s32.totalorder %s38, 0
      %p294 = por %p292, %p293
      %s296 = sadd.s32 %s295, 1
      %p299 = scmp.eq.s32.totalorder %s32, 1
      %p300 = scmp.ne.s32.totalorder %s295, %s297
      %p301 = scmp.eq.s32.totalorder %s32, 0
      %p302 = por %p300, %p301
      %p303 = scmp.ne.s32.totalorder %s295, %s297
      %p304 = scmp.eq.s32.totalorder %s37, 1
      %p305 = por %p303, %p304
      %p306 = scmp.ne.s32.totalorder %s297, %s298
      %p307 = scmp.eq.s32.totalorder %s37, 0
      %p308 = por %p306, %p307
      %p309 = scmp.ne.s32.totalorder %s297, %s298
      %p310 = scmp.eq.s32.totalorder %s38, 1
      %p311 = por %p309, %p310
      %p313 = scmp.ne.s32.totalorder %s298, %s312
      %p314 = scmp.eq.s32.totalorder %s38, 0
      %p315 = por %p313, %p314
      %s317 = sadd.s32 %s316, 1
      %p320 = scmp.eq.s32.totalorder %s32, 1
      %p321 = scmp.ne.s32.totalorder %s316, %s318
      %p322 = scmp.eq.s32.totalorder %s32, 0
      %p323 = por %p321, %p322
      %p324 = scmp.ne.s32.totalorder %s316, %s318
      %p325 = scmp.eq.s32.totalorder %s37, 1
      %p326 = por %p324, %p325
      %p327 = scmp.ne.s32.totalorder %s318, %s319
      %p328 = scmp.eq.s32.totalorder %s37, 0
      %p329 = por %p327, %p328
      %p330 = scmp.ne.s32.totalorder %s318, %s319
      %p331 = scmp.eq.s32.totalorder %s38, 1
      %p332 = por %p330, %p331
      %p334 = scmp.ne.s32.totalorder %s319, %s333
      %p335 = scmp.eq.s32.totalorder %s38, 0
      %p336 = por %p334, %p335
      %s338 = sadd.s32 %s337, 1
      %p341 = scmp.eq.s32.totalorder %s32, 1
      %p342 = scmp.ne.s32.totalorder %s337, %s339
      %p343 = scmp.eq.s32.totalorder %s32, 0
      %p344 = por %p342, %p343
      %p345 = scmp.ne.s32.totalorder %s337, %s339
      %p346 = scmp.eq.s32.totalorder %s37, 1
      %p347 = por %p345, %p346
      %p348 = scmp.ne.s32.totalorder %s339, %s340
      %p349 = scmp.eq.s32.totalorder %s37, 0
      %p350 = por %p348, %p349
      %p351 = scmp.ne.s32.totalorder %s339, %s340
      %p352 = scmp.eq.s32.totalorder %s38, 1
      %p353 = por %p351, %p352
      %p355 = scmp.ne.s32.totalorder %s340, %s354
      %p356 = scmp.eq.s32.totalorder %s38, 0
      %p357 = por %p355, %p356
      %s359 = sadd.s32 %s358, 1
      %p362 = scmp.eq.s32.totalorder %s32, 1
      %p363 = scmp.ne.s32.totalorder %s358, %s360
      %p364 = scmp.eq.s32.totalorder %s32, 0
      %p365 = por %p363, %p364
      %p366 = scmp.ne.s32.totalorder %s358, %s360
      %p367 = scmp.eq.s32.totalorder %s37, 1
      %p368 = por %p366, %p367
      %p369 = scmp.ne.s32.totalorder %s360, %s361
      %p370 = scmp.eq.s32.totalorder %s37, 0
      %p371 = por %p369, %p370
      %p372 = scmp.ne.s32.totalorder %s360, %s361
      %p373 = scmp.eq.s32.totalorder %s38, 1
      %p374 = por %p372, %p373
      %p376 = scmp.ne.s32.totalorder %s361, %s375
      %p377 = scmp.eq.s32.totalorder %s38, 0
      %p378 = por %p376, %p377
      %s380 = sadd.s32 %s379, 1
      %p383 = scmp.eq.s32.totalorder %s32, 1
      %p384 = scmp.ne.s32.totalorder %s379, %s381
      %p385 = scmp.eq.s32.totalorder %s32, 0
      %p386 = por %p384, %p385
      %p387 = scmp.ne.s32.totalorder %s379, %s381
      %p388 = scmp.eq.s32.totalorder %s37, 1
      %p389 = por %p387, %p388
      %p390 = scmp.ne.s32.totalorder %s381, %s382
      %p391 = scmp.eq.s32.totalorder %s37, 0
      %p392 = por %p390, %p391
      %p393 = scmp.ne.s32.totalorder %s381, %s382
      %p394 = scmp.eq.s32.totalorder %s38, 1
      %p395 = por %p393, %p394
      %p397 = scmp.ne.s32.totalorder %s382, %s396
      %p398 = scmp.eq.s32.totalorder %s38, 0
      %p399 = por %p397, %p398
      %s401 = sadd.s32 %s400, 1
      %p404 = scmp.eq.s32.totalorder %s32, 1
      %p405 = scmp.ne.s32.totalorder %s400, %s402
      %p406 = scmp.eq.s32.totalorder %s32, 0
      %p407 = por %p405, %p406
      %p408 = scmp.ne.s32.totalorder %s400, %s402
      %p409 = scmp.eq.s32.totalorder %s37, 1
      %p410 = por %p408, %p409
      %p411 = scmp.ne.s32.totalorder %s402, %s403
      %p412 = scmp.eq.s32.totalorder %s37, 0
      %p413 = por %p411, %p412
      %p414 = scmp.ne.s32.totalorder %s402, %s403
      %p415 = scmp.eq.s32.totalorder %s38, 1
      %p416 = por %p414, %p415
      %p418 = scmp.ne.s32.totalorder %s403, %s417
      %p419 = scmp.eq.s32.totalorder %s38, 0
      %p420 = por %p418, %p419
      %s422 = sadd.s32 %s421, 1
      %p425 = scmp.eq.s32.totalorder %s32, 1
      %p426 = scmp.ne.s32.totalorder %s421, %s423
      %p427 = scmp.eq.s32.totalorder %s32, 0
      %p428 = por %p426, %p427
      %p429 = scmp.ne.s32.totalorder %s421, %s423
      %p430 = scmp.eq.s32.totalorder %s37, 1
      %p431 = por %p429, %p430
      %p432 = scmp.ne.s32.totalorder %s423, %s424
      %p433 = scmp.eq.s32.totalorder %s37, 0
      %p434 = por %p432, %p433
      %p435 = scmp.ne.s32.totalorder %s423, %s424
      %p436 = scmp.eq.s32.totalorder %s38, 1
      %p437 = por %p435, %p436
      %p439 = scmp.ne.s32.totalorder %s424, %s438
      %p440 = scmp.eq.s32.totalorder %s38, 0
      %p441 = por %p439, %p440
      %s442 = ssub.s32 %s39, %s51
      %s443 = ssub.s32 %s40, %s47
      %s444 = sor.u32 %s442, %s443
      %p445 = scmp.eq.s32.totalorder %s444, 0
      %s447 = sadd.s32 %s446, 1
      %s448 = scalar_select %p445, %s446, %s447
      %p451 = pneg %p445
      %p452 = scmp.eq.s32.totalorder %s32, 1
      %p453 = por %p451, %p452
      %p454 = scmp.ne.s32.totalorder %s446, %s449
      %p455 = scmp.eq.s32.totalorder %s32, 0
      %p456 = por %p454, %p455
      %p457 = scmp.ne.s32.totalorder %s446, %s449
      %p458 = scmp.eq.s32.totalorder %s37, 1
      %p459 = por %p457, %p458
      %p460 = scmp.ne.s32.totalorder %s449, %s450
      %p461 = scmp.eq.s32.totalorder %s37, 0
      %p462 = por %p460, %p461
      %p463 = scmp.ne.s32.totalorder %s449, %s450
      %p464 = scmp.eq.s32.totalorder %s38, 1
      %p465 = por %p463, %p464
      %p467 = scmp.ne.s32.totalorder %s450, %s466
      %p468 = scmp.eq.s32.totalorder %s38, 0
      %p469 = por %p467, %p468
      %s470 = ssub.s32 %s39, %s51
      %s471 = ssub.s32 %s40, %s47
      %s472 = sor.u32 %s470, %s471
      %p473 = scmp.eq.s32.totalorder %s472, 0
      %s475 = sadd.s32 %s474, 1
      %s476 = scalar_select %p473, %s474, %s475
      %p479 = pneg %p473
      %p480 = scmp.eq.s32.totalorder %s32, 1
      %p481 = por %p479, %p480
      %p482 = scmp.ne.s32.totalorder %s474, %s477
      %p483 = scmp.eq.s32.totalorder %s32, 0
      %p484 = por %p482, %p483
      %p485 = scmp.ne.s32.totalorder %s474, %s477
      %p486 = scmp.eq.s32.totalorder %s37, 1
      %p487 = por %p485, %p486
      %p488 = scmp.ne.s32.totalorder %s477, %s478
      %p489 = scmp.eq.s32.totalorder %s37, 0
      %p490 = por %p488, %p489
      %p491 = scmp.ne.s32.totalorder %s477, %s478
      %p492 = scmp.eq.s32.totalorder %s38, 1
      %p493 = por %p491, %p492
      %p495 = scmp.ne.s32.totalorder %s478, %s494
      %p496 = scmp.eq.s32.totalorder %s38, 0
      %p497 = por %p495, %p496
      %p498 = scmp.le.s32.totalorder 1, %s32
      %p499 = scmp.lt.s32.totalorder %s32, 3
      %p500 = pnand %p498, %p499
      %p501 = pneg %p500
      // Predicated region
      $region9: #{tpu_custom_call.1} parent=5 // pred_check
        _
      $region10: #{tpu_custom_call.1} parent=5 // pred_check_branch
        %503 = sbr.rel (%p500) target = $region12
      $region11: #{tpu_custom_call.1} parent=5 // pred_region
        %s504 = ssub.s32 %s32, 1
        // Predicated region
        $region13: #{tpu_custom_call.1} parent=11 // pred_check
          %p505 = pneg %p119
        $region14: #{tpu_custom_call.1} parent=11 // pred_check_branch
          %507 = sbr.rel (%p505) target = $region16
        $region15: #{tpu_custom_call.1} parent=11 // pred_region
          _
        $region16: #{tpu_custom_call.1} parent=11 // pred_fallthru
          _
        // Predicated region
        $region17: #{tpu_custom_call.1} parent=11 // pred_check
          %p508 = pneg %p140
        $region18: #{tpu_custom_call.1} parent=11 // pred_check_branch
          %510 = sbr.rel (%p508) target = $region20
        $region19: #{tpu_custom_call.1} parent=11 // pred_region
          _
        $region20: #{tpu_custom_call.1} parent=11 // pred_fallthru
          _
        // Predicated region
        $region21: #{tpu_custom_call.1} parent=11 // pred_check
          %p511 = pneg %p161
        $region22: #{tpu_custom_call.1} parent=11 // pred_check_branch
          %513 = sbr.rel (%p511) target = $region24
        $region23: #{tpu_custom_call.1} parent=11 // pred_region
          _
        $region24: #{tpu_custom_call.1} parent=11 // pred_fallthru
          _
        // Predicated region
        $region25: #{tpu_custom_call.1} parent=11 // pred_check
          %p514 = pneg %p182
        $region26: #{tpu_custom_call.1} parent=11 // pred_check_branch
          %516 = sbr.rel (%p514) target = $region28
        $region27: #{tpu_custom_call.1} parent=11 // pred_region
          _
        $region28: #{tpu_custom_call.1} parent=11 // pred_fallthru
          _
        // Predicated region
        $region29: #{tpu_custom_call.1} parent=11 // pred_check
          %p517 = pneg %p203
        $region30: #{tpu_custom_call.1} parent=11 // pred_check_branch
          %519 = sbr.rel (%p517) target = $region32
        $region31: #{tpu_custom_call.1} parent=11 // pred_region
          _
        $region32: #{tpu_custom_call.1} parent=11 // pred_fallthru
          _
        // Predicated region
        $region33: #{tpu_custom_call.1} parent=11 // pred_check
          %p520 = pneg %p224
        $region34: #{tpu_custom_call.1} parent=11 // pred_check_branch
          %522 = sbr.rel (%p520) target = $region36
        $region35: #{tpu_custom_call.1} parent=11 // pred_region
          _
        $region36: #{tpu_custom_call.1} parent=11 // pred_fallthru
          _
        // Predicated region
        $region37: #{tpu_custom_call.1} parent=11 // pred_check
          %p523 = pneg %p245
        $region38: #{tpu_custom_call.1} parent=11 // pred_check_branch
          %525 = sbr.rel (%p523) target = $region40
        $region39: #{tpu_custom_call.1} parent=11 // pred_region
          _
        $region40: #{tpu_custom_call.1} parent=11 // pred_fallthru
          _
        // Predicated region
        $region41: #{tpu_custom_call.1} parent=11 // pred_check
          %p526 = pneg %p266
        $region42: #{tpu_custom_call.1} parent=11 // pred_check_branch
          %528 = sbr.rel (%p526) target = $region44
        $region43: #{tpu_custom_call.1} parent=11 // pred_region
          _
        $region44: #{tpu_custom_call.1} parent=11 // pred_fallthru
          _
        // Predicated region
        $region45: #{tpu_custom_call.1} parent=11 // pred_check
          %p529 = pneg %p287
        $region46: #{tpu_custom_call.1} parent=11 // pred_check_branch
          %531 = sbr.rel (%p529) target = $region48
        $region47: #{tpu_custom_call.1} parent=11 // pred_region
          _
        $region48: #{tpu_custom_call.1} parent=11 // pred_fallthru
          _
        // Predicated region
        $region49: #{tpu_custom_call.1} parent=11 // pred_check
          %p532 = pneg %p308
        $region50: #{tpu_custom_call.1} parent=11 // pred_check_branch
          %534 = sbr.rel (%p532) target = $region52
        $region51: #{tpu_custom_call.1} parent=11 // pred_region
          _
        $region52: #{tpu_custom_call.1} parent=11 // pred_fallthru
          _
        // Predicated region
        $region53: #{tpu_custom_call.1} parent=11 // pred_check
          %p535 = pneg %p329
        $region54: #{tpu_custom_call.1} parent=11 // pred_check_branch
          %537 = sbr.rel (%p535) target = $region56
        $region55: #{tpu_custom_call.1} parent=11 // pred_region
          _
        $region56: #{tpu_custom_call.1} parent=11 // pred_fallthru
          _
        // Predicated region
        $region57: #{tpu_custom_call.1} parent=11 // pred_check
          %p538 = pneg %p350
        $region58: #{tpu_custom_call.1} parent=11 // pred_check_branch
          %540 = sbr.rel (%p538) target = $region60
        $region59: #{tpu_custom_call.1} parent=11 // pred_region
          _
        $region60: #{tpu_custom_call.1} parent=11 // pred_fallthru
          _
        // Predicated region
        $region61: #{tpu_custom_call.1} parent=11 // pred_check
          %p541 = pneg %p371
        $region62: #{tpu_custom_call.1} parent=11 // pred_check_branch
          %543 = sbr.rel (%p541) target = $region64
        $region63: #{tpu_custom_call.1} parent=11 // pred_region
          _
        $region64: #{tpu_custom_call.1} parent=11 // pred_fallthru
          _
        // Predicated region
        $region65: #{tpu_custom_call.1} parent=11 // pred_check
          %p544 = pneg %p392
        $region66: #{tpu_custom_call.1} parent=11 // pred_check_branch
          %546 = sbr.rel (%p544) target = $region68
        $region67: #{tpu_custom_call.1} parent=11 // pred_region
          _
        $region68: #{tpu_custom_call.1} parent=11 // pred_fallthru
          _
        // Predicated region
        $region69: #{tpu_custom_call.1} parent=11 // pred_check
          %p547 = pneg %p413
        $region70: #{tpu_custom_call.1} parent=11 // pred_check_branch
          %549 = sbr.rel (%p547) target = $region72
        $region71: #{tpu_custom_call.1} parent=11 // pred_region
          _
        $region72: #{tpu_custom_call.1} parent=11 // pred_fallthru
          _
        // Predicated region
        $region73: #{tpu_custom_call.1} parent=11 // pred_check
          %p550 = pneg %p434
        $region74: #{tpu_custom_call.1} parent=11 // pred_check_branch
          %552 = sbr.rel (%p550) target = $region76
        $region75: #{tpu_custom_call.1} parent=11 // pred_region
          _
        $region76: #{tpu_custom_call.1} parent=11 // pred_fallthru
          _
      $region12: #{tpu_custom_call.1} parent=5 // pred_fallthru
        _
      %p553 = scmp.lt.s32.totalorder %s32, 2
      // Predicated region
      $region77: #{tpu_custom_call.1} parent=5 // pred_check
        %p554 = pneg %p553
      $region78: #{tpu_custom_call.1} parent=5 // pred_check_branch
        %556 = sbr.rel (%p554) target = $region80
      $region79: #{tpu_custom_call.1} parent=5 // pred_region
        // Predicated region
        $region81: #{tpu_custom_call.1} parent=79 // pred_check
          %p557 = pneg %p66
        $region82: #{tpu_custom_call.1} parent=79 // pred_check_branch
          %559 = sbr.rel (%p557) target = $region84
        $region83: #{tpu_custom_call.1} parent=79 // pred_region
          %p560 = scmp.lt.s32.totalorder %s39, 1
          %s561 = scalar_select %p560, %s39, 1
          %p562 = scmp.lt.s32.totalorder %s40, 0
          %s563 = scalar_select %p562, %s40, 0
          %s564 = sadd.s32 %s563, %s561
          %s565 = smul.addr %s564, 8
          %s566 = scalar_lea.vmem %s0, %s565
        $region84: #{tpu_custom_call.1} parent=79 // pred_fallthru
          _
        // Predicated region
        $region85: #{tpu_custom_call.1} parent=79 // pred_check
          %p567 = pneg %p92
        $region86: #{tpu_custom_call.1} parent=79 // pred_check_branch
          %569 = sbr.rel (%p567) target = $region88
        $region87: #{tpu_custom_call.1} parent=79 // pred_region
          %p570 = scmp.lt.s32.totalorder %s39, 1
          %s571 = scalar_select %p570, %s39, 1
          %s572 = smul.addr %s571, 8
          %s573 = scalar_lea.vmem %s1, %s572
        $region88: #{tpu_custom_call.1} parent=79 // pred_fallthru
          _
      $region80: #{tpu_custom_call.1} parent=5 // pred_fallthru
        _
      %p574 = scmp.le.s32.totalorder 1, %s32
      %p575 = scmp.lt.s32.totalorder %s32, 3
      %p576 = pnand %p574, %p575
      %p577 = pneg %p576
      // Predicated region
      $region89: #{tpu_custom_call.1} parent=5 // pred_check
        _
      $region90: #{tpu_custom_call.1} parent=5 // pred_check_branch
        %579 = sbr.rel (%p576) target = $region92
      $region91: #{tpu_custom_call.1} parent=5 // pred_region
        %s580 = ssub.s32 %s32, 1
        %p581 = scmp.lt.s32.totalorder %s41, 1
        %s582 = scalar_select %p581, %s41, 1
        %p583 = scmp.lt.s32.totalorder %s42, 0
        %s584 = scalar_select %p583, %s42, 0
        %s585 = sadd.s32 %s584, %s582
        %s586 = smul.addr %s585, 8
        %s587 = scalar_lea.vmem %s0, %s586
        %p588 = pneg %p72
        %p589 = pneg %p69
        %p590 = scmp.lt.s32.totalorder %s41, 1
        %s591 = scalar_select %p590, %s41, 1
        %s592 = smul.addr %s591, 8
        %s593 = scalar_lea.vmem %s1, %s592
        %p594 = pneg %p98
        %p595 = pneg %p95
        %p596 = pneg %p119
        %p597 = pneg %p116
        %p598 = pneg %p140
        %p599 = pneg %p137
        %p600 = pneg %p161
        %p601 = pneg %p158
        %p602 = pneg %p182
        %p603 = pneg %p179
        %p604 = pneg %p203
        %p605 = pneg %p200
        %p606 = pneg %p224
        %p607 = pneg %p221
        %p608 = pneg %p245
        %p609 = pneg %p242
        %p610 = pneg %p266
        %p611 = pneg %p263
        %p612 = pneg %p287
        %p613 = pneg %p284
        %p614 = pneg %p308
        %p615 = pneg %p305
        %p616 = pneg %p329
        %p617 = pneg %p326
        %p618 = pneg %p350
        %p619 = pneg %p347
        %p620 = pneg %p371
        %p621 = pneg %p368
        %p622 = pneg %p392
        %p623 = pneg %p389
        %p624 = pneg %p413
        %p625 = pneg %p410
        %p626 = pneg %p434
        %p627 = pneg %p431
        %p628 = pneg %p462
        %p629 = pneg %p459
        %s630 = sand.u32 %s449, 1
        %s631 = scalar_lea.sflag [#allocation6], %s630
        %s632 = sand.u32 %s449, 1
        %s633 = smul.addr %s632, 8
        %s634 = scalar_lea.vmem [#allocation5], %s633
        %p635 = pneg %p490
        %p636 = pneg %p487
        %s637 = sand.u32 %s477, 1
        %s638 = scalar_lea.sflag [#allocation8], %s637
        %s639 = sand.u32 %s477, 1
        %s640 = smul.addr %s639, 32
        %s641 = scalar_lea.vmem [#allocation7], %s640
        %p642 = scmp.lt.s32.totalorder %s41, 1
        %s643 = scalar_select %p642, %s41, 1
        %p644 = scmp.lt.s32.totalorder %s42, 0
        %s645 = scalar_select %p644, %s42, 0
        %s646 = sadd.s32 %s645, %s643
        %s647 = smul.addr %s646, 8
        %s648 = scalar_lea.vmem %s0, %s647
        %p649 = scmp.lt.s32.totalorder %s41, 1
        %s650 = scalar_select %p649, %s41, 1
        %s651 = smul.addr %s650, 8
        %s652 = scalar_lea.vmem %s1, %s651
        %p653 = scmp.eq.s32.totalorder %s42, 0
        // Predicated region
        $region93: #{tpu_custom_call.1} parent=91 // pred_check
          %p654 = pneg %p653
        $region94: #{tpu_custom_call.1} parent=91 // pred_check_branch
          %656 = sbr.rel (%p654) target = $region96
        $region95: #{tpu_custom_call.1} parent=91 // pred_region
          %v657 = vld [vmem:[%s652] sm:$0xff]
          %v658 = vld [vmem:[%s4] sm:$0xff]
          %v659 = vld [vmem:[%s4 + $0x8] sm:$0xff]
          %v660 = vld [vmem:[%s4 + $0x10] sm:$0xff]
          %v661 = vld [vmem:[%s4 + $0x18] sm:$0xff]
          %v662 = vld [vmem:[%s5] sm:$0x1]
          %v664 = vperm.slane %v662, 0
          %vm666 = vcmask 261120
          %v668 = vsel %vm666, %v657, 0
          %670 = vmatpush.msra.mxu0 0.0
          %671 = vmatpush.msra.mxu0 0.0
          %672 = vmatpush.msra.mxu0 0.0
          %673 = vmatpush.msra.mxu0 0.0
          %674 = vmatpush.msra.mxu0 0.0
          %675 = vmatpush.msra.mxu0 0.0
          %676 = vmatpush.msra.mxu0 0.0
          %677 = vmatpush.msra.mxu0 0.0
          %678 = vmatpush.msra.mxu0 0.0
          %679 = vmatpush.msra.mxu0 0.0
          %680 = vmatpush.msra.mxu0 0.0
          %681 = vmatpush.msra.mxu0 0.0
          %682 = vmatpush.msra.mxu0 %v661
          %683 = vmatpush.msra.mxu0 %v660
          %684 = vmatpush.msra.mxu0 %v659
          %685 = vmatpush.msra.mxu0 %v658
          %686 = vmatmul.f32.gmra.mxu0 %v668
          %v687 = vpop.f32.mrf.mxu0
          %v688 = vadd.f32 %v664, %v687
          %689 = vdwg.mxu0
          %vm690 = vcmask 64512
          %691 = vst.msk [vmem:[#allocation3] sm:$0xff] %vm690, %v688
          %v692 = vld [vmem:[%s6] sm:$0xff]
          %v693 = vld [vmem:[%s6 + $0x8] sm:$0xff]
          %v694 = vld [vmem:[%s6 + $0x10] sm:$0xff]
          %v695 = vld [vmem:[%s6 + $0x18] sm:$0xff]
          %v696 = vld [vmem:[%s7] sm:$0x1]
          %v698 = vperm.slane %v696, 0
          %700 = vmatpush.msra.mxu0 0.0
          %701 = vmatpush.msra.mxu0 0.0
          %702 = vmatpush.msra.mxu0 0.0
          %703 = vmatpush.msra.mxu0 0.0
          %704 = vmatpush.msra.mxu0 0.0
          %705 = vmatpush.msra.mxu0 0.0
          %706 = vmatpush.msra.mxu0 0.0
          %707 = vmatpush.msra.mxu0 0.0
          %708 = vmatpush.msra.mxu0 0.0
          %709 = vmatpush.msra.mxu0 0.0
          %710 = vmatpush.msra.mxu0 0.0
          %711 = vmatpush.msra.mxu0 0.0
          %712 = vmatpush.msra.mxu0 %v695
          %713 = vmatpush.msra.mxu0 %v694
          %714 = vmatpush.msra.mxu0 %v693
          %715 = vmatpush.msra.mxu0 %v692
          %716 = vmatmul.f32.gmra.mxu0 %v668
          %v717 = vpop.f32.mrf.mxu0
          %v718 = vadd.f32 %v698, %v717
          %719 = vdwg.mxu0
          %720 = vst.msk [vmem:[#allocation4] sm:$0xff] %vm690, %v718
          %s721 = scalar_lea.vmem %s4, 32
          %v722 = vld [vmem:[%s721] sm:$0xff]
          %v723 = vld [vmem:[%s721 + $0x8] sm:$0xff]
          %v724 = vld [vmem:[%s721 + $0x10] sm:$0xff]
          %v725 = vld [vmem:[%s721 + $0x18] sm:$0xff]
          %s726 = scalar_lea.vmem %s5, 1
          %v727 = vld [vmem:[%s726] sm:$0x1]
          %v729 = vperm.slane %v727, 0
          %731 = vmatpush.msra.mxu0 0.0
          %732 = vmatpush.msra.mxu0 0.0
          %733 = vmatpush.msra.mxu0 0.0
          %734 = vmatpush.msra.mxu0 0.0
          %735 = vmatpush.msra.mxu0 0.0
          %736 = vmatpush.msra.mxu0 0.0
          %737 = vmatpush.msra.mxu0 0.0
          %738 = vmatpush.msra.mxu0 0.0
          %739 = vmatpush.msra.mxu0 0.0
          %740 = vmatpush.msra.mxu0 0.0
          %741 = vmatpush.msra.mxu0 0.0
          %742 = vmatpush.msra.mxu0 0.0
          %743 = vmatpush.msra.mxu0 %v725
          %744 = vmatpush.msra.mxu0 %v724
          %745 = vmatpush.msra.mxu0 %v723
          %746 = vmatpush.msra.mxu0 %v722
          %747 = vmatmul.f32.gmra.mxu0 %v668
          %v748 = vpop.f32.mrf.mxu0
          %v749 = vadd.f32 %v729, %v748
          %750 = vdwg.mxu0
          %s751 = scalar_lea.vmem [#allocation3], 8
          %752 = vst.msk [vmem:[%s751] sm:$0xff] %vm690, %v749
          %s753 = scalar_lea.vmem %s6, 32
          %v754 = vld [vmem:[%s753] sm:$0xff]
          %v755 = vld [vmem:[%s753 + $0x8] sm:$0xff]
          %v756 = vld [vmem:[%s753 + $0x10] sm:$0xff]
          %v757 = vld [vmem:[%s753 + $0x18] sm:$0xff]
          %s758 = scalar_lea.vmem %s7, 1
          %v759 = vld [vmem:[%s758] sm:$0x1]
          %v761 = vperm.slane %v759, 0
          %763 = vmatpush.msra.mxu0 0.0
          %764 = vmatpush.msra.mxu0 0.0
          %765 = vmatpush.msra.mxu0 0.0
          %766 = vmatpush.msra.mxu0 0.0
          %767 = vmatpush.msra.mxu0 0.0
          %768 = vmatpush.msra.mxu0 0.0
          %769 = vmatpush.msra.mxu0 0.0
          %770 = vmatpush.msra.mxu0 0.0
          %771 = vmatpush.msra.mxu0 0.0
          %772 = vmatpush.msra.mxu0 0.0
          %773 = vmatpush.msra.mxu0 0.0
          %774 = vmatpush.msra.mxu0 0.0
          %775 = vmatpush.msra.mxu0 %v757
          %776 = vmatpush.msra.mxu0 %v756
          %777 = vmatpush.msra.mxu0 %v755
          %778 = vmatpush.msra.mxu0 %v754
          %779 = vmatmul.f32.gmra.mxu0 %v668
          %v780 = vpop.f32.mrf.mxu0
          %v781 = vadd.f32 %v761, %v780
          %782 = vdwg.mxu0
          %s783 = scalar_lea.vmem [#allocation4], 8
          %784 = vst.msk [vmem:[%s783] sm:$0xff] %vm690, %v781
          %s785 = scalar_lea.vmem %s4, 64
          %v786 = vld [vmem:[%s785] sm:$0xff]
          %v787 = vld [vmem:[%s785 + $0x8] sm:$0xff]
          %v788 = vld [vmem:[%s785 + $0x10] sm:$0xff]
          %v789 = vld [vmem:[%s785 + $0x18] sm:$0xff]
          %s790 = scalar_lea.vmem %s5, 2
          %v791 = vld [vmem:[%s790] sm:$0x1]
          %v793 = vperm.slane %v791, 0
          %795 = vmatpush.msra.mxu0 0.0
          %796 = vmatpush.msra.mxu0 0.0
          %797 = vmatpush.msra.mxu0 0.0
          %798 = vmatpush.msra.mxu0 0.0
          %799 = vmatpush.msra.mxu0 0.0
          %800 = vmatpush.msra.mxu0 0.0
          %801 = vmatpush.msra.mxu0 0.0
          %802 = vmatpush.msra.mxu0 0.0
          %803 = vmatpush.msra.mxu0 0.0
          %804 = vmatpush.msra.mxu0 0.0
          %805 = vmatpush.msra.mxu0 0.0
          %806 = vmatpush.msra.mxu0 0.0
          %807 = vmatpush.msra.mxu0 %v789
          %808 = vmatpush.msra.mxu0 %v788
          %809 = vmatpush.msra.mxu0 %v787
          %810 = vmatpush.msra.mxu0 %v786
          %811 = vmatmul.f32.gmra.mxu0 %v668
          %v812 = vpop.f32.mrf.mxu0
          %v813 = vadd.f32 %v793, %v812
          %814 = vdwg.mxu0
          %s815 = scalar_lea.vmem [#allocation3], 16
          %816 = vst.msk [vmem:[%s815] sm:$0xff] %vm690, %v813
          %s817 = scalar_lea.vmem %s6, 64
          %v818 = vld [vmem:[%s817] sm:$0xff]
          %v819 = vld [vmem:[%s817 + $0x8] sm:$0xff]
          %v820 = vld [vmem:[%s817 + $0x10] sm:$0xff]
          %v821 = vld [vmem:[%s817 + $0x18] sm:$0xff]
          %s822 = scalar_lea.vmem %s7, 2
          %v823 = vld [vmem:[%s822] sm:$0x1]
          %v825 = vperm.slane %v823, 0
          %827 = vmatpush.msra.mxu0 0.0
          %828 = vmatpush.msra.mxu0 0.0
          %829 = vmatpush.msra.mxu0 0.0
          %830 = vmatpush.msra.mxu0 0.0
          %831 = vmatpush.msra.mxu0 0.0
          %832 = vmatpush.msra.mxu0 0.0
          %833 = vmatpush.msra.mxu0 0.0
          %834 = vmatpush.msra.mxu0 0.0
          %835 = vmatpush.msra.mxu0 0.0
          %836 = vmatpush.msra.mxu0 0.0
          %837 = vmatpush.msra.mxu0 0.0
          %838 = vmatpush.msra.mxu0 0.0
          %839 = vmatpush.msra.mxu0 %v821
          %840 = vmatpush.msra.mxu0 %v820
          %841 = vmatpush.msra.mxu0 %v819
          %842 = vmatpush.msra.mxu0 %v818
          %843 = vmatmul.f32.gmra.mxu0 %v668
          %v844 = vpop.f32.mrf.mxu0
          %v845 = vadd.f32 %v825, %v844
          %846 = vdwg.mxu0
          %s847 = scalar_lea.vmem [#allocation4], 16
          %848 = vst.msk [vmem:[%s847] sm:$0xff] %vm690, %v845
          %s849 = scalar_lea.vmem %s4, 96
          %v850 = vld [vmem:[%s849] sm:$0xff]
          %v851 = vld [vmem:[%s849 + $0x8] sm:$0xff]
          %v852 = vld [vmem:[%s849 + $0x10] sm:$0xff]
          %v853 = vld [vmem:[%s849 + $0x18] sm:$0xff]
          %s854 = scalar_lea.vmem %s5, 3
          %v855 = vld [vmem:[%s854] sm:$0x1]
          %v857 = vperm.slane %v855, 0
          %859 = vmatpush.msra.mxu0 0.0
          %860 = vmatpush.msra.mxu0 0.0
          %861 = vmatpush.msra.mxu0 0.0
          %862 = vmatpush.msra.mxu0 0.0
          %863 = vmatpush.msra.mxu0 0.0
          %864 = vmatpush.msra.mxu0 0.0
          %865 = vmatpush.msra.mxu0 0.0
          %866 = vmatpush.msra.mxu0 0.0
          %867 = vmatpush.msra.mxu0 0.0
          %868 = vmatpush.msra.mxu0 0.0
          %869 = vmatpush.msra.mxu0 0.0
          %870 = vmatpush.msra.mxu0 0.0
          %871 = vmatpush.msra.mxu0 %v853
          %872 = vmatpush.msra.mxu0 %v852
          %873 = vmatpush.msra.mxu0 %v851
          %874 = vmatpush.msra.mxu0 %v850
          %875 = vmatmul.f32.gmra.mxu0 %v668
          %v876 = vpop.f32.mrf.mxu0
          %v877 = vadd.f32 %v857, %v876
          %878 = vdwg.mxu0
          %s879 = scalar_lea.vmem [#allocation3], 24
          %880 = vst.msk [vmem:[%s879] sm:$0xff] %vm690, %v877
          %s881 = scalar_lea.vmem %s6, 96
          %v882 = vld [vmem:[%s881] sm:$0xff]
          %v883 = vld [vmem:[%s881 + $0x8] sm:$0xff]
          %v884 = vld [vmem:[%s881 + $0x10] sm:$0xff]
          %v885 = vld [vmem:[%s881 + $0x18] sm:$0xff]
          %s886 = scalar_lea.vmem %s7, 3
          %v887 = vld [vmem:[%s886] sm:$0x1]
          %v889 = vperm.slane %v887, 0
          %891 = vmatpush.msra.mxu0 0.0
          %892 = vmatpush.msra.mxu0 0.0
          %893 = vmatpush.msra.mxu0 0.0
          %894 = vmatpush.msra.mxu0 0.0
          %895 = vmatpush.msra.mxu0 0.0
          %896 = vmatpush.msra.mxu0 0.0
          %897 = vmatpush.msra.mxu0 0.0
          %898 = vmatpush.msra.mxu0 0.0
          %899 = vmatpush.msra.mxu0 0.0
          %900 = vmatpush.msra.mxu0 0.0
          %901 = vmatpush.msra.mxu0 0.0
          %902 = vmatpush.msra.mxu0 0.0
          %903 = vmatpush.msra.mxu0 %v885
          %904 = vmatpush.msra.mxu0 %v884
          %905 = vmatpush.msra.mxu0 %v883
          %906 = vmatpush.msra.mxu0 %v882
          %907 = vmatmul.f32.gmra.mxu0 %v668
          %v908 = vpop.f32.mrf.mxu0
          %v909 = vadd.f32 %v889, %v908
          %910 = vdwg.mxu0
          %s911 = scalar_lea.vmem [#allocation4], 24
          %912 = vst.msk [vmem:[%s911] sm:$0xff] %vm690, %v909
        $region96: #{tpu_custom_call.1} parent=91 // pred_fallthru
          _
        %v913 = vld [vmem:[%s648] sm:$0xff]
        %v914 = vld [vmem:[%s10] sm:$0x1]
        %v915 = vld [vmem:[%s11] sm:$0x1]
        %vm916 = vcmask 261120
        %v917 = vsel %vm916, %v913, 0.0
        %918 = vadd.xlane.f32.xlu0 %v917
        %v919 = vpop.xlane.xlu0 %918
        %v920 = vrcp.pop 32.0
        %v921 = vmul.f32 32.0, %v920
        %v922 = vsub.f32 1.0, %v921
        %v923 = vmul.f32 %v920, %v922
        %v924 = vadd.f32 %v920, %v923
        %vm925 = vweird.f32 %v920
        %v926 = vsel %vm925, %v920, %v924
        %v927 = vmul.f32 %v919, %v926
        %v928 = vsub.f32 %v913, %v927
        %v929 = vmul.f32 %v928, %v928
        %v930 = vsel %vm916, %v929, 0.0
        %931 = vadd.xlane.f32.xlu0 %v930
        %v932 = vpop.xlane.xlu0 %931
        %v933 = vmul.f32 %v932, 0.032258064
        %v934 = vrsqrt.pop %v933
        %v935 = vmul.f32 %v934, %v933
        %v936 = vmul.f32 %v935, %v934
        %v937 = vmul.f32 0.5, %v936
        %v938 = vsub.f32 1.5, %v937
        %v939 = vmul.f32 %v934, %v938
        %v940 = vmul.f32 %v933, %v939
        %vm941 = vcmp.eq.f32.partialorder %v933, inf
        %v942 = vsel %vm941, %v933, %v940
        %vm943 = vcmp.eq.f32.partialorder %v933, 0.0
        %v944 = vand.u32 %v933, 2147483648
        %v945 = vsel %vm943, %v944, %v942
        %v946 = vadd.f32 %v945, 1e-06
        %v947 = vrcp.pop %v946
        %v948 = vmul.f32 %v946, %v947
        %v949 = vsub.f32 1.0, %v948
        %v950 = vmul.f32 %v947, %v949
        %v951 = vadd.f32 %v947, %v950
        %vm952 = vweird.f32 %v946
        %vm953 = vweird.f32 %v947
        %vm954 = vmor %vm952, %vm953
        %v955 = vsel %vm954, %v947, %v951
        %v956 = vand.u32 2147483647, %v946
        %vm957 = vcmp.eq.f32.partialorder %v956, 8.507059e+37
        %v958 = vand.u32 %v946, 2147483648
        %v959 = vor.u32 1.1754944e-38, %v958
        %v960 = vsel %vm957, %v959, %v955
        %v961 = vmul.f32 %v928, %v960
        %v963 = vperm.slane %v914, 0
        %v965 = vmul.f32 %v961, %v963
        %v967 = vperm.slane %v915, 0
        %v969 = vadd.f32 %v965, %v967
        %v970 = vld [vmem:[%s2] sm:$0xff]
        %v971 = vld [vmem:[%s2 + $0x8] sm:$0xff]
        %v972 = vld [vmem:[%s2 + $0x10] sm:$0xff]
        %v973 = vld [vmem:[%s2 + $0x18] sm:$0xff]
        %v974 = vld [vmem:[%s3] sm:$0x1]
        %v976 = vperm.slane %v974, 0
        %v979 = vsel %vm916, %v969, 0
        %981 = vmatpush.msra.mxu0 0.0
        %982 = vmatpush.msra.mxu0 0.0
        %983 = vmatpush.msra.mxu0 0.0
        %984 = vmatpush.msra.mxu0 0.0
        %985 = vmatpush.msra.mxu0 0.0
        %986 = vmatpush.msra.mxu0 0.0
        %987 = vmatpush.msra.mxu0 0.0
        %988 = vmatpush.msra.mxu0 0.0
        %989 = vmatpush.msra.mxu0 0.0
        %990 = vmatpush.msra.mxu0 0.0
        %991 = vmatpush.msra.mxu0 0.0
        %992 = vmatpush.msra.mxu0 0.0
        %993 = vmatpush.msra.mxu0 %v973
        %994 = vmatpush.msra.mxu0 %v972
        %995 = vmatpush.msra.mxu0 %v971
        %996 = vmatpush.msra.mxu0 %v970
        %997 = vmatmul.f32.gmra.mxu0 %v979
        %v998 = vpop.f32.mrf.mxu0
        %v999 = vadd.f32 %v976, %v998
        %1000 = vdwg.mxu0
        %v1001 = vmul.f32 %v999, 0.35355338
        %vm1002 = vcmask 64512
        %1003 = vst.msk [vmem:[#allocation2] sm:$0xff] %vm1002, %v1001
        %s1004 = scalar_lea.vmem %s2, 32
        %v1005 = vld [vmem:[%s1004] sm:$0xff]
        %v1006 = vld [vmem:[%s1004 + $0x8] sm:$0xff]
        %v1007 = vld [vmem:[%s1004 + $0x10] sm:$0xff]
        %v1008 = vld [vmem:[%s1004 + $0x18] sm:$0xff]
        %s1009 = scalar_lea.vmem %s3, 1
        %v1010 = vld [vmem:[%s1009] sm:$0x1]
        %v1012 = vperm.slane %v1010, 0
        %1014 = vmatpush.msra.mxu0 0.0
        %1015 = vmatpush.msra.mxu0 0.0
        %1016 = vmatpush.msra.mxu0 0.0
        %1017 = vmatpush.msra.mxu0 0.0
        %1018 = vmatpush.msra.mxu0 0.0
        %1019 = vmatpush.msra.mxu0 0.0
        %1020 = vmatpush.msra.mxu0 0.0
        %1021 = vmatpush.msra.mxu0 0.0
        %1022 = vmatpush.msra.mxu0 0.0
        %1023 = vmatpush.msra.mxu0 0.0
        %1024 = vmatpush.msra.mxu0 0.0
        %1025 = vmatpush.msra.mxu0 0.0
        %1026 = vmatpush.msra.mxu0 %v1008
        %1027 = vmatpush.msra.mxu0 %v1007
        %1028 = vmatpush.msra.mxu0 %v1006
        %1029 = vmatpush.msra.mxu0 %v1005
        %1030 = vmatmul.f32.gmra.mxu0 %v979
        %v1031 = vpop.f32.mrf.mxu0
        %v1032 = vadd.f32 %v1012, %v1031
        %1033 = vdwg.mxu0
        %v1034 = vmul.f32 %v1032, 0.35355338
        %s1035 = scalar_lea.vmem [#allocation2], 8
        %1036 = vst.msk [vmem:[%s1035] sm:$0xff] %vm1002, %v1034
        %s1037 = scalar_lea.vmem %s2, 64
        %v1038 = vld [vmem:[%s1037] sm:$0xff]
        %v1039 = vld [vmem:[%s1037 + $0x8] sm:$0xff]
        %v1040 = vld [vmem:[%s1037 + $0x10] sm:$0xff]
        %v1041 = vld [vmem:[%s1037 + $0x18] sm:$0xff]
        %s1042 = scalar_lea.vmem %s3, 2
        %v1043 = vld [vmem:[%s1042] sm:$0x1]
        %v1045 = vperm.slane %v1043, 0
        %1047 = vmatpush.msra.mxu0 0.0
        %1048 = vmatpush.msra.mxu0 0.0
        %1049 = vmatpush.msra.mxu0 0.0
        %1050 = vmatpush.msra.mxu0 0.0
        %1051 = vmatpush.msra.mxu0 0.0
        %1052 = vmatpush.msra.mxu0 0.0
        %1053 = vmatpush.msra.mxu0 0.0
        %1054 = vmatpush.msra.mxu0 0.0
        %1055 = vmatpush.msra.mxu0 0.0
        %1056 = vmatpush.msra.mxu0 0.0
        %1057 = vmatpush.msra.mxu0 0.0
        %1058 = vmatpush.msra.mxu0 0.0
        %1059 = vmatpush.msra.mxu0 %v1041
        %1060 = vmatpush.msra.mxu0 %v1040
        %1061 = vmatpush.msra.mxu0 %v1039
        %1062 = vmatpush.msra.mxu0 %v1038
        %1063 = vmatmul.f32.gmra.mxu0 %v979
        %v1064 = vpop.f32.mrf.mxu0
        %v1065 = vadd.f32 %v1045, %v1064
        %1066 = vdwg.mxu0
        %v1067 = vmul.f32 %v1065, 0.35355338
        %s1068 = scalar_lea.vmem [#allocation2], 16
        %1069 = vst.msk [vmem:[%s1068] sm:$0xff] %vm1002, %v1067
        %s1070 = scalar_lea.vmem %s2, 96
        %v1071 = vld [vmem:[%s1070] sm:$0xff]
        %v1072 = vld [vmem:[%s1070 + $0x8] sm:$0xff]
        %v1073 = vld [vmem:[%s1070 + $0x10] sm:$0xff]
        %v1074 = vld [vmem:[%s1070 + $0x18] sm:$0xff]
        %s1075 = scalar_lea.vmem %s3, 3
        %v1076 = vld [vmem:[%s1075] sm:$0x1]
        %v1078 = vperm.slane %v1076, 0
        %1080 = vmatpush.msra.mxu0 0.0
        %1081 = vmatpush.msra.mxu0 0.0
        %1082 = vmatpush.msra.mxu0 0.0
        %1083 = vmatpush.msra.mxu0 0.0
        %1084 = vmatpush.msra.mxu0 0.0
        %1085 = vmatpush.msra.mxu0 0.0
        %1086 = vmatpush.msra.mxu0 0.0
        %1087 = vmatpush.msra.mxu0 0.0
        %1088 = vmatpush.msra.mxu0 0.0
        %1089 = vmatpush.msra.mxu0 0.0
        %1090 = vmatpush.msra.mxu0 0.0
        %1091 = vmatpush.msra.mxu0 0.0
        %1092 = vmatpush.msra.mxu0 %v1074
        %1093 = vmatpush.msra.mxu0 %v1073
        %1094 = vmatpush.msra.mxu0 %v1072
        %1095 = vmatpush.msra.mxu0 %v1071
        %1096 = vmatmul.f32.gmra.mxu0 %v979
        %v1097 = vpop.f32.mrf.mxu0
        %v1098 = vadd.f32 %v1078, %v1097
        %1099 = vdwg.mxu0
        %v1100 = vmul.f32 %v1098, 0.35355338
        %s1101 = scalar_lea.vmem [#allocation2], 24
        %1102 = vst.msk [vmem:[%s1101] sm:$0xff] %vm1002, %v1100
        %v1103 = vld [vmem:[#allocation2] sm:$0xff]
        %v1104 = vld [vmem:[#allocation2 + $0x8] sm:$0xff]
        %v1105 = vld [vmem:[#allocation2 + $0x10] sm:$0xff]
        %v1106 = vld [vmem:[#allocation2 + $0x18] sm:$0xff]
        %v1107 = vld [vmem:[#allocation3] sm:$0xff]
        %v1108 = vld [vmem:[#allocation3 + $0x8] sm:$0xff]
        %v1109 = vld [vmem:[#allocation3 + $0x10] sm:$0xff]
        %v1110 = vld [vmem:[#allocation3 + $0x18] sm:$0xff]
        %v1111 = vld [vmem:[#allocation4] sm:$0xff]
        %v1112 = vld [vmem:[#allocation4 + $0x8] sm:$0xff]
        %v1113 = vld [vmem:[#allocation4 + $0x10] sm:$0xff]
        %v1114 = vld [vmem:[#allocation4 + $0x18] sm:$0xff]
        %v1116 = vsel %vm1002, %v1103, 0
        %v1119 = vsel %vm1002, %v1107, 0
        %1121 = vmatpush.xpose.msra.mxu0 0.0
        %1122 = vmatpush.xpose.msra.mxu0 0.0
        %1123 = vmatpush.xpose.msra.mxu0 0.0
        %1124 = vmatpush.xpose.msra.mxu0 0.0
        %1125 = vmatpush.xpose.msra.mxu0 0.0
        %1126 = vmatpush.xpose.msra.mxu0 0.0
        %1127 = vmatpush.xpose.msra.mxu0 0.0
        %1128 = vmatpush.xpose.msra.mxu0 0.0
        %1129 = vmatpush.xpose.msra.mxu0 0.0
        %1130 = vmatpush.xpose.msra.mxu0 0.0
        %1131 = vmatpush.xpose.msra.mxu0 0.0
        %1132 = vmatpush.xpose.msra.mxu0 0.0
        %1133 = vmatpush.xpose.msra.mxu0 0.0
        %1134 = vmatpush.xpose.msra.mxu0 0.0
        %1135 = vmatpush.xpose.msra.mxu0 0.0
        %1136 = vmatpush.xpose.msra.mxu0 %v1119
        %1137 = vmatmul.f32.gmra.mxu0 %v1116
        %v1138 = vpop.f32.mrf.mxu0
        %v1139 = vadd.f32 0.0, %v1138
        %1140 = vdwg.mxu0
        %v1142 = vsel %vm1002, %v1104, 0
        %v1145 = vsel %vm1002, %v1108, 0
        %1147 = vmatpush.xpose.msra.mxu0 0.0
        %1148 = vmatpush.xpose.msra.mxu0 0.0
        %1149 = vmatpush.xpose.msra.mxu0 0.0
        %1150 = vmatpush.xpose.msra.mxu0 0.0
        %1151 = vmatpush.xpose.msra.mxu0 0.0
        %1152 = vmatpush.xpose.msra.mxu0 0.0
        %1153 = vmatpush.xpose.msra.mxu0 0.0
        %1154 = vmatpush.xpose.msra.mxu0 0.0
        %1155 = vmatpush.xpose.msra.mxu0 0.0
        %1156 = vmatpush.xpose.msra.mxu0 0.0
        %1157 = vmatpush.xpose.msra.mxu0 0.0
        %1158 = vmatpush.xpose.msra.mxu0 0.0
        %1159 = vmatpush.xpose.msra.mxu0 0.0
        %1160 = vmatpush.xpose.msra.mxu0 0.0
        %1161 = vmatpush.xpose.msra.mxu0 0.0
        %1162 = vmatpush.xpose.msra.mxu0 %v1145
        %1163 = vmatmul.f32.gmra.mxu0 %v1142
        %v1164 = vpop.f32.mrf.mxu0
        %v1165 = vadd.f32 0.0, %v1164
        %1166 = vdwg.mxu0
        %v1168 = vsel %vm1002, %v1105, 0
        %v1171 = vsel %vm1002, %v1109, 0
        %1173 = vmatpush.xpose.msra.mxu0 0.0
        %1174 = vmatpush.xpose.msra.mxu0 0.0
        %1175 = vmatpush.xpose.msra.mxu0 0.0
        %1176 = vmatpush.xpose.msra.mxu0 0.0
        %1177 = vmatpush.xpose.msra.mxu0 0.0
        %1178 = vmatpush.xpose.msra.mxu0 0.0
        %1179 = vmatpush.xpose.msra.mxu0 0.0
        %1180 = vmatpush.xpose.msra.mxu0 0.0
        %1181 = vmatpush.xpose.msra.mxu0 0.0
        %1182 = vmatpush.xpose.msra.mxu0 0.0
        %1183 = vmatpush.xpose.msra.mxu0 0.0
        %1184 = vmatpush.xpose.msra.mxu0 0.0
        %1185 = vmatpush.xpose.msra.mxu0 0.0
        %1186 = vmatpush.xpose.msra.mxu0 0.0
        %1187 = vmatpush.xpose.msra.mxu0 0.0
        %1188 = vmatpush.xpose.msra.mxu0 %v1171
        %1189 = vmatmul.f32.gmra.mxu0 %v1168
        %v1190 = vpop.f32.mrf.mxu0
        %v1191 = vadd.f32 0.0, %v1190
        %1192 = vdwg.mxu0
        %v1194 = vsel %vm1002, %v1106, 0
        %v1197 = vsel %vm1002, %v1110, 0
        %1199 = vmatpush.xpose.msra.mxu0 0.0
        %1200 = vmatpush.xpose.msra.mxu0 0.0
        %1201 = vmatpush.xpose.msra.mxu0 0.0
        %1202 = vmatpush.xpose.msra.mxu0 0.0
        %1203 = vmatpush.xpose.msra.mxu0 0.0
        %1204 = vmatpush.xpose.msra.mxu0 0.0
        %1205 = vmatpush.xpose.msra.mxu0 0.0
        %1206 = vmatpush.xpose.msra.mxu0 0.0
        %1207 = vmatpush.xpose.msra.mxu0 0.0
        %1208 = vmatpush.xpose.msra.mxu0 0.0
        %1209 = vmatpush.xpose.msra.mxu0 0.0
        %1210 = vmatpush.xpose.msra.mxu0 0.0
        %1211 = vmatpush.xpose.msra.mxu0 0.0
        %1212 = vmatpush.xpose.msra.mxu0 0.0
        %1213 = vmatpush.xpose.msra.mxu0 0.0
        %1214 = vmatpush.xpose.msra.mxu0 %v1197
        %1215 = vmatmul.f32.gmra.mxu0 %v1194
        %v1216 = vpop.f32.mrf.mxu0
        %v1217 = vadd.f32 0.0, %v1216
        %1218 = vdwg.mxu0
        %v1219 = vsel %vm1002, %v1139, -inf
        %1220 = vmax.xlane.f32.xlu0 %v1219
        %v1221 = vpop.xlane.xlu0 %1220
        %v1222 = vsel %vm1002, %v1165, -inf
        %1223 = vmax.xlane.f32.xlu0 %v1222
        %v1224 = vpop.xlane.xlu0 %1223
        %v1225 = vsel %vm1002, %v1191, -inf
        %1226 = vmax.xlane.f32.xlu0 %v1225
        %v1227 = vpop.xlane.xlu0 %1226
        %v1228 = vsel %vm1002, %v1217, -inf
        %1229 = vmax.xlane.f32.xlu0 %v1228
        %v1230 = vpop.xlane.xlu0 %1229
        %v1231 = vsub.f32 %v1139, %v1221
        %v1232 = vsub.f32 %v1165, %v1224
        %v1233 = vsub.f32 %v1191, %v1227
        %v1234 = vsub.f32 %v1217, %v1230
        %v1235 = vmul.f32 %v1231, 1.442695
        %v1236 = vpow.pop %v1235
        %v1237 = vmul.f32 %v1232, 1.442695
        %v1238 = vpow.pop %v1237
        %v1239 = vmul.f32 %v1233, 1.442695
        %v1240 = vpow.pop %v1239
        %v1241 = vmul.f32 %v1234, 1.442695
        %v1242 = vpow.pop %v1241
        %v1243 = vsel %vm1002, %v1236, 0.0
        %1244 = vadd.xlane.f32.xlu0 %v1243
        %v1245 = vpop.xlane.xlu0 %1244
        %v1246 = vsel %vm1002, %v1238, 0.0
        %1247 = vadd.xlane.f32.xlu0 %v1246
        %v1248 = vpop.xlane.xlu0 %1247
        %v1249 = vsel %vm1002, %v1240, 0.0
        %1250 = vadd.xlane.f32.xlu0 %v1249
        %v1251 = vpop.xlane.xlu0 %1250
        %v1252 = vsel %vm1002, %v1242, 0.0
        %1253 = vadd.xlane.f32.xlu0 %v1252
        %v1254 = vpop.xlane.xlu0 %1253
        %v1255 = vrcp.pop %v1245
        %v1256 = vrcp.pop %v1248
        %v1257 = vrcp.pop %v1251
        %v1258 = vrcp.pop %v1254
        %v1259 = vmul.f32 %v1236, %v1255
        %v1260 = vmul.f32 %v1238, %v1256
        %v1261 = vmul.f32 %v1240, %v1257
        %v1262 = vmul.f32 %v1242, %v1258
        %1263 = vst.msk [vmem:[%s641] sm:$0xff] %vm1002, %v1259
        %1264 = vst.msk [vmem:[%s641 + $0x8] sm:$0xff] %vm1002, %v1260
        %1265 = vst.msk [vmem:[%s641 + $0x10] sm:$0xff] %vm1002, %v1261
        %1266 = vst.msk [vmem:[%s641 + $0x18] sm:$0xff] %vm1002, %v1262
        %v1268 = vsel %vm1002, %v1259, 0
        %1270 = vmatpush.msra.mxu0 0.0
        %1271 = vmatpush.msra.mxu0 0.0
        %1272 = vmatpush.msra.mxu0 0.0
        %1273 = vmatpush.msra.mxu0 0.0
        %1274 = vmatpush.msra.mxu0 0.0
        %1275 = vmatpush.msra.mxu0 0.0
        %1276 = vmatpush.msra.mxu0 0.0
        %1277 = vmatpush.msra.mxu0 0.0
        %1278 = vmatpush.msra.mxu0 0.0
        %1279 = vmatpush.msra.mxu0 0.0
        %1280 = vmatpush.msra.mxu0 0.0
        %1281 = vmatpush.msra.mxu0 0.0
        %1282 = vmatpush.msra.mxu0 0.0
        %1283 = vmatpush.msra.mxu0 0.0
        %1284 = vmatpush.msra.mxu0 0.0
        %1285 = vmatpush.msra.mxu0 %v1111
        %1286 = vmatmul.f32.gmra.mxu0 %v1268
        %v1287 = vpop.f32.mrf.mxu0
        %v1288 = vadd.f32 0.0, %v1287
        %1289 = vdwg.mxu0
        %v1291 = vsel %vm1002, %v1260, 0
        %1293 = vmatpush.msra.mxu0 0.0
        %1294 = vmatpush.msra.mxu0 0.0
        %1295 = vmatpush.msra.mxu0 0.0
        %1296 = vmatpush.msra.mxu0 0.0
        %1297 = vmatpush.msra.mxu0 0.0
        %1298 = vmatpush.msra.mxu0 0.0
        %1299 = vmatpush.msra.mxu0 0.0
        %1300 = vmatpush.msra.mxu0 0.0
        %1301 = vmatpush.msra.mxu0 0.0
        %1302 = vmatpush.msra.mxu0 0.0
        %1303 = vmatpush.msra.mxu0 0.0
        %1304 = vmatpush.msra.mxu0 0.0
        %1305 = vmatpush.msra.mxu0 0.0
        %1306 = vmatpush.msra.mxu0 0.0
        %1307 = vmatpush.msra.mxu0 0.0
        %1308 = vmatpush.msra.mxu0 %v1112
        %1309 = vmatmul.f32.gmra.mxu0 %v1291
        %v1310 = vpop.f32.mrf.mxu0
        %v1311 = vadd.f32 0.0, %v1310
        %1312 = vdwg.mxu0
        %v1314 = vsel %vm1002, %v1261, 0
        %1316 = vmatpush.msra.mxu0 0.0
        %1317 = vmatpush.msra.mxu0 0.0
        %1318 = vmatpush.msra.mxu0 0.0
        %1319 = vmatpush.msra.mxu0 0.0
        %1320 = vmatpush.msra.mxu0 0.0
        %1321 = vmatpush.msra.mxu0 0.0
        %1322 = vmatpush.msra.mxu0 0.0
        %1323 = vmatpush.msra.mxu0 0.0
        %1324 = vmatpush.msra.mxu0 0.0
        %1325 = vmatpush.msra.mxu0 0.0
        %1326 = vmatpush.msra.mxu0 0.0
        %1327 = vmatpush.msra.mxu0 0.0
        %1328 = vmatpush.msra.mxu0 0.0
        %1329 = vmatpush.msra.mxu0 0.0
        %1330 = vmatpush.msra.mxu0 0.0
        %1331 = vmatpush.msra.mxu0 %v1113
        %1332 = vmatmul.f32.gmra.mxu0 %v1314
        %v1333 = vpop.f32.mrf.mxu0
        %v1334 = vadd.f32 0.0, %v1333
        %1335 = vdwg.mxu0
        %v1337 = vsel %vm1002, %v1262, 0
        %1339 = vmatpush.msra.mxu0 0.0
        %1340 = vmatpush.msra.mxu0 0.0
        %1341 = vmatpush.msra.mxu0 0.0
        %1342 = vmatpush.msra.mxu0 0.0
        %1343 = vmatpush.msra.mxu0 0.0
        %1344 = vmatpush.msra.mxu0 0.0
        %1345 = vmatpush.msra.mxu0 0.0
        %1346 = vmatpush.msra.mxu0 0.0
        %1347 = vmatpush.msra.mxu0 0.0
        %1348 = vmatpush.msra.mxu0 0.0
        %1349 = vmatpush.msra.mxu0 0.0
        %1350 = vmatpush.msra.mxu0 0.0
        %1351 = vmatpush.msra.mxu0 0.0
        %1352 = vmatpush.msra.mxu0 0.0
        %1353 = vmatpush.msra.mxu0 0.0
        %1354 = vmatpush.msra.mxu0 %v1114
        %1355 = vmatmul.f32.gmra.mxu0 %v1337
        %v1356 = vpop.f32.mrf.mxu0
        %v1357 = vadd.f32 0.0, %v1356
        %1358 = vdwg.mxu0
        %v1359 = vld [vmem:[%s8] sm:$0xff]
        %v1360 = vld [vmem:[%s8 + $0x8] sm:$0xff]
        %v1361 = vld [vmem:[%s8 + $0x10] sm:$0xff]
        %v1362 = vld [vmem:[%s8 + $0x18] sm:$0xff]
        %v1364 = vsel %vm1002, %v1288, 0
        %1366 = vmatpush.msra.mxu0 0.0
        %1367 = vmatpush.msra.mxu0 0.0
        %1368 = vmatpush.msra.mxu0 0.0
        %1369 = vmatpush.msra.mxu0 0.0
        %1370 = vmatpush.msra.mxu0 0.0
        %1371 = vmatpush.msra.mxu0 0.0
        %1372 = vmatpush.msra.mxu0 0.0
        %1373 = vmatpush.msra.mxu0 0.0
        %1374 = vmatpush.msra.mxu0 0.0
        %1375 = vmatpush.msra.mxu0 0.0
        %1376 = vmatpush.msra.mxu0 0.0
        %1377 = vmatpush.msra.mxu0 0.0
        %1378 = vmatpush.msra.mxu0 0.0
        %1379 = vmatpush.msra.mxu0 0.0
        %1380 = vmatpush.msra.mxu0 0.0
        %1381 = vmatpush.msra.mxu0 %v1359
        %1382 = vmatmul.f32.gmra.mxu0 %v1364
        %v1383 = vpop.f32.mrf.mxu0
        %v1384 = vadd.f32 0.0, %v1383
        %1385 = vdwg.mxu0
        %v1387 = vsel %vm1002, %v1311, 0
        %1389 = vmatpush.msra.mxu0 0.0
        %1390 = vmatpush.msra.mxu0 0.0
        %1391 = vmatpush.msra.mxu0 0.0
        %1392 = vmatpush.msra.mxu0 0.0
        %1393 = vmatpush.msra.mxu0 0.0
        %1394 = vmatpush.msra.mxu0 0.0
        %1395 = vmatpush.msra.mxu0 0.0
        %1396 = vmatpush.msra.mxu0 0.0
        %1397 = vmatpush.msra.mxu0 0.0
        %1398 = vmatpush.msra.mxu0 0.0
        %1399 = vmatpush.msra.mxu0 0.0
        %1400 = vmatpush.msra.mxu0 0.0
        %1401 = vmatpush.msra.mxu0 0.0
        %1402 = vmatpush.msra.mxu0 0.0
        %1403 = vmatpush.msra.mxu0 0.0
        %1404 = vmatpush.msra.mxu0 %v1360
        %1405 = vmatmul.f32.gmra.mxu0 %v1387
        %v1406 = vpop.f32.mrf.mxu0
        %v1407 = vadd.f32 0.0, %v1406
        %1408 = vdwg.mxu0
        %v1410 = vsel %vm1002, %v1334, 0
        %1412 = vmatpush.msra.mxu0 0.0
        %1413 = vmatpush.msra.mxu0 0.0
        %1414 = vmatpush.msra.mxu0 0.0
        %1415 = vmatpush.msra.mxu0 0.0
        %1416 = vmatpush.msra.mxu0 0.0
        %1417 = vmatpush.msra.mxu0 0.0
        %1418 = vmatpush.msra.mxu0 0.0
        %1419 = vmatpush.msra.mxu0 0.0
        %1420 = vmatpush.msra.mxu0 0.0
        %1421 = vmatpush.msra.mxu0 0.0
        %1422 = vmatpush.msra.mxu0 0.0
        %1423 = vmatpush.msra.mxu0 0.0
        %1424 = vmatpush.msra.mxu0 0.0
        %1425 = vmatpush.msra.mxu0 0.0
        %1426 = vmatpush.msra.mxu0 0.0
        %1427 = vmatpush.msra.mxu0 %v1361
        %1428 = vmatmul.f32.gmra.mxu0 %v1410
        %v1429 = vpop.f32.mrf.mxu0
        %v1430 = vadd.f32 0.0, %v1429
        %1431 = vdwg.mxu0
        %v1433 = vsel %vm1002, %v1357, 0
        %1435 = vmatpush.msra.mxu0 0.0
        %1436 = vmatpush.msra.mxu0 0.0
        %1437 = vmatpush.msra.mxu0 0.0
        %1438 = vmatpush.msra.mxu0 0.0
        %1439 = vmatpush.msra.mxu0 0.0
        %1440 = vmatpush.msra.mxu0 0.0
        %1441 = vmatpush.msra.mxu0 0.0
        %1442 = vmatpush.msra.mxu0 0.0
        %1443 = vmatpush.msra.mxu0 0.0
        %1444 = vmatpush.msra.mxu0 0.0
        %1445 = vmatpush.msra.mxu0 0.0
        %1446 = vmatpush.msra.mxu0 0.0
        %1447 = vmatpush.msra.mxu0 0.0
        %1448 = vmatpush.msra.mxu0 0.0
        %1449 = vmatpush.msra.mxu0 0.0
        %1450 = vmatpush.msra.mxu0 %v1362
        %1451 = vmatmul.f32.gmra.mxu0 %v1433
        %v1452 = vpop.f32.mrf.mxu0
        %v1453 = vadd.f32 0.0, %v1452
        %1454 = vdwg.mxu0
        %v1455 = vsel %vm916, %v1384, 0.0
        %v1456 = vsel %vm916, %v1407, 0.0
        %v1457 = vadd.f32 %v1455, %v1456
        %v1458 = vsel %vm916, %v1430, 0.0
        %v1459 = vadd.f32 %v1457, %v1458
        %v1460 = vsel %vm916, %v1453, 0.0
        %v1461 = vadd.f32 %v1459, %v1460
        %v1462 = vld [vmem:[%s9] sm:$0x1]
        %v1464 = vperm.slane %v1462, 0
        %v1466 = vadd.f32 %v1461, %v1464
        %v1467 = vadd.f32 %v913, %v1466
        %v1468 = vld [vmem:[%s16] sm:$0x1]
        %v1469 = vld [vmem:[%s17] sm:$0x1]
        %v1470 = vsel %vm916, %v1467, 0.0
        %1471 = vadd.xlane.f32.xlu0 %v1470
        %v1472 = vpop.xlane.xlu0 %1471
        %v1473 = vmul.f32 %v1472, %v926
        %v1474 = vsub.f32 %v1467, %v1473
        %v1475 = vmul.f32 %v1474, %v1474
        %v1476 = vsel %vm916, %v1475, 0.0
        %1477 = vadd.xlane.f32.xlu0 %v1476
        %v1478 = vpop.xlane.xlu0 %1477
        %v1479 = vmul.f32 %v1478, 0.032258064
        %v1480 = vrsqrt.pop %v1479
        %v1481 = vmul.f32 %v1480, %v1479
        %v1482 = vmul.f32 %v1481, %v1480
        %v1483 = vmul.f32 0.5, %v1482
        %v1484 = vsub.f32 1.5, %v1483
        %v1485 = vmul.f32 %v1480, %v1484
        %v1486 = vmul.f32 %v1479, %v1485
        %vm1487 = vcmp.eq.f32.partialorder %v1479, inf
        %v1488 = vsel %vm1487, %v1479, %v1486
        %vm1489 = vcmp.eq.f32.partialorder %v1479, 0.0
        %v1490 = vand.u32 %v1479, 2147483648
        %v1491 = vsel %vm1489, %v1490, %v1488
        %v1492 = vadd.f32 %v1491, 1e-06
        %v1493 = vrcp.pop %v1492
        %v1494 = vmul.f32 %v1492, %v1493
        %v1495 = vsub.f32 1.0, %v1494
        %v1496 = vmul.f32 %v1493, %v1495
        %v1497 = vadd.f32 %v1493, %v1496
        %vm1498 = vweird.f32 %v1492
        %vm1499 = vweird.f32 %v1493
        %vm1500 = vmor %vm1498, %vm1499
        %v1501 = vsel %vm1500, %v1493, %v1497
        %v1502 = vand.u32 2147483647, %v1492
        %vm1503 = vcmp.eq.f32.partialorder %v1502, 8.507059e+37
        %v1504 = vand.u32 %v1492, 2147483648
        %v1505 = vor.u32 1.1754944e-38, %v1504
        %v1506 = vsel %vm1503, %v1505, %v1501
        %v1507 = vmul.f32 %v1474, %v1506
        %v1509 = vperm.slane %v1468, 0
        %v1511 = vmul.f32 %v1507, %v1509
        %v1513 = vperm.slane %v1469, 0
        %v1515 = vadd.f32 %v1511, %v1513
        %v1516 = vld [vmem:[%s12] sm:$0xff]
        %v1517 = vld [vmem:[%s12 + $0x8] sm:$0xff]
        %v1518 = vld [vmem:[%s12 + $0x10] sm:$0xff]
        %v1519 = vld [vmem:[%s12 + $0x18] sm:$0xff]
        %v1520 = vld [vmem:[%s13] sm:$0x1]
        %v1522 = vperm.slane %v1520, 0
        %v1525 = vsel %vm916, %v1515, 0
        %1527 = vmatpush.msra.mxu0 0.0
        %1528 = vmatpush.msra.mxu0 0.0
        %1529 = vmatpush.msra.mxu0 0.0
        %1530 = vmatpush.msra.mxu0 0.0
        %1531 = vmatpush.msra.mxu0 0.0
        %1532 = vmatpush.msra.mxu0 0.0
        %1533 = vmatpush.msra.mxu0 0.0
        %1534 = vmatpush.msra.mxu0 0.0
        %1535 = vmatpush.msra.mxu0 0.0
        %1536 = vmatpush.msra.mxu0 0.0
        %1537 = vmatpush.msra.mxu0 0.0
        %1538 = vmatpush.msra.mxu0 0.0
        %1539 = vmatpush.msra.mxu0 %v1519
        %1540 = vmatpush.msra.mxu0 %v1518
        %1541 = vmatpush.msra.mxu0 %v1517
        %1542 = vmatpush.msra.mxu0 %v1516
        %1543 = vmatmul.f32.gmra.mxu0 %v1525
        %v1544 = vpop.f32.mrf.mxu0
        %v1545 = vadd.f32 %v1522, %v1544
        %1546 = vdwg.mxu0
        %v1547 = vmax.f32 %v1545, 0.0
        %v1548 = vld [vmem:[%s14] sm:$0xff]
        %v1549 = vld [vmem:[%s14 + $0x8] sm:$0xff]
        %v1550 = vld [vmem:[%s14 + $0x10] sm:$0xff]
        %v1551 = vld [vmem:[%s14 + $0x18] sm:$0xff]
        %v1552 = vld [vmem:[%s14 + $0x20] sm:$0xff]
        %v1553 = vld [vmem:[%s14 + $0x28] sm:$0xff]
        %v1554 = vld [vmem:[%s14 + $0x30] sm:$0xff]
        %v1555 = vld [vmem:[%s14 + $0x38] sm:$0xff]
        %v1556 = vld [vmem:[%s15] sm:$0x1]
        %v1558 = vperm.slane %v1556, 0
        %vm1560 = vcmask 523264
        %v1562 = vsel %vm1560, %v1547, 0
        %1564 = vmatpush.msra.mxu0 0.0
        %1565 = vmatpush.msra.mxu0 0.0
        %1566 = vmatpush.msra.mxu0 0.0
        %1567 = vmatpush.msra.mxu0 0.0
        %1568 = vmatpush.msra.mxu0 0.0
        %1569 = vmatpush.msra.mxu0 0.0
        %1570 = vmatpush.msra.mxu0 0.0
        %1571 = vmatpush.msra.mxu0 0.0
        %1572 = vmatpush.msra.mxu0 %v1555
        %1573 = vmatpush.msra.mxu0 %v1554
        %1574 = vmatpush.msra.mxu0 %v1553
        %1575 = vmatpush.msra.mxu0 %v1552
        %1576 = vmatpush.msra.mxu0 %v1551
        %1577 = vmatpush.msra.mxu0 %v1550
        %1578 = vmatpush.msra.mxu0 %v1549
        %1579 = vmatpush.msra.mxu0 %v1548
        %1580 = vmatmul.f32.gmra.mxu0 %v1562
        %v1581 = vpop.f32.mrf.mxu0
        %v1582 = vadd.f32 %v1558, %v1581
        %1583 = vdwg.mxu0
        %v1584 = vadd.f32 %v1467, %v1582
        %1585 = vst.msk [vmem:[%s634] sm:$0xff] %vm916, %v1584
        %s1586 = sand.u32 %s449, 1
        %s1587 = scalar_lea.sflag [#allocation6], %s1586
        %s1588 = sand.u32 %s449, 1
        %s1589 = smul.addr %s1588, 8
        %s1590 = scalar_lea.vmem [#allocation5], %s1589
        %s1591 = sand.u32 %s477, 1
        %s1592 = scalar_lea.sflag [#allocation8], %s1591
        %s1593 = sand.u32 %s477, 1
        %s1594 = smul.addr %s1593, 32
        %s1595 = scalar_lea.vmem [#allocation7], %s1594
        // Predicated region
        $region97: #{tpu_custom_call.1} parent=91 // pred_check
          %p1596 = pneg %p459
        $region98: #{tpu_custom_call.1} parent=91 // pred_check_branch
          %1598 = sbr.rel (%p1596) target = $region100
        $region99: #{tpu_custom_call.1} parent=91 // pred_region
          %1600 = vsyncadd %s1587, 0
          %s1601 = sadd.s32 %s42, %s41
          %s1602 = smul.addr %s1601, 8
          %s1603 = scalar_lea.hbm %s18, %s1602
          %s1605 = sshll.u32 %s1590, 4
          %s1606 = int_to_ptr.vmem [resolvable:$true] %s1605
          %s1607 = sshll.u32 %s1603, 4
          %s1608 = int_to_ptr.hbm [resolvable:$true] %s1607
          %1610 = dma.vmem_to_hbm [thread:$0]  %s1606, 128, %s1608, %s1587
        $region100: #{tpu_custom_call.1} parent=91 // pred_fallthru
          _
        // Predicated region
        $region101: #{tpu_custom_call.1} parent=91 // pred_check
          %p1611 = pneg %p487
        $region102: #{tpu_custom_call.1} parent=91 // pred_check_branch
          %1613 = sbr.rel (%p1611) target = $region104
        $region103: #{tpu_custom_call.1} parent=91 // pred_region
          %1615 = vsyncadd %s1592, 0
          %s1616 = smul.addr %s41, 4
          %s1617 = sadd.s32 %s42, %s1616
          %s1618 = smul.addr %s1617, 8
          %s1619 = scalar_lea.hbm %s19, %s1618
          %s1620 = sshll.u32 %s1595, 4
          %s1621 = int_to_ptr.vmem [resolvable:$true] %s1620
          %s1622 = sshll.u32 %s1619, 4
          %s1623 = int_to_ptr.hbm [resolvable:$true] %s1622
          %1628 = dma.vmem_to_hbm [thread:$0]  %s1621, 512, %s1623, %s1592, 128, 128, 8
        $region104: #{tpu_custom_call.1} parent=91 // pred_fallthru
          _
      $region92: #{tpu_custom_call.1} parent=5 // pred_fallthru
        _
      %p1629 = scmp.le.s32.totalorder 2, %s32
      // Predicated region
      $region105: #{tpu_custom_call.1} parent=5 // pred_check
        %p1630 = pneg %p1629
      $region106: #{tpu_custom_call.1} parent=5 // pred_check_branch
        %1632 = sbr.rel (%p1630) target = $region108
      $region107: #{tpu_custom_call.1} parent=5 // pred_region
        %s1633 = ssub.s32 %s32, 2
        // Predicated region
        $region109: #{tpu_custom_call.1} parent=107 // pred_check
          %p1634 = pneg %p465
        $region110: #{tpu_custom_call.1} parent=107 // pred_check_branch
          %1636 = sbr.rel (%p1634) target = $region112
        $region111: #{tpu_custom_call.1} parent=107 // pred_region
          %s1637 = sand.u32 %s450, 1
          %s1638 = scalar_lea.sflag [#allocation6], %s1637
          %s1639 = sand.u32 %s450, 1
          %s1640 = smul.addr %s1639, 8
          %s1641 = scalar_lea.vmem [#allocation5], %s1640
          %1643 = dma.done %s1638, 128
        $region112: #{tpu_custom_call.1} parent=107 // pred_fallthru
          _
        // Predicated region
        $region113: #{tpu_custom_call.1} parent=107 // pred_check
          %p1644 = pneg %p493
        $region114: #{tpu_custom_call.1} parent=107 // pred_check_branch
          %1646 = sbr.rel (%p1644) target = $region116
        $region115: #{tpu_custom_call.1} parent=107 // pred_region
          %s1647 = sand.u32 %s478, 1
          %s1648 = scalar_lea.sflag [#allocation8], %s1647
          %s1649 = sand.u32 %s478, 1
          %s1650 = smul.addr %s1649, 32
          %s1651 = scalar_lea.vmem [#allocation7], %s1650
          %1653 = dma.done %s1648, 512
        $region116: #{tpu_custom_call.1} parent=107 // pred_fallthru
          _
      $region108: #{tpu_custom_call.1} parent=5 // pred_fallthru
        _
    $region6: #{tpu_custom_call.1} parent=1 // loop_footer
      %s36 = sadd.s32 1, %s32
    $region7: #{tpu_custom_call.1} parent=1 // loop_footer_branch
      %31 = sbr.rel target = $region3
    $region8: #{tpu_custom_call.1} parent=1 // loop_exit
      _
    %1654 = vsyncpa [#allocation6], 1
    %s1655 = scalar_lea.sflag [#allocation6], 1
    %1656 = vsyncpa %s1655, 1
    %1657 = vsyncpa [#allocation8], 1
    %s1658 = scalar_lea.sflag [#allocation8], 1
    %1659 = vsyncpa %s1658, 1

</llo_original>
